<compile_context>
chip_gen: v7x
topology: tpu7x:2x2x1
jax: 0.10.0
libtpu: 0.0.40
codegen_flags: <defaults>
</compile_context>

<pallas_src>
import functools
import math

import jax
import jax.numpy as jnp
from jax import lax
from jax.experimental import pallas as pl
from jax.experimental.pallas import tpu as pltpu


def _round_up(x, m):
    return ((x + m - 1) // m) * m


def _make_kernel(TH, Wo, C, Cout, concat_path):
    """One (image, output-row-tile) grid step.

    win_ref: (1, 1, 2, 2*TH+1, Wc, C)  parity-split input window
             axis 2: 0 = even padded columns (2*j), 1 = odd (2*j+1)
             axis 3: rows [0, TH]    = even padded rows of the window,
                     rows [TH+1, 2*TH] = odd padded rows
    w_ref:   (9, C, Cout)  resident; tap index k = 3*kh + kw
    b_ref:   (1, Cout)     resident, float32
    o_ref:   (1, TH*Wo, Cout)
    """
    row0 = (0, TH + 1, 1)   # kh -> first window-row of the tap (major axis)
    cpar = (0, 1, 0)        # kw -> column parity
    col0 = (0, 0, 1)        # kw -> first column (within parity) of the tap

    def kernel(win_ref, w_ref, b_ref, o_ref):
        def tap(kh, kw):
            # Static, contiguous slices only.
            # TODO(synk): the kw==2 offset-1 sublane slice could be replaced
            # by pltpu.roll (XLU slot) if the repack ever shows in the bundle.
            v = win_ref[0, 0, cpar[kw],
                        row0[kh]:row0[kh] + TH,
                        col0[kw]:col0[kw] + Wo, :]          # (TH, Wo, C)
            return v.reshape(TH * Wo, C)

        if concat_path:
            # Large Cout, lane-aligned C: one MXU matmul with K = 9*C.
            patch = jnp.concatenate(
                [tap(kh, kw) for kh in range(3) for kw in range(3)], axis=-1)
            acc = jnp.dot(patch, w_ref[...].reshape(9 * C, Cout),
                          preferred_element_type=jnp.float32)
        else:
            # Accumulate 9 K=C matmuls straight from the tap slices (no VMEM
            # patch materialization; MRB accumulation is in-place on v7x).
            acc = None
            for kh in range(3):
                for kw in range(3):
                    part = jnp.dot(tap(kh, kw), w_ref[3 * kh + kw],
                                   preferred_element_type=jnp.float32)
                    acc = part if acc is None else acc + part

        acc = acc + b_ref[...]                      # (1, Cout) f32 broadcast
        o_ref[0] = acc.astype(o_ref.dtype)          # dense (TH*Wo, Cout) store

    return kernel


def _vmem_capacity_bytes():
    # 64 MiB/TC on v7x, 128 MiB on v5e/v6e; fall back to the smallest if the
    # query is unavailable so the limit is always physically safe.
    try:
        return int(pltpu.get_tpu_info().vmem_capacity_bytes)
    except Exception:
        return 64 * 1024 * 1024


def _pick_tile_rows(N, Ho, Wo, C, Cout, in_itemsize, out_itemsize, max_tile_rows):
    """Largest output-row tile TH such that
         - TH*Wo is a multiple of 8 (sublane-dense output block) or TH == Ho,
         - double-buffered blocks + f32 temporaries + the resident weight fit
           the generation-aware VMEM budget,
         - the grid has >= 2 steps when N == 1 (both v7x TensorCores busy)."""
    cap = _vmem_capacity_bytes()
    vmem_limit = min(cap * 3 // 4, 112 * 1024 * 1024)   # ~48 MiB v7x, ~96 MiB v5e/v6e

    # VMEM footprints use layout-padded minor dims.
    sub = 8 * max(1, 4 // in_itemsize)                  # sublane tile (16 for bf16)
    wc_p = _round_up(Wo + 1, sub)
    c_p = _round_up(C, 128)
    co_p = _round_up(Cout, 128)
    weight_bytes = 9 * c_p * co_p * in_itemsize + 8 * co_p * 4   # resident, single-buffered
    budget = max(vmem_limit - weight_bytes - (3 << 20), 2 << 20)

    def vmem_need(th):
        win = 2 * (2 * th + 1) * wc_p * c_p * in_itemsize * 2      # input block, 2x buffered
        out = _round_up(th * Wo, 8) * co_p * out_itemsize * 2      # output block, 2x buffered
        tmp = th * Wo * (co_p * 4 + 2 * c_p * max(in_itemsize, 4)) # f32 acc + live taps
        return win + out + tmp

    step = 8 // math.gcd(Wo, 8)
    cands = sorted({Ho, *range(step, Ho + 1, step)}, reverse=True)
    if max_tile_rows is not None:
        capped = [t for t in cands if t <= max_tile_rows]
        cands = capped or [min(cands)]
    th = next((t for t in cands if vmem_need(t) <= budget), min(cands))

    if N * (-(-Ho // th)) < 2 and Ho > 1:               # megacore: >= 2 grid steps
        smaller = [t for t in cands if t < Ho and t <= -(-Ho // 2)]
        if smaller:
            th = next((t for t in smaller if vmem_need(t) <= budget), min(smaller))
    return th, vmem_limit


@functools.partial(
    jax.jit,
    static_argnames=("use_conv", "mxu_dtype", "max_tile_rows", "single_buffer_resident"))
def _downsample_impl(x_nchw, weight, bias, *, use_conv=True, mxu_dtype=None,
                     max_tile_rows=None, single_buffer_resident=True):
    if not use_conv:
        raise NotImplementedError("use_conv=False is invalid in the reference module")

    N, C, H, W = x_nchw.shape
    Cout, Cin, KH, KW = weight.shape
    assert C == Cin and KH == 3 and KW == 3

    Ho = (H - 1) // 2 + 1
    Wo = (W - 1) // 2 + 1

    out_dt = x_nchw.dtype
    cdt = jnp.dtype(mxu_dtype) if mxu_dtype is not None else jnp.dtype(out_dt)

    TH, vmem_limit = _pick_tile_rows(N, Ho, Wo, C, Cout,
                                     jnp.dtype(cdt).itemsize,
                                     jnp.dtype(out_dt).itemsize,
                                     max_tile_rows)
    T = -(-Ho // TH)              # ragged last tile is masked by Pallas
    R2 = 2 * TH + 1

    # Columns per parity group; pad to a sublane multiple only when cheap
    # (<= 12.5% extra bytes), since `windows` is the kernel's HBM read.
    Wc = Wo + 1
    if _round_up(Wc, 8) * 8 <= Wc * 9:
        Wc = _round_up(Wc, 8)

    # ---- host glue: ONE fused data-movement pass over the input ----
    # NCHW -> NHWC (cast to MXU dtype here), zero pad for the stride-2/pad-1
    # window grid, split rows/columns by parity, cut per-tile row windows.
    # Everything is slicing/stacking of the same padded transpose so XLA can
    # fuse it into a single pass producing `windows` (~1.1x input bytes).
    x = jnp.transpose(x_nchw, (0, 2, 3, 1)).astype(cdt)            # (N, H, W, C)
    Hp = 2 * TH * T + 1
    Wp = 2 * Wc
    x_pad = jnp.pad(x, ((0, 0), (1, Hp - 1 - H), (1, Wp - 1 - W), (0, 0)))
    # column parity axis: 0 = even padded cols, 1 = odd
    xcp = jnp.stack([x_pad[:, :, 0::2, :], x_pad[:, :, 1::2, :]], axis=1)

    def _window(t):
        base = 2 * TH * t
        ev = xcp[:, :, base:base + 2 * TH + 1:2]                   # (N, 2, TH+1, Wc, C)
        od = xcp[:, :, base + 1:base + 2 * TH:2]                   # (N, 2, TH,   Wc, C)
        return jnp.concatenate([ev, od], axis=2)                   # (N, 2, R2,   Wc, C)

    windows = jnp.stack([_window(t) for t in range(T)], axis=1)    # (N, T, 2, R2, Wc, C)

    # weight (Cout, Cin, 3, 3) -> (9, Cin, Cout), tap index k = 3*kh + kw
    w3 = jnp.transpose(weight, (2, 3, 1, 0)).reshape(9, Cin, Cout).astype(cdt)
    b2 = bias.reshape(1, Cout).astype(jnp.float32)

    concat_path = (Cout >= 512) and (C % 128 == 0)
    kernel = _make_kernel(TH, Wo, C, Cout, concat_path)

    win_spec = pl.BlockSpec((1, 1, 2, R2, Wc, C), lambda n, t: (n, t, 0, 0, 0, 0))
    if single_buffer_resident:
        # Constant-index blocks stay resident; single-buffering reclaims the
        # VMEM a default double buffer would waste on them.
        w_spec = pl.BlockSpec((9, Cin, Cout), lambda n, t: (0, 0, 0),
                              pipeline_mode=pl.Buffered(1))
        b_spec = pl.BlockSpec((1, Cout), lambda n, t: (0, 0),
                              pipeline_mode=pl.Buffered(1))
    else:
        w_spec = pl.BlockSpec((9, Cin, Cout), lambda n, t: (0, 0, 0))
        b_spec = pl.BlockSpec((1, Cout), lambda n, t: (0, 0))

    cost = pl.CostEstimate(
        flops=2 * N * Ho * Wo * 9 * Cin * Cout,
        transcendentals=0,
        bytes_accessed=int(windows.size * windows.dtype.itemsize
                           + w3.size * w3.dtype.itemsize + b2.size * 4
                           + N * Ho * Wo * Cout * jnp.dtype(out_dt).itemsize))

    out_flat = pl.pallas_call(
        kernel,
        out_shape=jax.ShapeDtypeStruct((N, Ho * Wo, Cout), out_dt),
        grid=(N, T),
        in_specs=[win_spec, w_spec, b_spec],
        out_specs=pl.BlockSpec((1, TH * Wo, Cout), lambda n, t: (n, t, 0)),
        compiler_params=pltpu.CompilerParams(
            dimension_semantics=("parallel", "parallel"),
            vmem_limit_bytes=int(vmem_limit)),
        cost_estimate=cost,
    )(windows, w3, b2)

    out = out_flat.reshape(N, Ho, Wo, Cout)             # free (metadata) split
    return jnp.transpose(out, (0, 3, 1, 2))             # NHWC -> NCHW


def downsample(x_nchw, weight, bias, use_conv=True, mxu_dtype=None, max_tile_rows=None):
    """Matches nn.Conv2d(C, C, kernel_size=3, stride=2, padding=1)(x).

    mxu_dtype=jnp.bfloat16 halves HBM/VMEM traffic (recommended in production,
    biggest win on v5e); the default keeps f32 operands so numerics match the
    reference module exactly.  Accumulation is always f32.
    """
    if not use_conv:
        # TODO(synk): nn.AvgPool2d(stride=2) raises TypeError in PyTorch
        # (kernel_size missing), so only the conv path is implemented.
        raise NotImplementedError(
            "use_conv=False: nn.AvgPool2d(stride=2) is invalid in the reference.")
    try:
        return _downsample_impl(x_nchw, weight, bias, use_conv=True,
                                mxu_dtype=mxu_dtype, max_tile_rows=max_tile_rows,
                                single_buffer_resident=True)
    except Exception:
        # Fallback for JAX builds that reject pl.Buffered(1) on resident blocks.
        return _downsample_impl(x_nchw, weight, bias, use_conv=True,
                                mxu_dtype=mxu_dtype, max_tile_rows=max_tile_rows,
                                single_buffer_resident=False)


if __name__ == "__main__":
    key = jax.random.PRNGKey(0)
    kx, kw_, kb = jax.random.split(key, 3)

    N, C, H, W = 2, 4, 16, 16
    x = jax.random.normal(kx, (N, C, H, W), dtype=jnp.float32)

    # Deterministic Conv2d params: weight (C, C, 3, 3), bias (C,)
    fan_in = C * 3 * 3
    bound = 1.0 / math.sqrt(fan_in)
    weight = jax.random.uniform(kw_, (C, C, 3, 3), jnp.float32, -bound, bound)
    bias = jax.random.uniform(kb, (C,), jnp.float32, -bound, bound)

    def conv_ref(xv):
        return lax.conv_general_dilated(
            xv, weight, window_strides=(2, 2), padding=((1, 1), (1, 1)),
            dimension_numbers=("NCHW", "OIHW", "NCHW")) + bias.reshape(1, C, 1, 1)

    # f32 path (exact module semantics)
    out = jax.block_until_ready(downsample(x, weight, bias, use_conv=True))
    assert out.shape == (N, C, H // 2, W // 2), out.shape
    assert jnp.allclose(out, conv_ref(x), atol=1e-5, rtol=1e-5)

    # bf16 MXU-operand path (f32 accumulation) — production recommendation.
    out_bf16 = jax.block_until_ready(
        downsample(x, weight, bias, mxu_dtype=jnp.bfloat16))
    assert jnp.allclose(out_bf16, conv_ref(x), atol=5e-2, rtol=5e-2)

    # Row-tiled / ragged-grid path: odd spatial size, N=1, forced TH=3
    # -> 3 tiles with a masked last tile and a megacore-friendly grid.
    x2 = jax.random.normal(kx, (1, C, 15, 15), dtype=jnp.float32)
    out2 = jax.block_until_ready(downsample(x2, weight, bias, max_tile_rows=3))
    assert out2.shape == (1, C, 8, 8), out2.shape
    assert jnp.allclose(out2, conv_ref(x2), atol=1e-5, rtol=1e-5)

    print("KERNEL_OK")
</pallas_src>

<mosaic_0001>
module attributes {stable_mosaic.version = 11 : i64} {
  func.func @kernel(%arg0: i32, %arg1: i32, %arg2: memref<1x1x2x17x9x4xf32, #tpu.memory_space<vmem>>, %arg3: memref<9x4x4xf32, #tpu.memory_space<vmem>>, %arg4: memref<1x4xf32, #tpu.memory_space<vmem>>, %arg5: memref<1x64x4xf32, #tpu.memory_space<vmem>>) attributes {dimension_semantics = [#tpu.dimension_semantics<parallel>, #tpu.dimension_semantics<parallel>], iteration_bounds = array<i64: 2, 1>, scalar_prefetch = 0 : i64, scratch_operands = 0 : i64, tpu.core_type = #tpu.core_type<tc>, window_params = [{transform_indices = @transform_0, window_bounds = array<i64: 1, 1, 2, 17, 9, 4>}, {pipeline_mode = #tpu.pipeline_mode<synchronous>, transform_indices = @transform_1, window_bounds = array<i64: 9, 4, 4>}, {pipeline_mode = #tpu.pipeline_mode<synchronous>, transform_indices = @transform_2, window_bounds = array<i64: 1, 4>}, {transform_indices = @transform_3, window_bounds = array<i64: 1, 64, 4>}]} {
    %c0 = arith.constant 0 : index
    %c0_0 = arith.constant 0 : index
    %c0_1 = arith.constant 0 : index
    %c0_2 = arith.constant 0 : index
    %c0_3 = arith.constant 0 : index
    %c0_4 = arith.constant 0 : index
    %0 = vector.load %arg2[%c0, %c0_0, %c0_1, %c0_2, %c0_3, %c0_4] : memref<1x1x2x17x9x4xf32, #tpu.memory_space<vmem>>, vector<1x1x1x8x8x4xf32>
    %1 = vector.shape_cast %0 : vector<1x1x1x8x8x4xf32> to vector<8x8x4xf32>
    %2 = vector.shape_cast %1 : vector<8x8x4xf32> to vector<64x4xf32>
    %c0_5 = arith.constant 0 : index
    %c0_6 = arith.constant 0 : index
    %c0_7 = arith.constant 0 : index
    %3 = vector.load %arg3[%c0_5, %c0_6, %c0_7] : memref<9x4x4xf32, #tpu.memory_space<vmem>>, vector<1x4x4xf32>
    %4 = vector.shape_cast %3 : vector<1x4x4xf32> to vector<4x4xf32>
    %cst = arith.constant dense<0.000000e+00> : vector<64x4xf32>
    %5 = tpu.matmul %2, %4, %cst {dimension_numbers = #tpu.dot_dimension_numbers<[1], [0], [0], [1], [0, 0, 1, 1], [], []>} : vector<64x4xf32>, vector<4x4xf32>, vector<64x4xf32> -> vector<64x4xf32>
    %c0_8 = arith.constant 0 : index
    %c0_9 = arith.constant 0 : index
    %c1 = arith.constant 1 : index
    %c0_10 = arith.constant 0 : index
    %c0_11 = arith.constant 0 : index
    %c0_12 = arith.constant 0 : index
    %6 = vector.load %arg2[%c0_8, %c0_9, %c1, %c0_10, %c0_11, %c0_12] : memref<1x1x2x17x9x4xf32, #tpu.memory_space<vmem>>, vector<1x1x1x8x8x4xf32>
    %7 = vector.shape_cast %6 : vector<1x1x1x8x8x4xf32> to vector<8x8x4xf32>
    %8 = vector.shape_cast %7 : vector<8x8x4xf32> to vector<64x4xf32>
    %c1_13 = arith.constant 1 : index
    %c0_14 = arith.constant 0 : index
    %c0_15 = arith.constant 0 : index
    %9 = vector.load %arg3[%c1_13, %c0_14, %c0_15] : memref<9x4x4xf32, #tpu.memory_space<vmem>>, vector<1x4x4xf32>
    %10 = vector.shape_cast %9 : vector<1x4x4xf32> to vector<4x4xf32>
    %cst_16 = arith.constant dense<0.000000e+00> : vector<64x4xf32>
    %11 = tpu.matmul %8, %10, %cst_16 {dimension_numbers = #tpu.dot_dimension_numbers<[1], [0], [0], [1], [0, 0, 1, 1], [], []>} : vector<64x4xf32>, vector<4x4xf32>, vector<64x4xf32> -> vector<64x4xf32>
    %12 = arith.addf %5, %11 : vector<64x4xf32>
    %c0_17 = arith.constant 0 : index
    %c0_18 = arith.constant 0 : index
    %c0_19 = arith.constant 0 : index
    %c0_20 = arith.constant 0 : index
    %c1_21 = arith.constant 1 : index
    %c0_22 = arith.constant 0 : index
    %13 = vector.load %arg2[%c0_17, %c0_18, %c0_19, %c0_20, %c1_21, %c0_22] : memref<1x1x2x17x9x4xf32, #tpu.memory_space<vmem>>, vector<1x1x1x8x8x4xf32>
    %14 = vector.shape_cast %13 : vector<1x1x1x8x8x4xf32> to vector<8x8x4xf32>
    %15 = vector.shape_cast %14 : vector<8x8x4xf32> to vector<64x4xf32>
    %c2 = arith.constant 2 : index
    %c0_23 = arith.constant 0 : index
    %c0_24 = arith.constant 0 : index
    %16 = vector.load %arg3[%c2, %c0_23, %c0_24] : memref<9x4x4xf32, #tpu.memory_space<vmem>>, vector<1x4x4xf32>
    %17 = vector.shape_cast %16 : vector<1x4x4xf32> to vector<4x4xf32>
    %cst_25 = arith.constant dense<0.000000e+00> : vector<64x4xf32>
    %18 = tpu.matmul %15, %17, %cst_25 {dimension_numbers = #tpu.dot_dimension_numbers<[1], [0], [0], [1], [0, 0, 1, 1], [], []>} : vector<64x4xf32>, vector<4x4xf32>, vector<64x4xf32> -> vector<64x4xf32>
    %19 = arith.addf %12, %18 : vector<64x4xf32>
    %c0_26 = arith.constant 0 : index
    %c0_27 = arith.constant 0 : index
    %c0_28 = arith.constant 0 : index
    %c9 = arith.constant 9 : index
    %c0_29 = arith.constant 0 : index
    %c0_30 = arith.constant 0 : index
    %20 = vector.load %arg2[%c0_26, %c0_27, %c0_28, %c9, %c0_29, %c0_30] : memref<1x1x2x17x9x4xf32, #tpu.memory_space<vmem>>, vector<1x1x1x8x8x4xf32>
    %21 = vector.shape_cast %20 : vector<1x1x1x8x8x4xf32> to vector<8x8x4xf32>
    %22 = vector.shape_cast %21 : vector<8x8x4xf32> to vector<64x4xf32>
    %c3 = arith.constant 3 : index
    %c0_31 = arith.constant 0 : index
    %c0_32 = arith.constant 0 : index
    %23 = vector.load %arg3[%c3, %c0_31, %c0_32] : memref<9x4x4xf32, #tpu.memory_space<vmem>>, vector<1x4x4xf32>
    %24 = vector.shape_cast %23 : vector<1x4x4xf32> to vector<4x4xf32>
    %cst_33 = arith.constant dense<0.000000e+00> : vector<64x4xf32>
    %25 = tpu.matmul %22, %24, %cst_33 {dimension_numbers = #tpu.dot_dimension_numbers<[1], [0], [0], [1], [0, 0, 1, 1], [], []>} : vector<64x4xf32>, vector<4x4xf32>, vector<64x4xf32> -> vector<64x4xf32>
    %26 = arith.addf %19, %25 : vector<64x4xf32>
    %c0_34 = arith.constant 0 : index
    %c0_35 = arith.constant 0 : index
    %c1_36 = arith.constant 1 : index
    %c9_37 = arith.constant 9 : index
    %c0_38 = arith.constant 0 : index
    %c0_39 = arith.constant 0 : index
    %27 = vector.load %arg2[%c0_34, %c0_35, %c1_36, %c9_37, %c0_38, %c0_39] : memref<1x1x2x17x9x4xf32, #tpu.memory_space<vmem>>, vector<1x1x1x8x8x4xf32>
    %28 = vector.shape_cast %27 : vector<1x1x1x8x8x4xf32> to vector<8x8x4xf32>
    %29 = vector.shape_cast %28 : vector<8x8x4xf32> to vector<64x4xf32>
    %c4 = arith.constant 4 : index
    %c0_40 = arith.constant 0 : index
    %c0_41 = arith.constant 0 : index
    %30 = vector.load %arg3[%c4, %c0_40, %c0_41] : memref<9x4x4xf32, #tpu.memory_space<vmem>>, vector<1x4x4xf32>
    %31 = vector.shape_cast %30 : vector<1x4x4xf32> to vector<4x4xf32>
    %cst_42 = arith.constant dense<0.000000e+00> : vector<64x4xf32>
    %32 = tpu.matmul %29, %31, %cst_42 {dimension_numbers = #tpu.dot_dimension_numbers<[1], [0], [0], [1], [0, 0, 1, 1], [], []>} : vector<64x4xf32>, vector<4x4xf32>, vector<64x4xf32> -> vector<64x4xf32>
    %33 = arith.addf %26, %32 : vector<64x4xf32>
    %c0_43 = arith.constant 0 : index
    %c0_44 = arith.constant 0 : index
    %c0_45 = arith.constant 0 : index
    %c9_46 = arith.constant 9 : index
    %c1_47 = arith.constant 1 : index
    %c0_48 = arith.constant 0 : index
    %34 = vector.load %arg2[%c0_43, %c0_44, %c0_45, %c9_46, %c1_47, %c0_48] : memref<1x1x2x17x9x4xf32, #tpu.memory_space<vmem>>, vector<1x1x1x8x8x4xf32>
    %35 = vector.shape_cast %34 : vector<1x1x1x8x8x4xf32> to vector<8x8x4xf32>
    %36 = vector.shape_cast %35 : vector<8x8x4xf32> to vector<64x4xf32>
    %c5 = arith.constant 5 : index
    %c0_49 = arith.constant 0 : index
    %c0_50 = arith.constant 0 : index
    %37 = vector.load %arg3[%c5, %c0_49, %c0_50] : memref<9x4x4xf32, #tpu.memory_space<vmem>>, vector<1x4x4xf32>
    %38 = vector.shape_cast %37 : vector<1x4x4xf32> to vector<4x4xf32>
    %cst_51 = arith.constant dense<0.000000e+00> : vector<64x4xf32>
    %39 = tpu.matmul %36, %38, %cst_51 {dimension_numbers = #tpu.dot_dimension_numbers<[1], [0], [0], [1], [0, 0, 1, 1], [], []>} : vector<64x4xf32>, vector<4x4xf32>, vector<64x4xf32> -> vector<64x4xf32>
    %40 = arith.addf %33, %39 : vector<64x4xf32>
    %c0_52 = arith.constant 0 : index
    %c0_53 = arith.constant 0 : index
    %c0_54 = arith.constant 0 : index
    %c1_55 = arith.constant 1 : index
    %c0_56 = arith.constant 0 : index
    %c0_57 = arith.constant 0 : index
    %41 = vector.load %arg2[%c0_52, %c0_53, %c0_54, %c1_55, %c0_56, %c0_57] : memref<1x1x2x17x9x4xf32, #tpu.memory_space<vmem>>, vector<1x1x1x8x8x4xf32>
    %42 = vector.shape_cast %41 : vector<1x1x1x8x8x4xf32> to vector<8x8x4xf32>
    %43 = vector.shape_cast %42 : vector<8x8x4xf32> to vector<64x4xf32>
    %c6 = arith.constant 6 : index
    %c0_58 = arith.constant 0 : index
    %c0_59 = arith.constant 0 : index
    %44 = vector.load %arg3[%c6, %c0_58, %c0_59] : memref<9x4x4xf32, #tpu.memory_space<vmem>>, vector<1x4x4xf32>
    %45 = vector.shape_cast %44 : vector<1x4x4xf32> to vector<4x4xf32>
    %cst_60 = arith.constant dense<0.000000e+00> : vector<64x4xf32>
    %46 = tpu.matmul %43, %45, %cst_60 {dimension_numbers = #tpu.dot_dimension_numbers<[1], [0], [0], [1], [0, 0, 1, 1], [], []>} : vector<64x4xf32>, vector<4x4xf32>, vector<64x4xf32> -> vector<64x4xf32>
    %47 = arith.addf %40, %46 : vector<64x4xf32>
    %c0_61 = arith.constant 0 : index
    %c0_62 = arith.constant 0 : index
    %c1_63 = arith.constant 1 : index
    %c1_64 = arith.constant 1 : index
    %c0_65 = arith.constant 0 : index
    %c0_66 = arith.constant 0 : index
    %48 = vector.load %arg2[%c0_61, %c0_62, %c1_63, %c1_64, %c0_65, %c0_66] : memref<1x1x2x17x9x4xf32, #tpu.memory_space<vmem>>, vector<1x1x1x8x8x4xf32>
    %49 = vector.shape_cast %48 : vector<1x1x1x8x8x4xf32> to vector<8x8x4xf32>
    %50 = vector.shape_cast %49 : vector<8x8x4xf32> to vector<64x4xf32>
    %c7 = arith.constant 7 : index
    %c0_67 = arith.constant 0 : index
    %c0_68 = arith.constant 0 : index
    %51 = vector.load %arg3[%c7, %c0_67, %c0_68] : memref<9x4x4xf32, #tpu.memory_space<vmem>>, vector<1x4x4xf32>
    %52 = vector.shape_cast %51 : vector<1x4x4xf32> to vector<4x4xf32>
    %cst_69 = arith.constant dense<0.000000e+00> : vector<64x4xf32>
    %53 = tpu.matmul %50, %52, %cst_69 {dimension_numbers = #tpu.dot_dimension_numbers<[1], [0], [0], [1], [0, 0, 1, 1], [], []>} : vector<64x4xf32>, vector<4x4xf32>, vector<64x4xf32> -> vector<64x4xf32>
    %54 = arith.addf %47, %53 : vector<64x4xf32>
    %c0_70 = arith.constant 0 : index
    %c0_71 = arith.constant 0 : index
    %c0_72 = arith.constant 0 : index
    %c1_73 = arith.constant 1 : index
    %c1_74 = arith.constant 1 : index
    %c0_75 = arith.constant 0 : index
    %55 = vector.load %arg2[%c0_70, %c0_71, %c0_72, %c1_73, %c1_74, %c0_75] : memref<1x1x2x17x9x4xf32, #tpu.memory_space<vmem>>, vector<1x1x1x8x8x4xf32>
    %56 = vector.shape_cast %55 : vector<1x1x1x8x8x4xf32> to vector<8x8x4xf32>
    %57 = vector.shape_cast %56 : vector<8x8x4xf32> to vector<64x4xf32>
    %c8 = arith.constant 8 : index
    %c0_76 = arith.constant 0 : index
    %c0_77 = arith.constant 0 : index
    %58 = vector.load %arg3[%c8, %c0_76, %c0_77] : memref<9x4x4xf32, #tpu.memory_space<vmem>>, vector<1x4x4xf32>
    %59 = vector.shape_cast %58 : vector<1x4x4xf32> to vector<4x4xf32>
    %cst_78 = arith.constant dense<0.000000e+00> : vector<64x4xf32>
    %60 = tpu.matmul %57, %59, %cst_78 {dimension_numbers = #tpu.dot_dimension_numbers<[1], [0], [0], [1], [0, 0, 1, 1], [], []>} : vector<64x4xf32>, vector<4x4xf32>, vector<64x4xf32> -> vector<64x4xf32>
    %61 = arith.addf %54, %60 : vector<64x4xf32>
    %c0_79 = arith.constant 0 : index
    %c0_80 = arith.constant 0 : index
    %62 = vector.load %arg4[%c0_79, %c0_80] : memref<1x4xf32, #tpu.memory_space<vmem>>, vector<1x4xf32>
    %63 = vector.broadcast %62 : vector<1x4xf32> to vector<64x4xf32>
    %64 = arith.addf %61, %63 : vector<64x4xf32>
    %c0_81 = arith.constant 0 : index
    %c0_82 = arith.constant 0 : index
    %c0_83 = arith.constant 0 : index
    %65 = vector.load %arg5[%c0_81, %c0_82, %c0_83] : memref<1x64x4xf32, #tpu.memory_space<vmem>>, vector<1x64x4xf32>
    %66 = vector.shape_cast %65 : vector<1x64x4xf32> to vector<64x4xf32>
    %67 = vector.shape_cast %64 : vector<64x4xf32> to vector<1x64x4xf32>
    tpu.vector_store %arg5[%c0_81, %c0_82, %c0_83], %67 {strides = array<i32>} : memref<1x64x4xf32, #tpu.memory_space<vmem>>, vector<1x64x4xf32>,
    return
  }
  func.func @transform_0(%arg0: i32, %arg1: i32) -> (i32, i32, i32, i32, i32, i32) {
    %c0_i32 = arith.constant 0 : i32
    %c0_i32_0 = arith.constant 0 : i32
    %c0_i32_1 = arith.constant 0 : i32
    %c0_i32_2 = arith.constant 0 : i32
    %c0_i32_3 = arith.constant 0 : i32
    return %arg0, %arg1, %c0_i32, %c0_i32_0, %c0_i32_1, %c0_i32_2 : i32, i32, i32, i32, i32, i32
  }
  func.func @transform_1(%arg0: i32, %arg1: i32) -> (i32, i32, i32) {
    %c0_i32 = arith.constant 0 : i32
    %c0_i32_0 = arith.constant 0 : i32
    %c0_i32_1 = arith.constant 0 : i32
    %c0_i32_2 = arith.constant 0 : i32
    return %c0_i32, %c0_i32_0, %c0_i32_1 : i32, i32, i32
  }
  func.func @transform_2(%arg0: i32, %arg1: i32) -> (i32, i32) {
    %c0_i32 = arith.constant 0 : i32
    %c0_i32_0 = arith.constant 0 : i32
    %c0_i32_1 = arith.constant 0 : i32
    return %c0_i32, %c0_i32_0 : i32, i32
  }
  func.func @transform_3(%arg0: i32, %arg1: i32) -> (i32, i32, i32) {
    %c0_i32 = arith.constant 0 : i32
    %c0_i32_0 = arith.constant 0 : i32
    return %arg0, %arg1, %c0_i32 : i32, i32, i32
  }
}

module attributes {stable_mosaic.version = 11 : i64} {
  func.func @kernel(%arg0: i32, %arg1: i32, %arg2: memref<1x1x2x17x9x4xf32, #tpu.memory_space<vmem>>, %arg3: memref<9x4x4xf32, #tpu.memory_space<vmem>>, %arg4: memref<1x4xf32, #tpu.memory_space<vmem>>, %arg5: memref<1x64x4xf32, #tpu.memory_space<vmem>>) attributes {dimension_semantics = [#tpu.dimension_semantics<parallel>, #tpu.dimension_semantics<parallel>], iteration_bounds = array<i64: 2, 1>, scalar_prefetch = 0 : i64, scratch_operands = 0 : i64, tpu.core_type = #tpu.core_type<tc>, window_params = [{transform_indices = @transform_0, window_bounds = array<i64: 1, 1, 2, 17, 9, 4>}, {pipeline_mode = #tpu.pipeline_mode<synchronous>, transform_indices = @transform_1, window_bounds = array<i64: 9, 4, 4>}, {pipeline_mode = #tpu.pipeline_mode<synchronous>, transform_indices = @transform_2, window_bounds = array<i64: 1, 4>}, {transform_indices = @transform_3, window_bounds = array<i64: 1, 64, 4>}]} {
    %c0 = arith.constant 0 : index
    %c0_0 = arith.constant 0 : index
    %c0_1 = arith.constant 0 : index
    %c0_2 = arith.constant 0 : index
    %c0_3 = arith.constant 0 : index
    %c0_4 = arith.constant 0 : index
    %0 = vector.load %arg2[%c0, %c0_0, %c0_1, %c0_2, %c0_3, %c0_4] : memref<1x1x2x17x9x4xf32, #tpu.memory_space<vmem>>, vector<1x1x1x8x8x4xf32>
    %1 = vector.shape_cast %0 : vector<1x1x1x8x8x4xf32> to vector<8x8x4xf32>
    %2 = vector.shape_cast %1 : vector<8x8x4xf32> to vector<64x4xf32>
    %c0_5 = arith.constant 0 : index
    %c0_6 = arith.constant 0 : index
    %c0_7 = arith.constant 0 : index
    %3 = vector.load %arg3[%c0_5, %c0_6, %c0_7] : memref<9x4x4xf32, #tpu.memory_space<vmem>>, vector<1x4x4xf32>
    %4 = vector.shape_cast %3 : vector<1x4x4xf32> to vector<4x4xf32>
    %cst = arith.constant dense<0.000000e+00> : vector<64x4xf32>
    %5 = tpu.matmul %2, %4, %cst {dimension_numbers = #tpu.dot_dimension_numbers<[1], [0], [0], [1], [0, 0, 1, 1], [], []>} : vector<64x4xf32>, vector<4x4xf32>, vector<64x4xf32> -> vector<64x4xf32>
    %c0_8 = arith.constant 0 : index
    %c0_9 = arith.constant 0 : index
    %c1 = arith.constant 1 : index
    %c0_10 = arith.constant 0 : index
    %c0_11 = arith.constant 0 : index
    %c0_12 = arith.constant 0 : index
    %6 = vector.load %arg2[%c0_8, %c0_9, %c1, %c0_10, %c0_11, %c0_12] : memref<1x1x2x17x9x4xf32, #tpu.memory_space<vmem>>, vector<1x1x1x8x8x4xf32>
    %7 = vector.shape_cast %6 : vector<1x1x1x8x8x4xf32> to vector<8x8x4xf32>
    %8 = vector.shape_cast %7 : vector<8x8x4xf32> to vector<64x4xf32>
    %c1_13 = arith.constant 1 : index
    %c0_14 = arith.constant 0 : index
    %c0_15 = arith.constant 0 : index
    %9 = vector.load %arg3[%c1_13, %c0_14, %c0_15] : memref<9x4x4xf32, #tpu.memory_space<vmem>>, vector<1x4x4xf32>
    %10 = vector.shape_cast %9 : vector<1x4x4xf32> to vector<4x4xf32>
    %cst_16 = arith.constant dense<0.000000e+00> : vector<64x4xf32>
    %11 = tpu.matmul %8, %10, %cst_16 {dimension_numbers = #tpu.dot_dimension_numbers<[1], [0], [0], [1], [0, 0, 1, 1], [], []>} : vector<64x4xf32>, vector<4x4xf32>, vector<64x4xf32> -> vector<64x4xf32>
    %12 = arith.addf %5, %11 : vector<64x4xf32>
    %c0_17 = arith.constant 0 : index
    %c0_18 = arith.constant 0 : index
    %c0_19 = arith.constant 0 : index
    %c0_20 = arith.constant 0 : index
    %c1_21 = arith.constant 1 : index
    %c0_22 = arith.constant 0 : index
    %13 = vector.load %arg2[%c0_17, %c0_18, %c0_19, %c0_20, %c1_21, %c0_22] : memref<1x1x2x17x9x4xf32, #tpu.memory_space<vmem>>, vector<1x1x1x8x8x4xf32>
    %14 = vector.shape_cast %13 : vector<1x1x1x8x8x4xf32> to vector<8x8x4xf32>
    %15 = vector.shape_cast %14 : vector<8x8x4xf32> to vector<64x4xf32>
    %c2 = arith.constant 2 : index
    %c0_23 = arith.constant 0 : index
    %c0_24 = arith.constant 0 : index
    %16 = vector.load %arg3[%c2, %c0_23, %c0_24] : memref<9x4x4xf32, #tpu.memory_space<vmem>>, vector<1x4x4xf32>
    %17 = vector.shape_cast %16 : vector<1x4x4xf32> to vector<4x4xf32>
    %cst_25 = arith.constant dense<0.000000e+00> : vector<64x4xf32>
    %18 = tpu.matmul %15, %17, %cst_25 {dimension_numbers = #tpu.dot_dimension_numbers<[1], [0], [0], [1], [0, 0, 1, 1], [], []>} : vector<64x4xf32>, vector<4x4xf32>, vector<64x4xf32> -> vector<64x4xf32>
    %19 = arith.addf %12, %18 : vector<64x4xf32>
    %c0_26 = arith.constant 0 : index
    %c0_27 = arith.constant 0 : index
    %c0_28 = arith.constant 0 : index
    %c9 = arith.constant 9 : index
    %c0_29 = arith.constant 0 : index
    %c0_30 = arith.constant 0 : index
    %20 = vector.load %arg2[%c0_26, %c0_27, %c0_28, %c9, %c0_29, %c0_30] : memref<1x1x2x17x9x4xf32, #tpu.memory_space<vmem>>, vector<1x1x1x8x8x4xf32>
    %21 = vector.shape_cast %20 : vector<1x1x1x8x8x4xf32> to vector<8x8x4xf32>
    %22 = vector.shape_cast %21 : vector<8x8x4xf32> to vector<64x4xf32>
    %c3 = arith.constant 3 : index
    %c0_31 = arith.constant 0 : index
    %c0_32 = arith.constant 0 : index
    %23 = vector.load %arg3[%c3, %c0_31, %c0_32] : memref<9x4x4xf32, #tpu.memory_space<vmem>>, vector<1x4x4xf32>
    %24 = vector.shape_cast %23 : vector<1x4x4xf32> to vector<4x4xf32>
    %cst_33 = arith.constant dense<0.000000e+00> : vector<64x4xf32>
    %25 = tpu.matmul %22, %24, %cst_33 {dimension_numbers = #tpu.dot_dimension_numbers<[1], [0], [0], [1], [0, 0, 1, 1], [], []>} : vector<64x4xf32>, vector<4x4xf32>, vector<64x4xf32> -> vector<64x4xf32>
    %26 = arith.addf %19, %25 : vector<64x4xf32>
    %c0_34 = arith.constant 0 : index
    %c0_35 = arith.constant 0 : index
    %c1_36 = arith.constant 1 : index
    %c9_37 = arith.constant 9 : index
    %c0_38 = arith.constant 0 : index
    %c0_39 = arith.constant 0 : index
    %27 = vector.load %arg2[%c0_34, %c0_35, %c1_36, %c9_37, %c0_38, %c0_39] : memref<1x1x2x17x9x4xf32, #tpu.memory_space<vmem>>, vector<1x1x1x8x8x4xf32>
    %28 = vector.shape_cast %27 : vector<1x1x1x8x8x4xf32> to vector<8x8x4xf32>
    %29 = vector.shape_cast %28 : vector<8x8x4xf32> to vector<64x4xf32>
    %c4 = arith.constant 4 : index
    %c0_40 = arith.constant 0 : index
    %c0_41 = arith.constant 0 : index
    %30 = vector.load %arg3[%c4, %c0_40, %c0_41] : memref<9x4x4xf32, #tpu.memory_space<vmem>>, vector<1x4x4xf32>
    %31 = vector.shape_cast %30 : vector<1x4x4xf32> to vector<4x4xf32>
    %cst_42 = arith.constant dense<0.000000e+00> : vector<64x4xf32>
    %32 = tpu.matmul %29, %31, %cst_42 {dimension_numbers = #tpu.dot_dimension_numbers<[1], [0], [0], [1], [0, 0, 1, 1], [], []>} : vector<64x4xf32>, vector<4x4xf32>, vector<64x4xf32> -> vector<64x4xf32>
    %33 = arith.addf %26, %32 : vector<64x4xf32>
    %c0_43 = arith.constant 0 : index
    %c0_44 = arith.constant 0 : index
    %c0_45 = arith.constant 0 : index
    %c9_46 = arith.constant 9 : index
    %c1_47 = arith.constant 1 : index
    %c0_48 = arith.constant 0 : index
    %34 = vector.load %arg2[%c0_43, %c0_44, %c0_45, %c9_46, %c1_47, %c0_48] : memref<1x1x2x17x9x4xf32, #tpu.memory_space<vmem>>, vector<1x1x1x8x8x4xf32>
    %35 = vector.shape_cast %34 : vector<1x1x1x8x8x4xf32> to vector<8x8x4xf32>
    %36 = vector.shape_cast %35 : vector<8x8x4xf32> to vector<64x4xf32>
    %c5 = arith.constant 5 : index
    %c0_49 = arith.constant 0 : index
    %c0_50 = arith.constant 0 : index
    %37 = vector.load %arg3[%c5, %c0_49, %c0_50] : memref<9x4x4xf32, #tpu.memory_space<vmem>>, vector<1x4x4xf32>
    %38 = vector.shape_cast %37 : vector<1x4x4xf32> to vector<4x4xf32>
    %cst_51 = arith.constant dense<0.000000e+00> : vector<64x4xf32>
    %39 = tpu.matmul %36, %38, %cst_51 {dimension_numbers = #tpu.dot_dimension_numbers<[1], [0], [0], [1], [0, 0, 1, 1], [], []>} : vector<64x4xf32>, vector<4x4xf32>, vector<64x4xf32> -> vector<64x4xf32>
    %40 = arith.addf %33, %39 : vector<64x4xf32>
    %c0_52 = arith.constant 0 : index
    %c0_53 = arith.constant 0 : index
    %c0_54 = arith.constant 0 : index
    %c1_55 = arith.constant 1 : index
    %c0_56 = arith.constant 0 : index
    %c0_57 = arith.constant 0 : index
    %41 = vector.load %arg2[%c0_52, %c0_53, %c0_54, %c1_55, %c0_56, %c0_57] : memref<1x1x2x17x9x4xf32, #tpu.memory_space<vmem>>, vector<1x1x1x8x8x4xf32>
    %42 = vector.shape_cast %41 : vector<1x1x1x8x8x4xf32> to vector<8x8x4xf32>
    %43 = vector.shape_cast %42 : vector<8x8x4xf32> to vector<64x4xf32>
    %c6 = arith.constant 6 : index
    %c0_58 = arith.constant 0 : index
    %c0_59 = arith.constant 0 : index
    %44 = vector.load %arg3[%c6, %c0_58, %c0_59] : memref<9x4x4xf32, #tpu.memory_space<vmem>>, vector<1x4x4xf32>
    %45 = vector.shape_cast %44 : vector<1x4x4xf32> to vector<4x4xf32>
    %cst_60 = arith.constant dense<0.000000e+00> : vector<64x4xf32>
    %46 = tpu.matmul %43, %45, %cst_60 {dimension_numbers = #tpu.dot_dimension_numbers<[1], [0], [0], [1], [0, 0, 1, 1], [], []>} : vector<64x4xf32>, vector<4x4xf32>, vector<64x4xf32> -> vector<64x4xf32>
    %47 = arith.addf %40, %46 : vector<64x4xf32>
    %c0_61 = arith.constant 0 : index
    %c0_62 = arith.constant 0 : index
    %c1_63 = arith.constant 1 : index
    %c1_64 = arith.constant 1 : index
    %c0_65 = arith.constant 0 : index
    %c0_66 = arith.constant 0 : index
    %48 = vector.load %arg2[%c0_61, %c0_62, %c1_63, %c1_64, %c0_65, %c0_66] : memref<1x1x2x17x9x4xf32, #tpu.memory_space<vmem>>, vector<1x1x1x8x8x4xf32>
    %49 = vector.shape_cast %48 : vector<1x1x1x8x8x4xf32> to vector<8x8x4xf32>
    %50 = vector.shape_cast %49 : vector<8x8x4xf32> to vector<64x4xf32>
    %c7 = arith.constant 7 : index
    %c0_67 = arith.constant 0 : index
    %c0_68 = arith.constant 0 : index
    %51 = vector.load %arg3[%c7, %c0_67, %c0_68] : memref<9x4x4xf32, #tpu.memory_space<vmem>>, vector<1x4x4xf32>
    %52 = vector.shape_cast %51 : vector<1x4x4xf32> to vector<4x4xf32>
    %cst_69 = arith.constant dense<0.000000e+00> : vector<64x4xf32>
    %53 = tpu.matmul %50, %52, %cst_69 {dimension_numbers = #tpu.dot_dimension_numbers<[1], [0], [0], [1], [0, 0, 1, 1], [], []>} : vector<64x4xf32>, vector<4x4xf32>, vector<64x4xf32> -> vector<64x4xf32>
    %54 = arith.addf %47, %53 : vector<64x4xf32>
    %c0_70 = arith.constant 0 : index
    %c0_71 = arith.constant 0 : index
    %c0_72 = arith.constant 0 : index
    %c1_73 = arith.constant 1 : index
    %c1_74 = arith.constant 1 : index
    %c0_75 = arith.constant 0 : index
    %55 = vector.load %arg2[%c0_70, %c0_71, %c0_72, %c1_73, %c1_74, %c0_75] : memref<1x1x2x17x9x4xf32, #tpu.memory_space<vmem>>, vector<1x1x1x8x8x4xf32>
    %56 = vector.shape_cast %55 : vector<1x1x1x8x8x4xf32> to vector<8x8x4xf32>
    %57 = vector.shape_cast %56 : vector<8x8x4xf32> to vector<64x4xf32>
    %c8 = arith.constant 8 : index
    %c0_76 = arith.constant 0 : index
    %c0_77 = arith.constant 0 : index
    %58 = vector.load %arg3[%c8, %c0_76, %c0_77] : memref<9x4x4xf32, #tpu.memory_space<vmem>>, vector<1x4x4xf32>
    %59 = vector.shape_cast %58 : vector<1x4x4xf32> to vector<4x4xf32>
    %cst_78 = arith.constant dense<0.000000e+00> : vector<64x4xf32>
    %60 = tpu.matmul %57, %59, %cst_78 {dimension_numbers = #tpu.dot_dimension_numbers<[1], [0], [0], [1], [0, 0, 1, 1], [], []>} : vector<64x4xf32>, vector<4x4xf32>, vector<64x4xf32> -> vector<64x4xf32>
    %61 = arith.addf %54, %60 : vector<64x4xf32>
    %c0_79 = arith.constant 0 : index
    %c0_80 = arith.constant 0 : index
    %62 = vector.load %arg4[%c0_79, %c0_80] : memref<1x4xf32, #tpu.memory_space<vmem>>, vector<1x4xf32>
    %63 = vector.broadcast %62 : vector<1x4xf32> to vector<64x4xf32>
    %64 = arith.addf %61, %63 : vector<64x4xf32>
    %c0_81 = arith.constant 0 : index
    %c0_82 = arith.constant 0 : index
    %c0_83 = arith.constant 0 : index
    %65 = vector.load %arg5[%c0_81, %c0_82, %c0_83] : memref<1x64x4xf32, #tpu.memory_space<vmem>>, vector<1x64x4xf32>
    %66 = vector.shape_cast %65 : vector<1x64x4xf32> to vector<64x4xf32>
    %67 = vector.shape_cast %64 : vector<64x4xf32> to vector<1x64x4xf32>
    tpu.vector_store %arg5[%c0_81, %c0_82, %c0_83], %67 {strides = array<i32>} : memref<1x64x4xf32, #tpu.memory_space<vmem>>, vector<1x64x4xf32>,
    return
  }
  func.func @transform_0(%arg0: i32, %arg1: i32) -> (i32, i32, i32, i32, i32, i32) {
    %c0_i32 = arith.constant 0 : i32
    %c0_i32_0 = arith.constant 0 : i32
    %c0_i32_1 = arith.constant 0 : i32
    %c0_i32_2 = arith.constant 0 : i32
    %c0_i32_3 = arith.constant 0 : i32
    return %arg0, %arg1, %c0_i32, %c0_i32_0, %c0_i32_1, %c0_i32_2 : i32, i32, i32, i32, i32, i32
  }
  func.func @transform_1(%arg0: i32, %arg1: i32) -> (i32, i32, i32) {
    %c0_i32 = arith.constant 0 : i32
    %c0_i32_0 = arith.constant 0 : i32
    %c0_i32_1 = arith.constant 0 : i32
    %c0_i32_2 = arith.constant 0 : i32
    return %c0_i32, %c0_i32_0, %c0_i32_1 : i32, i32, i32
  }
  func.func @transform_2(%arg0: i32, %arg1: i32) -> (i32, i32) {
    %c0_i32 = arith.constant 0 : i32
    %c0_i32_0 = arith.constant 0 : i32
    %c0_i32_1 = arith.constant 0 : i32
    return %c0_i32, %c0_i32_0 : i32, i32
  }
  func.func @transform_3(%arg0: i32, %arg1: i32) -> (i32, i32, i32) {
    %c0_i32 = arith.constant 0 : i32
    %c0_i32_0 = arith.constant 0 : i32
    return %arg0, %arg1, %c0_i32 : i32, i32, i32
  }
}

</mosaic_0001>

<llo_original>
// kernel: _downsample_impl.1
$region0: #{_downsample_impl.1}
  #allocation0 [shape = 'u32[]', space=smem, size = 0x4, offset = 0x4, fixed_abs, tag = 'smem constant byte address 0x4 - core index']
  #allocation1 [shape = 'u32[144,128]{1,0:T(1,128)}', space=vmem, size = 0x12000, scoped, tag = 'internal scratch']
  %s0 = inlined_call_operand.vmem [shape: f32[2,1,2,17,9,4], index: 0, kind: input, shape index: {}]
  %s1 = inlined_call_operand.vmem [shape: f32[9,4,4], index: 1, kind: input, shape index: {}]
  %s2 = inlined_call_operand.vmem [shape: f32[1,4], index: 2, kind: input, shape index: {}]
  %s3 = inlined_call_operand.vmem [shape: f32[2,64,4], index: 3, kind: output, shape index: {}]
  %s4 = sld [smem:[#allocation0]]
  $region45: #{_downsample_impl.1} parent=0
    _
  %s6 = ssub.s32 1, %s4
  %s7 = scalar_select 0, %s6, %s4
  loop: start=0, step=1, limit=4
  $region2: #{_downsample_impl.1} parent=0 // loop_pre_header
    _
  $region3: #{_downsample_impl.1} parent=0 // loop_header
    %s9 = sphi 0, %s13
    %p10 = scmp.ge.s32.totalorder %s9, 4
    %s16 = sphi 0, %s28
    %s17 = sphi 0, %s24
    %s18 = sphi 0, %s16
    %s19 = sphi 0, %s17
    %s20 = sphi 0, %s18
    %s21 = sphi 0, %s19
    %s33 = sphi 0, %s35
    %s36 = sphi 0, %s33
    %s37 = sphi 0, %s36
    %s53 = sphi 0, %s37
    %s57 = sphi 0, %s57
    %s59 = sphi 0, %s57
    %s60 = sphi 0, %s59
    %s74 = sphi 0, %s60
    %s78 = sphi 0, %s78
    %s80 = sphi 0, %s78
    %s81 = sphi 0, %s80
    %s95 = sphi 0, %s81
    %s103 = sphi 0, %s105
    %s106 = sphi 0, %s103
    %s107 = sphi 0, %s106
    %s123 = sphi 0, %s107
  $region4: #{_downsample_impl.1} parent=0 // loop_header_branch
    %12 = sbr.rel (%p10) target = $region8
  $region5: #{_downsample_impl.1} parent=0 // loop_body
    %s14 = ssub.s32 %s9, 1
    %s15 = ssub.s32 %s9, 2
    %s22 = sadd.s32 1, %s17
    %p23 = scmp.ge.s32.totalorder %s22, 1
    %s24 = scalar_select %p23, 0, %s22
    %s25 = sadd.s32 1, %s16
    %s26 = scalar_select %p23, %s25, %s16
    %p27 = scmp.ge.s32.totalorder %s26, 2
    %s28 = scalar_select %p27, 0, %s26
    %s29 = ssub.s32 %s16, %s28
    %s30 = ssub.s32 %s17, %s24
    %s31 = sor.u32 %s29, %s30
    %p32 = scmp.eq.s32.totalorder %s31, 0
    %s34 = sadd.s32 %s33, 1
    %s35 = scalar_select %p32, %s33, %s34
    %p38 = pneg %p32
    %p39 = scmp.eq.s32.totalorder %s9, 1
    %p40 = por %p38, %p39
    %p41 = scmp.ne.s32.totalorder %s33, %s36
    %p42 = scmp.eq.s32.totalorder %s9, 0
    %p43 = por %p41, %p42
    %p44 = scmp.ne.s32.totalorder %s33, %s36
    %p45 = scmp.eq.s32.totalorder %s14, 1
    %p46 = por %p44, %p45
    %p47 = scmp.ne.s32.totalorder %s36, %s37
    %p48 = scmp.eq.s32.totalorder %s14, 0
    %p49 = por %p47, %p48
    %p50 = scmp.ne.s32.totalorder %s36, %s37
    %p51 = scmp.eq.s32.totalorder %s15, 1
    %p52 = por %p50, %p51
    %p54 = scmp.ne.s32.totalorder %s37, %s53
    %p55 = scmp.eq.s32.totalorder %s15, 0
    %p56 = por %p54, %p55
    %s58 = sadd.s32 %s57, 1
    %p61 = scmp.eq.s32.totalorder %s9, 1
    %p62 = scmp.ne.s32.totalorder %s57, %s59
    %p63 = scmp.eq.s32.totalorder %s9, 0
    %p64 = por %p62, %p63
    %p65 = scmp.ne.s32.totalorder %s57, %s59
    %p66 = scmp.eq.s32.totalorder %s14, 1
    %p67 = por %p65, %p66
    %p68 = scmp.ne.s32.totalorder %s59, %s60
    %p69 = scmp.eq.s32.totalorder %s14, 0
    %p70 = por %p68, %p69
    %p71 = scmp.ne.s32.totalorder %s59, %s60
    %p72 = scmp.eq.s32.totalorder %s15, 1
    %p73 = por %p71, %p72
    %p75 = scmp.ne.s32.totalorder %s60, %s74
    %p76 = scmp.eq.s32.totalorder %s15, 0
    %p77 = por %p75, %p76
    %s79 = sadd.s32 %s78, 1
    %p82 = scmp.eq.s32.totalorder %s9, 1
    %p83 = scmp.ne.s32.totalorder %s78, %s80
    %p84 = scmp.eq.s32.totalorder %s9, 0
    %p85 = por %p83, %p84
    %p86 = scmp.ne.s32.totalorder %s78, %s80
    %p87 = scmp.eq.s32.totalorder %s14, 1
    %p88 = por %p86, %p87
    %p89 = scmp.ne.s32.totalorder %s80, %s81
    %p90 = scmp.eq.s32.totalorder %s14, 0
    %p91 = por %p89, %p90
    %p92 = scmp.ne.s32.totalorder %s80, %s81
    %p93 = scmp.eq.s32.totalorder %s15, 1
    %p94 = por %p92, %p93
    %p96 = scmp.ne.s32.totalorder %s81, %s95
    %p97 = scmp.eq.s32.totalorder %s15, 0
    %p98 = por %p96, %p97
    %s99 = ssub.s32 %s16, %s28
    %s100 = ssub.s32 %s17, %s24
    %s101 = sor.u32 %s99, %s100
    %p102 = scmp.eq.s32.totalorder %s101, 0
    %s104 = sadd.s32 %s103, 1
    %s105 = scalar_select %p102, %s103, %s104
    %p108 = pneg %p102
    %p109 = scmp.eq.s32.totalorder %s9, 1
    %p110 = por %p108, %p109
    %p111 = scmp.ne.s32.totalorder %s103, %s106
    %p112 = scmp.eq.s32.totalorder %s9, 0
    %p113 = por %p111, %p112
    %p114 = scmp.ne.s32.totalorder %s103, %s106
    %p115 = scmp.eq.s32.totalorder %s14, 1
    %p116 = por %p114, %p115
    %p117 = scmp.ne.s32.totalorder %s106, %s107
    %p118 = scmp.eq.s32.totalorder %s14, 0
    %p119 = por %p117, %p118
    %p120 = scmp.ne.s32.totalorder %s106, %s107
    %p121 = scmp.eq.s32.totalorder %s15, 1
    %p122 = por %p120, %p121
    %p124 = scmp.ne.s32.totalorder %s107, %s123
    %p125 = scmp.eq.s32.totalorder %s15, 0
    %p126 = por %p124, %p125
    %p127 = scmp.le.s32.totalorder 1, %s9
    %p128 = scmp.lt.s32.totalorder %s9, 3
    %p129 = pnand %p127, %p128
    %p130 = pneg %p129
    // Predicated region
    $region9: #{_downsample_impl.1} parent=5 // pred_check
      _
    $region10: #{_downsample_impl.1} parent=5 // pred_check_branch
      %132 = sbr.rel (%p129) target = $region12
    $region11: #{_downsample_impl.1} parent=5 // pred_region
      %s133 = ssub.s32 %s9, 1
      // Predicated region
      $region13: #{_downsample_impl.1} parent=11 // pred_check
        %p134 = pneg %p70
      $region14: #{_downsample_impl.1} parent=11 // pred_check_branch
        %136 = sbr.rel (%p134) target = $region16
      $region15: #{_downsample_impl.1} parent=11 // pred_region
        _
      $region16: #{_downsample_impl.1} parent=11 // pred_fallthru
        _
      // Predicated region
      $region17: #{_downsample_impl.1} parent=11 // pred_check
        %p137 = pneg %p91
      $region18: #{_downsample_impl.1} parent=11 // pred_check_branch
        %139 = sbr.rel (%p137) target = $region20
      $region19: #{_downsample_impl.1} parent=11 // pred_region
        _
      $region20: #{_downsample_impl.1} parent=11 // pred_fallthru
        _
    $region12: #{_downsample_impl.1} parent=5 // pred_fallthru
      _
    %p140 = scmp.lt.s32.totalorder %s9, 2
    // Predicated region
    $region21: #{_downsample_impl.1} parent=5 // pred_check
      %p141 = pneg %p140
    $region22: #{_downsample_impl.1} parent=5 // pred_check_branch
      %143 = sbr.rel (%p141) target = $region24
    $region23: #{_downsample_impl.1} parent=5 // pred_region
      // Predicated region
      $region25: #{_downsample_impl.1} parent=23 // pred_check
        %p144 = pneg %p43
      $region26: #{_downsample_impl.1} parent=23 // pred_check_branch
        %146 = sbr.rel (%p144) target = $region28
      $region27: #{_downsample_impl.1} parent=23 // pred_region
        %p147 = scmp.lt.s32.totalorder %s16, 1
        %s148 = scalar_select %p147, %s16, 1
        %p149 = scmp.lt.s32.totalorder %s17, 0
        %s150 = scalar_select %p149, %s17, 0
        %s151 = smul.addr %s150, 68
        %s152 = smul.addr %s148, 68
        %s153 = sadd.s32 %s151, %s152
        %s154 = smul.addr %s153, 8
        %s155 = scalar_lea.vmem %s0, %s154
      $region28: #{_downsample_impl.1} parent=23 // pred_fallthru
        _
    $region24: #{_downsample_impl.1} parent=5 // pred_fallthru
      _
    %p156 = scmp.le.s32.totalorder 1, %s9
    %p157 = scmp.lt.s32.totalorder %s9, 3
    %p158 = pnand %p156, %p157
    %p159 = pneg %p158
    // Predicated region
    $region29: #{_downsample_impl.1} parent=5 // pred_check
      _
    $region30: #{_downsample_impl.1} parent=5 // pred_check_branch
      %161 = sbr.rel (%p158) target = $region32
    $region31: #{_downsample_impl.1} parent=5 // pred_region
      %s162 = ssub.s32 %s9, 1
      %p163 = scmp.lt.s32.totalorder %s18, 1
      %s164 = scalar_select %p163, %s18, 1
      %p165 = scmp.lt.s32.totalorder %s19, 0
      %s166 = scalar_select %p165, %s19, 0
      %s167 = smul.addr %s166, 68
      %s168 = smul.addr %s164, 68
      %s169 = sadd.s32 %s167, %s168
      %s170 = smul.addr %s169, 8
      %s171 = scalar_lea.vmem %s0, %s170
      %p172 = pneg %p49
      %p173 = pneg %p46
      %p174 = pneg %p70
      %p175 = pneg %p67
      %p176 = pneg %p91
      %p177 = pneg %p88
      %p178 = pneg %p119
      %p179 = pneg %p116
      %s180 = smul.u32 8, %s19
      %p181 = scmp.lt.s32.totalorder %s18, 1
      %s182 = scalar_select %p181, %s18, 1
      %p183 = scmp.lt.s32.totalorder %s180, 7
      %s184 = scalar_select %p183, %s180, 7
      %s185 = smul.addr %s182, 8
      %s186 = sadd.s32 %s184, %s185
      %s187 = smul.addr %s186, 8
      %s188 = scalar_lea.vmem %s3, %s187
      %p189 = scmp.lt.s32.totalorder %s18, 1
      %s190 = scalar_select %p189, %s18, 1
      %p191 = scmp.lt.s32.totalorder %s19, 0
      %s192 = scalar_select %p191, %s19, 0
      %s193 = smul.addr %s192, 68
      %s194 = smul.addr %s190, 68
      %s195 = sadd.s32 %s193, %s194
      %s196 = smul.addr %s195, 8
      %s197 = scalar_lea.vmem %s0, %s196
      %s198 = smul.u32 8, %s19
      %p199 = scmp.lt.s32.totalorder %s18, 1
      %s200 = scalar_select %p199, %s18, 1
      %p201 = scmp.lt.s32.totalorder %s198, 7
      %s202 = scalar_select %p201, %s198, 7
      %s203 = smul.addr %s200, 8
      %s204 = sadd.s32 %s202, %s203
      %s205 = smul.addr %s204, 8
      %s206 = scalar_lea.vmem %s3, %s205
      %s207 = smul.u32 8, %s19
      %v208 = vld [vmem:[%s197] sm:$0xff]
      %v209 = vld [vmem:[%s197 + $0x10] sm:$0xff]
      %v210 = vld [vmem:[%s197 + $0x20] sm:$0xff]
      %v211 = vld [vmem:[%s197 + $0x30] sm:$0xff]
      %v212 = vld [vmem:[%s197 + $0x40] sm:$0xff]
      %v213 = vld [vmem:[%s197 + $0x50] sm:$0xff]
      %v214 = vld [vmem:[%s197 + $0x60] sm:$0xff]
      %v215 = vld [vmem:[%s197 + $0x70] sm:$0xff]
      %v216 = vld [vmem:[%s1] sm:$0xf]
      %s217 = scalar_lea.vmem %s197, 272
      %v218 = vld [vmem:[%s217] sm:$0xff]
      %v219 = vld [vmem:[%s217 + $0x10] sm:$0xff]
      %v220 = vld [vmem:[%s217 + $0x20] sm:$0xff]
      %v221 = vld [vmem:[%s217 + $0x30] sm:$0xff]
      %v222 = vld [vmem:[%s217 + $0x40] sm:$0xff]
      %v223 = vld [vmem:[%s217 + $0x50] sm:$0xff]
      %v224 = vld [vmem:[%s217 + $0x60] sm:$0xff]
      %v225 = vld [vmem:[%s217 + $0x70] sm:$0xff]
      %s226 = scalar_lea.vmem %s1, 4
      %v227 = vld [vmem:[%s226] sm:$0xf]
      %vm228 = vcmask 31744
      %v230 = vsel %vm228, %v218, 0
      %v233 = vsel %vm228, %v219, 0
      %v236 = vsel %vm228, %v220, 0
      %v239 = vsel %vm228, %v221, 0
      %v242 = vsel %vm228, %v222, 0
      %v245 = vsel %vm228, %v223, 0
      %v248 = vsel %vm228, %v224, 0
      %v251 = vsel %vm228, %v225, 0
      %vm253 = vcmask 1043456
      %v255 = vsel %vm253, %v227, 0
      %257 = vmatprep.subr.mxu0 0.0
      %258 = vmatpush1.msra.mxu0 %v255
      %259 = vmatprep.subr.mxu0 0.0
      %260 = vmatpush1.msra.mxu0 0.0
      %261 = vmatprep.subr.mxu0 0.0
      %262 = vmatpush1.msra.mxu0 0.0
      %263 = vmatprep.subr.mxu0 0.0
      %264 = vmatpush1.msra.mxu0 0.0
      %265 = vmatprep.subr.mxu0 0.0
      %266 = vmatpush1.msra.mxu0 0.0
      %267 = vmatprep.subr.mxu0 0.0
      %268 = vmatpush1.msra.mxu0 0.0
      %269 = vmatprep.subr.mxu0 0.0
      %270 = vmatpush1.msra.mxu0 0.0
      %271 = vmatprep.subr.mxu0 0.0
      %272 = vmatpush1.msra.mxu0 0.0
      %273 = vmatprep.subr.mxu0 0.0
      %274 = vmatpush1.msra.mxu0 0.0
      %275 = vmatprep.subr.mxu0 0.0
      %276 = vmatpush1.msra.mxu0 0.0
      %277 = vmatprep.subr.mxu0 0.0
      %278 = vmatpush1.msra.mxu0 0.0
      %279 = vmatprep.subr.mxu0 0.0
      %280 = vmatpush1.msra.mxu0 0.0
      %281 = vmatprep.subr.mxu0 0.0
      %282 = vmatpush1.msra.mxu0 0.0
      %283 = vmatprep.subr.mxu0 0.0
      %284 = vmatpush1.msra.mxu0 0.0
      %285 = vmatprep.subr.mxu0 0.0
      %286 = vmatpush1.msra.mxu0 0.0
      %287 = vmatprep.subr.mxu0 0.0
      %288 = vmatpush1.msra.mxu0 0.0
      %289 = vmatprep.subr.mxu0 0.0
      %290 = vmatpush1.msra.mxu0 0.0
      %291 = vmatprep.subr.mxu0 0.0
      %292 = vmatpush1.msra.mxu0 0.0
      %293 = vmatprep.subr.mxu0 0.0
      %294 = vmatpush1.msra.mxu0 0.0
      %295 = vmatprep.subr.mxu0 0.0
      %296 = vmatpush1.msra.mxu0 0.0
      %297 = vmatprep.subr.mxu0 0.0
      %298 = vmatpush1.msra.mxu0 0.0
      %299 = vmatprep.subr.mxu0 0.0
      %300 = vmatpush1.msra.mxu0 0.0
      %301 = vmatprep.subr.mxu0 0.0
      %302 = vmatpush1.msra.mxu0 0.0
      %303 = vmatprep.subr.mxu0 0.0
      %304 = vmatpush1.msra.mxu0 0.0
      %305 = vmatprep.subr.mxu0 0.0
      %306 = vmatpush1.msra.mxu0 0.0
      %307 = vmatprep.subr.mxu0 0.0
      %308 = vmatpush1.msra.mxu0 0.0
      %309 = vmatprep.subr.mxu0 0.0
      %310 = vmatpush1.msra.mxu0 0.0
      %311 = vmatprep.subr.mxu0 0.0
      %312 = vmatpush1.msra.mxu0 0.0
      %313 = vmatprep.subr.mxu0 0.0
      %314 = vmatpush1.msra.mxu0 0.0
      %315 = vmatprep.subr.mxu0 0.0
      %316 = vmatpush1.msra.mxu0 0.0
      %317 = vmatprep.subr.mxu0 0.0
      %318 = vmatpush1.msra.mxu0 0.0
      %319 = vmatprep.subr.mxu0 0.0
      %320 = vmatpush1.msra.mxu0 0.0
      %321 = vmatprep.mubr.f32.mxu0 0.0
      %322 = vmatmul.mubr.f32.gmra.mrb[0].mxu0 %v230
      %v323 = vpop.f32.mrb[0].mxu0
      %v324 = vadd.f32 0.0, %v323
      %v325 = vpop.f32.mrb[0].mxu0
      %326 = vmatprep.mubr.f32.mxu0 0.0
      %327 = vmatmul.mubr.f32.gmra.mrb[0].mxu0 %v233
      %v328 = vpop.f32.mrb[0].mxu0
      %v329 = vadd.f32 0.0, %v328
      %v330 = vpop.f32.mrb[0].mxu0
      %331 = vmatprep.mubr.f32.mxu0 0.0
      %332 = vmatmul.mubr.f32.gmra.mrb[0].mxu0 %v236
      %v333 = vpop.f32.mrb[0].mxu0
      %v334 = vadd.f32 0.0, %v333
      %v335 = vpop.f32.mrb[0].mxu0
      %336 = vmatprep.mubr.f32.mxu0 0.0
      %337 = vmatmul.mubr.f32.gmra.mrb[0].mxu0 %v239
      %v338 = vpop.f32.mrb[0].mxu0
      %v339 = vadd.f32 0.0, %v338
      %v340 = vpop.f32.mrb[0].mxu0
      %341 = vmatprep.mubr.f32.mxu0 0.0
      %342 = vmatmul.mubr.f32.gmra.mrb[0].mxu0 %v242
      %v343 = vpop.f32.mrb[0].mxu0
      %v344 = vadd.f32 0.0, %v343
      %v345 = vpop.f32.mrb[0].mxu0
      %346 = vmatprep.mubr.f32.mxu0 0.0
      %347 = vmatmul.mubr.f32.gmra.mrb[0].mxu0 %v245
      %v348 = vpop.f32.mrb[0].mxu0
      %v349 = vadd.f32 0.0, %v348
      %v350 = vpop.f32.mrb[0].mxu0
      %351 = vmatprep.mubr.f32.mxu0 0.0
      %352 = vmatmul.mubr.f32.gmra.mrb[0].mxu0 %v248
      %v353 = vpop.f32.mrb[0].mxu0
      %v354 = vadd.f32 0.0, %v353
      %v355 = vpop.f32.mrb[0].mxu0
      %356 = vmatprep.mubr.f32.mxu0 0.0
      %357 = vmatmul.mubr.f32.gmra.mrb[0].mxu0 %v251
      %v358 = vpop.f32.mrb[0].mxu0
      %v359 = vadd.f32 0.0, %v358
      %v360 = vpop.f32.mrb[0].mxu0
      %361 = vdwg.mxu0
      %v363 = vsel %vm228, %v208, 0
      %v366 = vsel %vm228, %v209, 0
      %v369 = vsel %vm228, %v210, 0
      %v372 = vsel %vm228, %v211, 0
      %v375 = vsel %vm228, %v212, 0
      %v378 = vsel %vm228, %v213, 0
      %v381 = vsel %vm228, %v214, 0
      %v384 = vsel %vm228, %v215, 0
      %v387 = vsel %vm253, %v216, 0
      %389 = vmatprep.subr.mxu0 0.0
      %390 = vmatpush1.msra.mxu0 %v387
      %391 = vmatprep.subr.mxu0 0.0
      %392 = vmatpush1.msra.mxu0 0.0
      %393 = vmatprep.subr.mxu0 0.0
      %394 = vmatpush1.msra.mxu0 0.0
      %395 = vmatprep.subr.mxu0 0.0
      %396 = vmatpush1.msra.mxu0 0.0
      %397 = vmatprep.subr.mxu0 0.0
      %398 = vmatpush1.msra.mxu0 0.0
      %399 = vmatprep.subr.mxu0 0.0
      %400 = vmatpush1.msra.mxu0 0.0
      %401 = vmatprep.subr.mxu0 0.0
      %402 = vmatpush1.msra.mxu0 0.0
      %403 = vmatprep.subr.mxu0 0.0
      %404 = vmatpush1.msra.mxu0 0.0
      %405 = vmatprep.subr.mxu0 0.0
      %406 = vmatpush1.msra.mxu0 0.0
      %407 = vmatprep.subr.mxu0 0.0
      %408 = vmatpush1.msra.mxu0 0.0
      %409 = vmatprep.subr.mxu0 0.0
      %410 = vmatpush1.msra.mxu0 0.0
      %411 = vmatprep.subr.mxu0 0.0
      %412 = vmatpush1.msra.mxu0 0.0
      %413 = vmatprep.subr.mxu0 0.0
      %414 = vmatpush1.msra.mxu0 0.0
      %415 = vmatprep.subr.mxu0 0.0
      %416 = vmatpush1.msra.mxu0 0.0
      %417 = vmatprep.subr.mxu0 0.0
      %418 = vmatpush1.msra.mxu0 0.0
      %419 = vmatprep.subr.mxu0 0.0
      %420 = vmatpush1.msra.mxu0 0.0
      %421 = vmatprep.subr.mxu0 0.0
      %422 = vmatpush1.msra.mxu0 0.0
      %423 = vmatprep.subr.mxu0 0.0
      %424 = vmatpush1.msra.mxu0 0.0
      %425 = vmatprep.subr.mxu0 0.0
      %426 = vmatpush1.msra.mxu0 0.0
      %427 = vmatprep.subr.mxu0 0.0
      %428 = vmatpush1.msra.mxu0 0.0
      %429 = vmatprep.subr.mxu0 0.0
      %430 = vmatpush1.msra.mxu0 0.0
      %431 = vmatprep.subr.mxu0 0.0
      %432 = vmatpush1.msra.mxu0 0.0
      %433 = vmatprep.subr.mxu0 0.0
      %434 = vmatpush1.msra.mxu0 0.0
      %435 = vmatprep.subr.mxu0 0.0
      %436 = vmatpush1.msra.mxu0 0.0
      %437 = vmatprep.subr.mxu0 0.0
      %438 = vmatpush1.msra.mxu0 0.0
      %439 = vmatprep.subr.mxu0 0.0
      %440 = vmatpush1.msra.mxu0 0.0
      %441 = vmatprep.subr.mxu0 0.0
      %442 = vmatpush1.msra.mxu0 0.0
      %443 = vmatprep.subr.mxu0 0.0
      %444 = vmatpush1.msra.mxu0 0.0
      %445 = vmatprep.subr.mxu0 0.0
      %446 = vmatpush1.msra.mxu0 0.0
      %447 = vmatprep.subr.mxu0 0.0
      %448 = vmatpush1.msra.mxu0 0.0
      %449 = vmatprep.subr.mxu0 0.0
      %450 = vmatpush1.msra.mxu0 0.0
      %451 = vmatprep.subr.mxu0 0.0
      %452 = vmatpush1.msra.mxu0 0.0
      %453 = vmatprep.mubr.f32.mxu0 0.0
      %454 = vmatmul.mubr.f32.gmra.mrb[0].mxu0 %v363
      %v455 = vpop.f32.mrb[0].mxu0
      %v456 = vadd.f32 %v324, %v455
      %v457 = vpop.f32.mrb[0].mxu0
      %458 = vmatprep.mubr.f32.mxu0 0.0
      %459 = vmatmul.mubr.f32.gmra.mrb[0].mxu0 %v366
      %v460 = vpop.f32.mrb[0].mxu0
      %v461 = vadd.f32 %v329, %v460
      %v462 = vpop.f32.mrb[0].mxu0
      %463 = vmatprep.mubr.f32.mxu0 0.0
      %464 = vmatmul.mubr.f32.gmra.mrb[0].mxu0 %v369
      %v465 = vpop.f32.mrb[0].mxu0
      %v466 = vadd.f32 %v334, %v465
      %v467 = vpop.f32.mrb[0].mxu0
      %468 = vmatprep.mubr.f32.mxu0 0.0
      %469 = vmatmul.mubr.f32.gmra.mrb[0].mxu0 %v372
      %v470 = vpop.f32.mrb[0].mxu0
      %v471 = vadd.f32 %v339, %v470
      %v472 = vpop.f32.mrb[0].mxu0
      %473 = vmatprep.mubr.f32.mxu0 0.0
      %474 = vmatmul.mubr.f32.gmra.mrb[0].mxu0 %v375
      %v475 = vpop.f32.mrb[0].mxu0
      %v476 = vadd.f32 %v344, %v475
      %v477 = vpop.f32.mrb[0].mxu0
      %478 = vmatprep.mubr.f32.mxu0 0.0
      %479 = vmatmul.mubr.f32.gmra.mrb[0].mxu0 %v378
      %v480 = vpop.f32.mrb[0].mxu0
      %v481 = vadd.f32 %v349, %v480
      %v482 = vpop.f32.mrb[0].mxu0
      %483 = vmatprep.mubr.f32.mxu0 0.0
      %484 = vmatmul.mubr.f32.gmra.mrb[0].mxu0 %v381
      %v485 = vpop.f32.mrb[0].mxu0
      %v486 = vadd.f32 %v354, %v485
      %v487 = vpop.f32.mrb[0].mxu0
      %488 = vmatprep.mubr.f32.mxu0 0.0
      %489 = vmatmul.mubr.f32.gmra.mrb[0].mxu0 %v384
      %v490 = vpop.f32.mrb[0].mxu0
      %v491 = vadd.f32 %v359, %v490
      %v492 = vpop.f32.mrb[0].mxu0
      %493 = vdwg.mxu0
      %v494 = vld [vmem:[%s197 + $0x1] sm:$0xff]
      %v495 = vld [vmem:[%s197 + $0x11] sm:$0xff]
      %v496 = vld [vmem:[%s197 + $0x21] sm:$0xff]
      %v497 = vld [vmem:[%s197 + $0x31] sm:$0xff]
      %v498 = vld [vmem:[%s197 + $0x41] sm:$0xff]
      %v499 = vld [vmem:[%s197 + $0x51] sm:$0xff]
      %v500 = vld [vmem:[%s197 + $0x61] sm:$0xff]
      %v501 = vld [vmem:[%s197 + $0x71] sm:$0xff]
      %s502 = scalar_lea.vmem %s1, 8
      %v503 = vld [vmem:[%s502] sm:$0xf]
      %v505 = vsel %vm228, %v494, 0
      %v508 = vsel %vm228, %v495, 0
      %v511 = vsel %vm228, %v496, 0
      %v514 = vsel %vm228, %v497, 0
      %v517 = vsel %vm228, %v498, 0
      %v520 = vsel %vm228, %v499, 0
      %v523 = vsel %vm228, %v500, 0
      %v526 = vsel %vm228, %v501, 0
      %v529 = vsel %vm253, %v503, 0
      %531 = vmatprep.subr.mxu0 0.0
      %532 = vmatpush1.msra.mxu0 %v529
      %533 = vmatprep.subr.mxu0 0.0
      %534 = vmatpush1.msra.mxu0 0.0
      %535 = vmatprep.subr.mxu0 0.0
      %536 = vmatpush1.msra.mxu0 0.0
      %537 = vmatprep.subr.mxu0 0.0
      %538 = vmatpush1.msra.mxu0 0.0
      %539 = vmatprep.subr.mxu0 0.0
      %540 = vmatpush1.msra.mxu0 0.0
      %541 = vmatprep.subr.mxu0 0.0
      %542 = vmatpush1.msra.mxu0 0.0
      %543 = vmatprep.subr.mxu0 0.0
      %544 = vmatpush1.msra.mxu0 0.0
      %545 = vmatprep.subr.mxu0 0.0
      %546 = vmatpush1.msra.mxu0 0.0
      %547 = vmatprep.subr.mxu0 0.0
      %548 = vmatpush1.msra.mxu0 0.0
      %549 = vmatprep.subr.mxu0 0.0
      %550 = vmatpush1.msra.mxu0 0.0
      %551 = vmatprep.subr.mxu0 0.0
      %552 = vmatpush1.msra.mxu0 0.0
      %553 = vmatprep.subr.mxu0 0.0
      %554 = vmatpush1.msra.mxu0 0.0
      %555 = vmatprep.subr.mxu0 0.0
      %556 = vmatpush1.msra.mxu0 0.0
      %557 = vmatprep.subr.mxu0 0.0
      %558 = vmatpush1.msra.mxu0 0.0
      %559 = vmatprep.subr.mxu0 0.0
      %560 = vmatpush1.msra.mxu0 0.0
      %561 = vmatprep.subr.mxu0 0.0
      %562 = vmatpush1.msra.mxu0 0.0
      %563 = vmatprep.subr.mxu0 0.0
      %564 = vmatpush1.msra.mxu0 0.0
      %565 = vmatprep.subr.mxu0 0.0
      %566 = vmatpush1.msra.mxu0 0.0
      %567 = vmatprep.subr.mxu0 0.0
      %568 = vmatpush1.msra.mxu0 0.0
      %569 = vmatprep.subr.mxu0 0.0
      %570 = vmatpush1.msra.mxu0 0.0
      %571 = vmatprep.subr.mxu0 0.0
      %572 = vmatpush1.msra.mxu0 0.0
      %573 = vmatprep.subr.mxu0 0.0
      %574 = vmatpush1.msra.mxu0 0.0
      %575 = vmatprep.subr.mxu0 0.0
      %576 = vmatpush1.msra.mxu0 0.0
      %577 = vmatprep.subr.mxu0 0.0
      %578 = vmatpush1.msra.mxu0 0.0
      %579 = vmatprep.subr.mxu0 0.0
      %580 = vmatpush1.msra.mxu0 0.0
      %581 = vmatprep.subr.mxu0 0.0
      %582 = vmatpush1.msra.mxu0 0.0
      %583 = vmatprep.subr.mxu0 0.0
      %584 = vmatpush1.msra.mxu0 0.0
      %585 = vmatprep.subr.mxu0 0.0
      %586 = vmatpush1.msra.mxu0 0.0
      %587 = vmatprep.subr.mxu0 0.0
      %588 = vmatpush1.msra.mxu0 0.0
      %589 = vmatprep.subr.mxu0 0.0
      %590 = vmatpush1.msra.mxu0 0.0
      %591 = vmatprep.subr.mxu0 0.0
      %592 = vmatpush1.msra.mxu0 0.0
      %593 = vmatprep.subr.mxu0 0.0
      %594 = vmatpush1.msra.mxu0 0.0
      %595 = vmatprep.mubr.f32.mxu0 0.0
      %596 = vmatmul.mubr.f32.gmra.mrb[0].mxu0 %v505
      %v597 = vpop.f32.mrb[0].mxu0
      %v598 = vadd.f32 0.0, %v597
      %v599 = vpop.f32.mrb[0].mxu0
      %600 = vmatprep.mubr.f32.mxu0 0.0
      %601 = vmatmul.mubr.f32.gmra.mrb[0].mxu0 %v508
      %v602 = vpop.f32.mrb[0].mxu0
      %v603 = vadd.f32 0.0, %v602
      %v604 = vpop.f32.mrb[0].mxu0
      %605 = vmatprep.mubr.f32.mxu0 0.0
      %606 = vmatmul.mubr.f32.gmra.mrb[0].mxu0 %v511
      %v607 = vpop.f32.mrb[0].mxu0
      %v608 = vadd.f32 0.0, %v607
      %v609 = vpop.f32.mrb[0].mxu0
      %610 = vmatprep.mubr.f32.mxu0 0.0
      %611 = vmatmul.mubr.f32.gmra.mrb[0].mxu0 %v514
      %v612 = vpop.f32.mrb[0].mxu0
      %v613 = vadd.f32 0.0, %v612
      %v614 = vpop.f32.mrb[0].mxu0
      %615 = vmatprep.mubr.f32.mxu0 0.0
      %616 = vmatmul.mubr.f32.gmra.mrb[0].mxu0 %v517
      %v617 = vpop.f32.mrb[0].mxu0
      %v618 = vadd.f32 0.0, %v617
      %v619 = vpop.f32.mrb[0].mxu0
      %620 = vmatprep.mubr.f32.mxu0 0.0
      %621 = vmatmul.mubr.f32.gmra.mrb[0].mxu0 %v520
      %v622 = vpop.f32.mrb[0].mxu0
      %v623 = vadd.f32 0.0, %v622
      %v624 = vpop.f32.mrb[0].mxu0
      %625 = vmatprep.mubr.f32.mxu0 0.0
      %626 = vmatmul.mubr.f32.gmra.mrb[0].mxu0 %v523
      %v627 = vpop.f32.mrb[0].mxu0
      %v628 = vadd.f32 0.0, %v627
      %v629 = vpop.f32.mrb[0].mxu0
      %630 = vmatprep.mubr.f32.mxu0 0.0
      %631 = vmatmul.mubr.f32.gmra.mrb[0].mxu0 %v526
      %v632 = vpop.f32.mrb[0].mxu0
      %v633 = vadd.f32 0.0, %v632
      %v634 = vpop.f32.mrb[0].mxu0
      %635 = vdwg.mxu0
      %v636 = vadd.f32 %v456, %v598
      %v637 = vadd.f32 %v461, %v603
      %v638 = vadd.f32 %v466, %v608
      %v639 = vadd.f32 %v471, %v613
      %v640 = vadd.f32 %v476, %v618
      %v641 = vadd.f32 %v481, %v623
      %v642 = vadd.f32 %v486, %v628
      %v643 = vadd.f32 %v491, %v633
      %s644 = scalar_lea.vmem %s197, 144
      %v645 = vld [vmem:[%s644] sm:$0xff]
      %v646 = vld [vmem:[%s644 + $0x10] sm:$0xff]
      %v647 = vld [vmem:[%s644 + $0x20] sm:$0xff]
      %v648 = vld [vmem:[%s644 + $0x30] sm:$0xff]
      %v649 = vld [vmem:[%s644 + $0x40] sm:$0xff]
      %v650 = vld [vmem:[%s644 + $0x50] sm:$0xff]
      %v651 = vld [vmem:[%s644 + $0x60] sm:$0xff]
      %v652 = vld [vmem:[%s644 + $0x70] sm:$0xff]
      %s653 = scalar_lea.vmem %s1, 12
      %v654 = vld [vmem:[%s653] sm:$0xf]
      %v656 = vsel %vm228, %v645, 0
      %v659 = vsel %vm228, %v646, 0
      %v662 = vsel %vm228, %v647, 0
      %v665 = vsel %vm228, %v648, 0
      %v668 = vsel %vm228, %v649, 0
      %v671 = vsel %vm228, %v650, 0
      %v674 = vsel %vm228, %v651, 0
      %v677 = vsel %vm228, %v652, 0
      %v680 = vsel %vm253, %v654, 0
      %682 = vmatprep.subr.mxu0 0.0
      %683 = vmatpush1.msra.mxu0 %v680
      %684 = vmatprep.subr.mxu0 0.0
      %685 = vmatpush1.msra.mxu0 0.0
      %686 = vmatprep.subr.mxu0 0.0
      %687 = vmatpush1.msra.mxu0 0.0
      %688 = vmatprep.subr.mxu0 0.0
      %689 = vmatpush1.msra.mxu0 0.0
      %690 = vmatprep.subr.mxu0 0.0
      %691 = vmatpush1.msra.mxu0 0.0
      %692 = vmatprep.subr.mxu0 0.0
      %693 = vmatpush1.msra.mxu0 0.0
      %694 = vmatprep.subr.mxu0 0.0
      %695 = vmatpush1.msra.mxu0 0.0
      %696 = vmatprep.subr.mxu0 0.0
      %697 = vmatpush1.msra.mxu0 0.0
      %698 = vmatprep.subr.mxu0 0.0
      %699 = vmatpush1.msra.mxu0 0.0
      %700 = vmatprep.subr.mxu0 0.0
      %701 = vmatpush1.msra.mxu0 0.0
      %702 = vmatprep.subr.mxu0 0.0
      %703 = vmatpush1.msra.mxu0 0.0
      %704 = vmatprep.subr.mxu0 0.0
      %705 = vmatpush1.msra.mxu0 0.0
      %706 = vmatprep.subr.mxu0 0.0
      %707 = vmatpush1.msra.mxu0 0.0
      %708 = vmatprep.subr.mxu0 0.0
      %709 = vmatpush1.msra.mxu0 0.0
      %710 = vmatprep.subr.mxu0 0.0
      %711 = vmatpush1.msra.mxu0 0.0
      %712 = vmatprep.subr.mxu0 0.0
      %713 = vmatpush1.msra.mxu0 0.0
      %714 = vmatprep.subr.mxu0 0.0
      %715 = vmatpush1.msra.mxu0 0.0
      %716 = vmatprep.subr.mxu0 0.0
      %717 = vmatpush1.msra.mxu0 0.0
      %718 = vmatprep.subr.mxu0 0.0
      %719 = vmatpush1.msra.mxu0 0.0
      %720 = vmatprep.subr.mxu0 0.0
      %721 = vmatpush1.msra.mxu0 0.0
      %722 = vmatprep.subr.mxu0 0.0
      %723 = vmatpush1.msra.mxu0 0.0
      %724 = vmatprep.subr.mxu0 0.0
      %725 = vmatpush1.msra.mxu0 0.0
      %726 = vmatprep.subr.mxu0 0.0
      %727 = vmatpush1.msra.mxu0 0.0
      %728 = vmatprep.subr.mxu0 0.0
      %729 = vmatpush1.msra.mxu0 0.0
      %730 = vmatprep.subr.mxu0 0.0
      %731 = vmatpush1.msra.mxu0 0.0
      %732 = vmatprep.subr.mxu0 0.0
      %733 = vmatpush1.msra.mxu0 0.0
      %734 = vmatprep.subr.mxu0 0.0
      %735 = vmatpush1.msra.mxu0 0.0
      %736 = vmatprep.subr.mxu0 0.0
      %737 = vmatpush1.msra.mxu0 0.0
      %738 = vmatprep.subr.mxu0 0.0
      %739 = vmatpush1.msra.mxu0 0.0
      %740 = vmatprep.subr.mxu0 0.0
      %741 = vmatpush1.msra.mxu0 0.0
      %742 = vmatprep.subr.mxu0 0.0
      %743 = vmatpush1.msra.mxu0 0.0
      %744 = vmatprep.subr.mxu0 0.0
      %745 = vmatpush1.msra.mxu0 0.0
      %746 = vmatprep.mubr.f32.mxu0 0.0
      %747 = vmatmul.mubr.f32.gmra.mrb[0].mxu0 %v656
      %v748 = vpop.f32.mrb[0].mxu0
      %v749 = vadd.f32 0.0, %v748
      %v750 = vpop.f32.mrb[0].mxu0
      %751 = vmatprep.mubr.f32.mxu0 0.0
      %752 = vmatmul.mubr.f32.gmra.mrb[0].mxu0 %v659
      %v753 = vpop.f32.mrb[0].mxu0
      %v754 = vadd.f32 0.0, %v753
      %v755 = vpop.f32.mrb[0].mxu0
      %756 = vmatprep.mubr.f32.mxu0 0.0
      %757 = vmatmul.mubr.f32.gmra.mrb[0].mxu0 %v662
      %v758 = vpop.f32.mrb[0].mxu0
      %v759 = vadd.f32 0.0, %v758
      %v760 = vpop.f32.mrb[0].mxu0
      %761 = vmatprep.mubr.f32.mxu0 0.0
      %762 = vmatmul.mubr.f32.gmra.mrb[0].mxu0 %v665
      %v763 = vpop.f32.mrb[0].mxu0
      %v764 = vadd.f32 0.0, %v763
      %v765 = vpop.f32.mrb[0].mxu0
      %766 = vmatprep.mubr.f32.mxu0 0.0
      %767 = vmatmul.mubr.f32.gmra.mrb[0].mxu0 %v668
      %v768 = vpop.f32.mrb[0].mxu0
      %v769 = vadd.f32 0.0, %v768
      %v770 = vpop.f32.mrb[0].mxu0
      %771 = vmatprep.mubr.f32.mxu0 0.0
      %772 = vmatmul.mubr.f32.gmra.mrb[0].mxu0 %v671
      %v773 = vpop.f32.mrb[0].mxu0
      %v774 = vadd.f32 0.0, %v773
      %v775 = vpop.f32.mrb[0].mxu0
      %776 = vmatprep.mubr.f32.mxu0 0.0
      %777 = vmatmul.mubr.f32.gmra.mrb[0].mxu0 %v674
      %v778 = vpop.f32.mrb[0].mxu0
      %v779 = vadd.f32 0.0, %v778
      %v780 = vpop.f32.mrb[0].mxu0
      %781 = vmatprep.mubr.f32.mxu0 0.0
      %782 = vmatmul.mubr.f32.gmra.mrb[0].mxu0 %v677
      %v783 = vpop.f32.mrb[0].mxu0
      %v784 = vadd.f32 0.0, %v783
      %v785 = vpop.f32.mrb[0].mxu0
      %786 = vdwg.mxu0
      %v787 = vadd.f32 %v636, %v749
      %v788 = vadd.f32 %v637, %v754
      %v789 = vadd.f32 %v638, %v759
      %v790 = vadd.f32 %v639, %v764
      %v791 = vadd.f32 %v640, %v769
      %v792 = vadd.f32 %v641, %v774
      %v793 = vadd.f32 %v642, %v779
      %v794 = vadd.f32 %v643, %v784
      %s795 = scalar_lea.vmem %s197, 416
      %v796 = vld [vmem:[%s795] sm:$0xff]
      %v797 = vld [vmem:[%s795 + $0x10] sm:$0xff]
      %v798 = vld [vmem:[%s795 + $0x20] sm:$0xff]
      %v799 = vld [vmem:[%s795 + $0x30] sm:$0xff]
      %v800 = vld [vmem:[%s795 + $0x40] sm:$0xff]
      %v801 = vld [vmem:[%s795 + $0x50] sm:$0xff]
      %v802 = vld [vmem:[%s795 + $0x60] sm:$0xff]
      %v803 = vld [vmem:[%s795 + $0x70] sm:$0xff]
      %s804 = scalar_lea.vmem %s1, 16
      %v805 = vld [vmem:[%s804] sm:$0xf]
      %v807 = vsel %vm228, %v796, 0
      %v810 = vsel %vm228, %v797, 0
      %v813 = vsel %vm228, %v798, 0
      %v816 = vsel %vm228, %v799, 0
      %v819 = vsel %vm228, %v800, 0
      %v822 = vsel %vm228, %v801, 0
      %v825 = vsel %vm228, %v802, 0
      %v828 = vsel %vm228, %v803, 0
      %v831 = vsel %vm253, %v805, 0
      %833 = vmatprep.subr.mxu0 0.0
      %834 = vmatpush1.msra.mxu0 %v831
      %835 = vmatprep.subr.mxu0 0.0
      %836 = vmatpush1.msra.mxu0 0.0
      %837 = vmatprep.subr.mxu0 0.0
      %838 = vmatpush1.msra.mxu0 0.0
      %839 = vmatprep.subr.mxu0 0.0
      %840 = vmatpush1.msra.mxu0 0.0
      %841 = vmatprep.subr.mxu0 0.0
      %842 = vmatpush1.msra.mxu0 0.0
      %843 = vmatprep.subr.mxu0 0.0
      %844 = vmatpush1.msra.mxu0 0.0
      %845 = vmatprep.subr.mxu0 0.0
      %846 = vmatpush1.msra.mxu0 0.0
      %847 = vmatprep.subr.mxu0 0.0
      %848 = vmatpush1.msra.mxu0 0.0
      %849 = vmatprep.subr.mxu0 0.0
      %850 = vmatpush1.msra.mxu0 0.0
      %851 = vmatprep.subr.mxu0 0.0
      %852 = vmatpush1.msra.mxu0 0.0
      %853 = vmatprep.subr.mxu0 0.0
      %854 = vmatpush1.msra.mxu0 0.0
      %855 = vmatprep.subr.mxu0 0.0
      %856 = vmatpush1.msra.mxu0 0.0
      %857 = vmatprep.subr.mxu0 0.0
      %858 = vmatpush1.msra.mxu0 0.0
      %859 = vmatprep.subr.mxu0 0.0
      %860 = vmatpush1.msra.mxu0 0.0
      %861 = vmatprep.subr.mxu0 0.0
      %862 = vmatpush1.msra.mxu0 0.0
      %863 = vmatprep.subr.mxu0 0.0
      %864 = vmatpush1.msra.mxu0 0.0
      %865 = vmatprep.subr.mxu0 0.0
      %866 = vmatpush1.msra.mxu0 0.0
      %867 = vmatprep.subr.mxu0 0.0
      %868 = vmatpush1.msra.mxu0 0.0
      %869 = vmatprep.subr.mxu0 0.0
      %870 = vmatpush1.msra.mxu0 0.0
      %871 = vmatprep.subr.mxu0 0.0
      %872 = vmatpush1.msra.mxu0 0.0
      %873 = vmatprep.subr.mxu0 0.0
      %874 = vmatpush1.msra.mxu0 0.0
      %875 = vmatprep.subr.mxu0 0.0
      %876 = vmatpush1.msra.mxu0 0.0
      %877 = vmatprep.subr.mxu0 0.0
      %878 = vmatpush1.msra.mxu0 0.0
      %879 = vmatprep.subr.mxu0 0.0
      %880 = vmatpush1.msra.mxu0 0.0
      %881 = vmatprep.subr.mxu0 0.0
      %882 = vmatpush1.msra.mxu0 0.0
      %883 = vmatprep.subr.mxu0 0.0
      %884 = vmatpush1.msra.mxu0 0.0
      %885 = vmatprep.subr.mxu0 0.0
      %886 = vmatpush1.msra.mxu0 0.0
      %887 = vmatprep.subr.mxu0 0.0
      %888 = vmatpush1.msra.mxu0 0.0
      %889 = vmatprep.subr.mxu0 0.0
      %890 = vmatpush1.msra.mxu0 0.0
      %891 = vmatprep.subr.mxu0 0.0
      %892 = vmatpush1.msra.mxu0 0.0
      %893 = vmatprep.subr.mxu0 0.0
      %894 = vmatpush1.msra.mxu0 0.0
      %895 = vmatprep.subr.mxu0 0.0
      %896 = vmatpush1.msra.mxu0 0.0
      %897 = vmatprep.mubr.f32.mxu0 0.0
      %898 = vmatmul.mubr.f32.gmra.mrb[0].mxu0 %v807
      %v899 = vpop.f32.mrb[0].mxu0
      %v900 = vadd.f32 0.0, %v899
      %v901 = vpop.f32.mrb[0].mxu0
      %902 = vmatprep.mubr.f32.mxu0 0.0
      %903 = vmatmul.mubr.f32.gmra.mrb[0].mxu0 %v810
      %v904 = vpop.f32.mrb[0].mxu0
      %v905 = vadd.f32 0.0, %v904
      %v906 = vpop.f32.mrb[0].mxu0
      %907 = vmatprep.mubr.f32.mxu0 0.0
      %908 = vmatmul.mubr.f32.gmra.mrb[0].mxu0 %v813
      %v909 = vpop.f32.mrb[0].mxu0
      %v910 = vadd.f32 0.0, %v909
      %v911 = vpop.f32.mrb[0].mxu0
      %912 = vmatprep.mubr.f32.mxu0 0.0
      %913 = vmatmul.mubr.f32.gmra.mrb[0].mxu0 %v816
      %v914 = vpop.f32.mrb[0].mxu0
      %v915 = vadd.f32 0.0, %v914
      %v916 = vpop.f32.mrb[0].mxu0
      %917 = vmatprep.mubr.f32.mxu0 0.0
      %918 = vmatmul.mubr.f32.gmra.mrb[0].mxu0 %v819
      %v919 = vpop.f32.mrb[0].mxu0
      %v920 = vadd.f32 0.0, %v919
      %v921 = vpop.f32.mrb[0].mxu0
      %922 = vmatprep.mubr.f32.mxu0 0.0
      %923 = vmatmul.mubr.f32.gmra.mrb[0].mxu0 %v822
      %v924 = vpop.f32.mrb[0].mxu0
      %v925 = vadd.f32 0.0, %v924
      %v926 = vpop.f32.mrb[0].mxu0
      %927 = vmatprep.mubr.f32.mxu0 0.0
      %928 = vmatmul.mubr.f32.gmra.mrb[0].mxu0 %v825
      %v929 = vpop.f32.mrb[0].mxu0
      %v930 = vadd.f32 0.0, %v929
      %v931 = vpop.f32.mrb[0].mxu0
      %932 = vmatprep.mubr.f32.mxu0 0.0
      %933 = vmatmul.mubr.f32.gmra.mrb[0].mxu0 %v828
      %v934 = vpop.f32.mrb[0].mxu0
      %v935 = vadd.f32 0.0, %v934
      %v936 = vpop.f32.mrb[0].mxu0
      %937 = vdwg.mxu0
      %v938 = vadd.f32 %v787, %v900
      %v939 = vadd.f32 %v788, %v905
      %v940 = vadd.f32 %v789, %v910
      %v941 = vadd.f32 %v790, %v915
      %v942 = vadd.f32 %v791, %v920
      %v943 = vadd.f32 %v792, %v925
      %v944 = vadd.f32 %v793, %v930
      %v945 = vadd.f32 %v794, %v935
      %v946 = vld [vmem:[%s644 + $0x1] sm:$0xff]
      %v947 = vld [vmem:[%s644 + $0x11] sm:$0xff]
      %v948 = vld [vmem:[%s644 + $0x21] sm:$0xff]
      %v949 = vld [vmem:[%s644 + $0x31] sm:$0xff]
      %v950 = vld [vmem:[%s644 + $0x41] sm:$0xff]
      %v951 = vld [vmem:[%s644 + $0x51] sm:$0xff]
      %v952 = vld [vmem:[%s644 + $0x61] sm:$0xff]
      %v953 = vld [vmem:[%s644 + $0x71] sm:$0xff]
      %s954 = scalar_lea.vmem %s1, 20
      %v955 = vld [vmem:[%s954] sm:$0xf]
      %v957 = vsel %vm228, %v946, 0
      %v960 = vsel %vm228, %v947, 0
      %v963 = vsel %vm228, %v948, 0
      %v966 = vsel %vm228, %v949, 0
      %v969 = vsel %vm228, %v950, 0
      %v972 = vsel %vm228, %v951, 0
      %v975 = vsel %vm228, %v952, 0
      %v978 = vsel %vm228, %v953, 0
      %v981 = vsel %vm253, %v955, 0
      %983 = vmatprep.subr.mxu0 0.0
      %984 = vmatpush1.msra.mxu0 %v981
      %985 = vmatprep.subr.mxu0 0.0
      %986 = vmatpush1.msra.mxu0 0.0
      %987 = vmatprep.subr.mxu0 0.0
      %988 = vmatpush1.msra.mxu0 0.0
      %989 = vmatprep.subr.mxu0 0.0
      %990 = vmatpush1.msra.mxu0 0.0
      %991 = vmatprep.subr.mxu0 0.0
      %992 = vmatpush1.msra.mxu0 0.0
      %993 = vmatprep.subr.mxu0 0.0
      %994 = vmatpush1.msra.mxu0 0.0
      %995 = vmatprep.subr.mxu0 0.0
      %996 = vmatpush1.msra.mxu0 0.0
      %997 = vmatprep.subr.mxu0 0.0
      %998 = vmatpush1.msra.mxu0 0.0
      %999 = vmatprep.subr.mxu0 0.0
      %1000 = vmatpush1.msra.mxu0 0.0
      %1001 = vmatprep.subr.mxu0 0.0
      %1002 = vmatpush1.msra.mxu0 0.0
      %1003 = vmatprep.subr.mxu0 0.0
      %1004 = vmatpush1.msra.mxu0 0.0
      %1005 = vmatprep.subr.mxu0 0.0
      %1006 = vmatpush1.msra.mxu0 0.0
      %1007 = vmatprep.subr.mxu0 0.0
      %1008 = vmatpush1.msra.mxu0 0.0
      %1009 = vmatprep.subr.mxu0 0.0
      %1010 = vmatpush1.msra.mxu0 0.0
      %1011 = vmatprep.subr.mxu0 0.0
      %1012 = vmatpush1.msra.mxu0 0.0
      %1013 = vmatprep.subr.mxu0 0.0
      %1014 = vmatpush1.msra.mxu0 0.0
      %1015 = vmatprep.subr.mxu0 0.0
      %1016 = vmatpush1.msra.mxu0 0.0
      %1017 = vmatprep.subr.mxu0 0.0
      %1018 = vmatpush1.msra.mxu0 0.0
      %1019 = vmatprep.subr.mxu0 0.0
      %1020 = vmatpush1.msra.mxu0 0.0
      %1021 = vmatprep.subr.mxu0 0.0
      %1022 = vmatpush1.msra.mxu0 0.0
      %1023 = vmatprep.subr.mxu0 0.0
      %1024 = vmatpush1.msra.mxu0 0.0
      %1025 = vmatprep.subr.mxu0 0.0
      %1026 = vmatpush1.msra.mxu0 0.0
      %1027 = vmatprep.subr.mxu0 0.0
      %1028 = vmatpush1.msra.mxu0 0.0
      %1029 = vmatprep.subr.mxu0 0.0
      %1030 = vmatpush1.msra.mxu0 0.0
      %1031 = vmatprep.subr.mxu0 0.0
      %1032 = vmatpush1.msra.mxu0 0.0
      %1033 = vmatprep.subr.mxu0 0.0
      %1034 = vmatpush1.msra.mxu0 0.0
      %1035 = vmatprep.subr.mxu0 0.0
      %1036 = vmatpush1.msra.mxu0 0.0
      %1037 = vmatprep.subr.mxu0 0.0
      %1038 = vmatpush1.msra.mxu0 0.0
      %1039 = vmatprep.subr.mxu0 0.0
      %1040 = vmatpush1.msra.mxu0 0.0
      %1041 = vmatprep.subr.mxu0 0.0
      %1042 = vmatpush1.msra.mxu0 0.0
      %1043 = vmatprep.subr.mxu0 0.0
      %1044 = vmatpush1.msra.mxu0 0.0
      %1045 = vmatprep.subr.mxu0 0.0
      %1046 = vmatpush1.msra.mxu0 0.0
      %1047 = vmatprep.mubr.f32.mxu0 0.0
      %1048 = vmatmul.mubr.f32.gmra.mrb[0].mxu0 %v957
      %v1049 = vpop.f32.mrb[0].mxu0
      %v1050 = vadd.f32 0.0, %v1049
      %v1051 = vpop.f32.mrb[0].mxu0
      %1052 = vmatprep.mubr.f32.mxu0 0.0
      %1053 = vmatmul.mubr.f32.gmra.mrb[0].mxu0 %v960
      %v1054 = vpop.f32.mrb[0].mxu0
      %v1055 = vadd.f32 0.0, %v1054
      %v1056 = vpop.f32.mrb[0].mxu0
      %1057 = vmatprep.mubr.f32.mxu0 0.0
      %1058 = vmatmul.mubr.f32.gmra.mrb[0].mxu0 %v963
      %v1059 = vpop.f32.mrb[0].mxu0
      %v1060 = vadd.f32 0.0, %v1059
      %v1061 = vpop.f32.mrb[0].mxu0
      %1062 = vmatprep.mubr.f32.mxu0 0.0
      %1063 = vmatmul.mubr.f32.gmra.mrb[0].mxu0 %v966
      %v1064 = vpop.f32.mrb[0].mxu0
      %v1065 = vadd.f32 0.0, %v1064
      %v1066 = vpop.f32.mrb[0].mxu0
      %1067 = vmatprep.mubr.f32.mxu0 0.0
      %1068 = vmatmul.mubr.f32.gmra.mrb[0].mxu0 %v969
      %v1069 = vpop.f32.mrb[0].mxu0
      %v1070 = vadd.f32 0.0, %v1069
      %v1071 = vpop.f32.mrb[0].mxu0
      %1072 = vmatprep.mubr.f32.mxu0 0.0
      %1073 = vmatmul.mubr.f32.gmra.mrb[0].mxu0 %v972
      %v1074 = vpop.f32.mrb[0].mxu0
      %v1075 = vadd.f32 0.0, %v1074
      %v1076 = vpop.f32.mrb[0].mxu0
      %1077 = vmatprep.mubr.f32.mxu0 0.0
      %1078 = vmatmul.mubr.f32.gmra.mrb[0].mxu0 %v975
      %v1079 = vpop.f32.mrb[0].mxu0
      %v1080 = vadd.f32 0.0, %v1079
      %v1081 = vpop.f32.mrb[0].mxu0
      %1082 = vmatprep.mubr.f32.mxu0 0.0
      %1083 = vmatmul.mubr.f32.gmra.mrb[0].mxu0 %v978
      %v1084 = vpop.f32.mrb[0].mxu0
      %v1085 = vadd.f32 0.0, %v1084
      %v1086 = vpop.f32.mrb[0].mxu0
      %1087 = vdwg.mxu0
      %v1088 = vadd.f32 %v938, %v1050
      %v1089 = vadd.f32 %v939, %v1055
      %v1090 = vadd.f32 %v940, %v1060
      %v1091 = vadd.f32 %v941, %v1065
      %v1092 = vadd.f32 %v942, %v1070
      %v1093 = vadd.f32 %v943, %v1075
      %v1094 = vadd.f32 %v944, %v1080
      %v1095 = vadd.f32 %v945, %v1085
      %s1096 = scalar_lea.vmem %s197, 16
      %v1097 = vld [vmem:[%s1096] sm:$0xff]
      %v1098 = vld [vmem:[%s1096 + $0x10] sm:$0xff]
      %v1099 = vld [vmem:[%s1096 + $0x20] sm:$0xff]
      %v1100 = vld [vmem:[%s1096 + $0x30] sm:$0xff]
      %v1101 = vld [vmem:[%s1096 + $0x40] sm:$0xff]
      %v1102 = vld [vmem:[%s1096 + $0x50] sm:$0xff]
      %v1103 = vld [vmem:[%s1096 + $0x60] sm:$0xff]
      %v1104 = vld [vmem:[%s1096 + $0x70] sm:$0xff]
      %s1105 = scalar_lea.vmem %s1, 24
      %v1106 = vld [vmem:[%s1105] sm:$0xf]
      %v1108 = vsel %vm228, %v1097, 0
      %v1111 = vsel %vm228, %v1098, 0
      %v1114 = vsel %vm228, %v1099, 0
      %v1117 = vsel %vm228, %v1100, 0
      %v1120 = vsel %vm228, %v1101, 0
      %v1123 = vsel %vm228, %v1102, 0
      %v1126 = vsel %vm228, %v1103, 0
      %v1129 = vsel %vm228, %v1104, 0
      %v1132 = vsel %vm253, %v1106, 0
      %1134 = vmatprep.subr.mxu0 0.0
      %1135 = vmatpush1.msra.mxu0 %v1132
      %1136 = vmatprep.subr.mxu0 0.0
      %1137 = vmatpush1.msra.mxu0 0.0
      %1138 = vmatprep.subr.mxu0 0.0
      %1139 = vmatpush1.msra.mxu0 0.0
      %1140 = vmatprep.subr.mxu0 0.0
      %1141 = vmatpush1.msra.mxu0 0.0
      %1142 = vmatprep.subr.mxu0 0.0
      %1143 = vmatpush1.msra.mxu0 0.0
      %1144 = vmatprep.subr.mxu0 0.0
      %1145 = vmatpush1.msra.mxu0 0.0
      %1146 = vmatprep.subr.mxu0 0.0
      %1147 = vmatpush1.msra.mxu0 0.0
      %1148 = vmatprep.subr.mxu0 0.0
      %1149 = vmatpush1.msra.mxu0 0.0
      %1150 = vmatprep.subr.mxu0 0.0
      %1151 = vmatpush1.msra.mxu0 0.0
      %1152 = vmatprep.subr.mxu0 0.0
      %1153 = vmatpush1.msra.mxu0 0.0
      %1154 = vmatprep.subr.mxu0 0.0
      %1155 = vmatpush1.msra.mxu0 0.0
      %1156 = vmatprep.subr.mxu0 0.0
      %1157 = vmatpush1.msra.mxu0 0.0
      %1158 = vmatprep.subr.mxu0 0.0
      %1159 = vmatpush1.msra.mxu0 0.0
      %1160 = vmatprep.subr.mxu0 0.0
      %1161 = vmatpush1.msra.mxu0 0.0
      %1162 = vmatprep.subr.mxu0 0.0
      %1163 = vmatpush1.msra.mxu0 0.0
      %1164 = vmatprep.subr.mxu0 0.0
      %1165 = vmatpush1.msra.mxu0 0.0
      %1166 = vmatprep.subr.mxu0 0.0
      %1167 = vmatpush1.msra.mxu0 0.0
      %1168 = vmatprep.subr.mxu0 0.0
      %1169 = vmatpush1.msra.mxu0 0.0
      %1170 = vmatprep.subr.mxu0 0.0
      %1171 = vmatpush1.msra.mxu0 0.0
      %1172 = vmatprep.subr.mxu0 0.0
      %1173 = vmatpush1.msra.mxu0 0.0
      %1174 = vmatprep.subr.mxu0 0.0
      %1175 = vmatpush1.msra.mxu0 0.0
      %1176 = vmatprep.subr.mxu0 0.0
      %1177 = vmatpush1.msra.mxu0 0.0
      %1178 = vmatprep.subr.mxu0 0.0
      %1179 = vmatpush1.msra.mxu0 0.0
      %1180 = vmatprep.subr.mxu0 0.0
      %1181 = vmatpush1.msra.mxu0 0.0
      %1182 = vmatprep.subr.mxu0 0.0
      %1183 = vmatpush1.msra.mxu0 0.0
      %1184 = vmatprep.subr.mxu0 0.0
      %1185 = vmatpush1.msra.mxu0 0.0
      %1186 = vmatprep.subr.mxu0 0.0
      %1187 = vmatpush1.msra.mxu0 0.0
      %1188 = vmatprep.subr.mxu0 0.0
      %1189 = vmatpush1.msra.mxu0 0.0
      %1190 = vmatprep.subr.mxu0 0.0
      %1191 = vmatpush1.msra.mxu0 0.0
      %1192 = vmatprep.subr.mxu0 0.0
      %1193 = vmatpush1.msra.mxu0 0.0
      %1194 = vmatprep.subr.mxu0 0.0
      %1195 = vmatpush1.msra.mxu0 0.0
      %1196 = vmatprep.subr.mxu0 0.0
      %1197 = vmatpush1.msra.mxu0 0.0
      %1198 = vmatprep.mubr.f32.mxu0 0.0
      %1199 = vmatmul.mubr.f32.gmra.mrb[0].mxu0 %v1108
      %v1200 = vpop.f32.mrb[0].mxu0
      %v1201 = vadd.f32 0.0, %v1200
      %v1202 = vpop.f32.mrb[0].mxu0
      %1203 = vmatprep.mubr.f32.mxu0 0.0
      %1204 = vmatmul.mubr.f32.gmra.mrb[0].mxu0 %v1111
      %v1205 = vpop.f32.mrb[0].mxu0
      %v1206 = vadd.f32 0.0, %v1205
      %v1207 = vpop.f32.mrb[0].mxu0
      %1208 = vmatprep.mubr.f32.mxu0 0.0
      %1209 = vmatmul.mubr.f32.gmra.mrb[0].mxu0 %v1114
      %v1210 = vpop.f32.mrb[0].mxu0
      %v1211 = vadd.f32 0.0, %v1210
      %v1212 = vpop.f32.mrb[0].mxu0
      %1213 = vmatprep.mubr.f32.mxu0 0.0
      %1214 = vmatmul.mubr.f32.gmra.mrb[0].mxu0 %v1117
      %v1215 = vpop.f32.mrb[0].mxu0
      %v1216 = vadd.f32 0.0, %v1215
      %v1217 = vpop.f32.mrb[0].mxu0
      %1218 = vmatprep.mubr.f32.mxu0 0.0
      %1219 = vmatmul.mubr.f32.gmra.mrb[0].mxu0 %v1120
      %v1220 = vpop.f32.mrb[0].mxu0
      %v1221 = vadd.f32 0.0, %v1220
      %v1222 = vpop.f32.mrb[0].mxu0
      %1223 = vmatprep.mubr.f32.mxu0 0.0
      %1224 = vmatmul.mubr.f32.gmra.mrb[0].mxu0 %v1123
      %v1225 = vpop.f32.mrb[0].mxu0
      %v1226 = vadd.f32 0.0, %v1225
      %v1227 = vpop.f32.mrb[0].mxu0
      %1228 = vmatprep.mubr.f32.mxu0 0.0
      %1229 = vmatmul.mubr.f32.gmra.mrb[0].mxu0 %v1126
      %v1230 = vpop.f32.mrb[0].mxu0
      %v1231 = vadd.f32 0.0, %v1230
      %v1232 = vpop.f32.mrb[0].mxu0
      %1233 = vmatprep.mubr.f32.mxu0 0.0
      %1234 = vmatmul.mubr.f32.gmra.mrb[0].mxu0 %v1129
      %v1235 = vpop.f32.mrb[0].mxu0
      %v1236 = vadd.f32 0.0, %v1235
      %v1237 = vpop.f32.mrb[0].mxu0
      %1238 = vdwg.mxu0
      %v1239 = vadd.f32 %v1088, %v1201
      %v1240 = vadd.f32 %v1089, %v1206
      %v1241 = vadd.f32 %v1090, %v1211
      %v1242 = vadd.f32 %v1091, %v1216
      %v1243 = vadd.f32 %v1092, %v1221
      %v1244 = vadd.f32 %v1093, %v1226
      %v1245 = vadd.f32 %v1094, %v1231
      %v1246 = vadd.f32 %v1095, %v1236
      %s1247 = scalar_lea.vmem %s197, 288
      %v1248 = vld [vmem:[%s1247] sm:$0xff]
      %v1249 = vld [vmem:[%s1247 + $0x10] sm:$0xff]
      %v1250 = vld [vmem:[%s1247 + $0x20] sm:$0xff]
      %v1251 = vld [vmem:[%s1247 + $0x30] sm:$0xff]
      %v1252 = vld [vmem:[%s1247 + $0x40] sm:$0xff]
      %v1253 = vld [vmem:[%s1247 + $0x50] sm:$0xff]
      %v1254 = vld [vmem:[%s1247 + $0x60] sm:$0xff]
      %v1255 = vld [vmem:[%s1247 + $0x70] sm:$0xff]
      %s1256 = scalar_lea.vmem %s1, 28
      %v1257 = vld [vmem:[%s1256] sm:$0xf]
      %v1259 = vsel %vm228, %v1248, 0
      %v1262 = vsel %vm228, %v1249, 0
      %v1265 = vsel %vm228, %v1250, 0
      %v1268 = vsel %vm228, %v1251, 0
      %v1271 = vsel %vm228, %v1252, 0
      %v1274 = vsel %vm228, %v1253, 0
      %v1277 = vsel %vm228, %v1254, 0
      %v1280 = vsel %vm228, %v1255, 0
      %v1283 = vsel %vm253, %v1257, 0
      %1285 = vmatprep.subr.mxu0 0.0
      %1286 = vmatpush1.msra.mxu0 %v1283
      %1287 = vmatprep.subr.mxu0 0.0
      %1288 = vmatpush1.msra.mxu0 0.0
      %1289 = vmatprep.subr.mxu0 0.0
      %1290 = vmatpush1.msra.mxu0 0.0
      %1291 = vmatprep.subr.mxu0 0.0
      %1292 = vmatpush1.msra.mxu0 0.0
      %1293 = vmatprep.subr.mxu0 0.0
      %1294 = vmatpush1.msra.mxu0 0.0
      %1295 = vmatprep.subr.mxu0 0.0
      %1296 = vmatpush1.msra.mxu0 0.0
      %1297 = vmatprep.subr.mxu0 0.0
      %1298 = vmatpush1.msra.mxu0 0.0
      %1299 = vmatprep.subr.mxu0 0.0
      %1300 = vmatpush1.msra.mxu0 0.0
      %1301 = vmatprep.subr.mxu0 0.0
      %1302 = vmatpush1.msra.mxu0 0.0
      %1303 = vmatprep.subr.mxu0 0.0
      %1304 = vmatpush1.msra.mxu0 0.0
      %1305 = vmatprep.subr.mxu0 0.0
      %1306 = vmatpush1.msra.mxu0 0.0
      %1307 = vmatprep.subr.mxu0 0.0
      %1308 = vmatpush1.msra.mxu0 0.0
      %1309 = vmatprep.subr.mxu0 0.0
      %1310 = vmatpush1.msra.mxu0 0.0
      %1311 = vmatprep.subr.mxu0 0.0
      %1312 = vmatpush1.msra.mxu0 0.0
      %1313 = vmatprep.subr.mxu0 0.0
      %1314 = vmatpush1.msra.mxu0 0.0
      %1315 = vmatprep.subr.mxu0 0.0
      %1316 = vmatpush1.msra.mxu0 0.0
      %1317 = vmatprep.subr.mxu0 0.0
      %1318 = vmatpush1.msra.mxu0 0.0
      %1319 = vmatprep.subr.mxu0 0.0
      %1320 = vmatpush1.msra.mxu0 0.0
      %1321 = vmatprep.subr.mxu0 0.0
      %1322 = vmatpush1.msra.mxu0 0.0
      %1323 = vmatprep.subr.mxu0 0.0
      %1324 = vmatpush1.msra.mxu0 0.0
      %1325 = vmatprep.subr.mxu0 0.0
      %1326 = vmatpush1.msra.mxu0 0.0
      %1327 = vmatprep.subr.mxu0 0.0
      %1328 = vmatpush1.msra.mxu0 0.0
      %1329 = vmatprep.subr.mxu0 0.0
      %1330 = vmatpush1.msra.mxu0 0.0
      %1331 = vmatprep.subr.mxu0 0.0
      %1332 = vmatpush1.msra.mxu0 0.0
      %1333 = vmatprep.subr.mxu0 0.0
      %1334 = vmatpush1.msra.mxu0 0.0
      %1335 = vmatprep.subr.mxu0 0.0
      %1336 = vmatpush1.msra.mxu0 0.0
      %1337 = vmatprep.subr.mxu0 0.0
      %1338 = vmatpush1.msra.mxu0 0.0
      %1339 = vmatprep.subr.mxu0 0.0
      %1340 = vmatpush1.msra.mxu0 0.0
      %1341 = vmatprep.subr.mxu0 0.0
      %1342 = vmatpush1.msra.mxu0 0.0
      %1343 = vmatprep.subr.mxu0 0.0
      %1344 = vmatpush1.msra.mxu0 0.0
      %1345 = vmatprep.subr.mxu0 0.0
      %1346 = vmatpush1.msra.mxu0 0.0
      %1347 = vmatprep.subr.mxu0 0.0
      %1348 = vmatpush1.msra.mxu0 0.0
      %1349 = vmatprep.mubr.f32.mxu0 0.0
      %1350 = vmatmul.mubr.f32.gmra.mrb[0].mxu0 %v1259
      %v1351 = vpop.f32.mrb[0].mxu0
      %v1352 = vadd.f32 0.0, %v1351
      %v1353 = vpop.f32.mrb[0].mxu0
      %1354 = vmatprep.mubr.f32.mxu0 0.0
      %1355 = vmatmul.mubr.f32.gmra.mrb[0].mxu0 %v1262
      %v1356 = vpop.f32.mrb[0].mxu0
      %v1357 = vadd.f32 0.0, %v1356
      %v1358 = vpop.f32.mrb[0].mxu0
      %1359 = vmatprep.mubr.f32.mxu0 0.0
      %1360 = vmatmul.mubr.f32.gmra.mrb[0].mxu0 %v1265
      %v1361 = vpop.f32.mrb[0].mxu0
      %v1362 = vadd.f32 0.0, %v1361
      %v1363 = vpop.f32.mrb[0].mxu0
      %1364 = vmatprep.mubr.f32.mxu0 0.0
      %1365 = vmatmul.mubr.f32.gmra.mrb[0].mxu0 %v1268
      %v1366 = vpop.f32.mrb[0].mxu0
      %v1367 = vadd.f32 0.0, %v1366
      %v1368 = vpop.f32.mrb[0].mxu0
      %1369 = vmatprep.mubr.f32.mxu0 0.0
      %1370 = vmatmul.mubr.f32.gmra.mrb[0].mxu0 %v1271
      %v1371 = vpop.f32.mrb[0].mxu0
      %v1372 = vadd.f32 0.0, %v1371
      %v1373 = vpop.f32.mrb[0].mxu0
      %1374 = vmatprep.mubr.f32.mxu0 0.0
      %1375 = vmatmul.mubr.f32.gmra.mrb[0].mxu0 %v1274
      %v1376 = vpop.f32.mrb[0].mxu0
      %v1377 = vadd.f32 0.0, %v1376
      %v1378 = vpop.f32.mrb[0].mxu0
      %1379 = vmatprep.mubr.f32.mxu0 0.0
      %1380 = vmatmul.mubr.f32.gmra.mrb[0].mxu0 %v1277
      %v1381 = vpop.f32.mrb[0].mxu0
      %v1382 = vadd.f32 0.0, %v1381
      %v1383 = vpop.f32.mrb[0].mxu0
      %1384 = vmatprep.mubr.f32.mxu0 0.0
      %1385 = vmatmul.mubr.f32.gmra.mrb[0].mxu0 %v1280
      %v1386 = vpop.f32.mrb[0].mxu0
      %v1387 = vadd.f32 0.0, %v1386
      %v1388 = vpop.f32.mrb[0].mxu0
      %1389 = vdwg.mxu0
      %v1390 = vadd.f32 %v1239, %v1352
      %v1391 = vadd.f32 %v1240, %v1357
      %v1392 = vadd.f32 %v1241, %v1362
      %v1393 = vadd.f32 %v1242, %v1367
      %v1394 = vadd.f32 %v1243, %v1372
      %v1395 = vadd.f32 %v1244, %v1377
      %v1396 = vadd.f32 %v1245, %v1382
      %v1397 = vadd.f32 %v1246, %v1387
      %v1398 = vld [vmem:[%s1096 + $0x1] sm:$0xff]
      %v1399 = vld [vmem:[%s1096 + $0x11] sm:$0xff]
      %v1400 = vld [vmem:[%s1096 + $0x21] sm:$0xff]
      %v1401 = vld [vmem:[%s1096 + $0x31] sm:$0xff]
      %v1402 = vld [vmem:[%s1096 + $0x41] sm:$0xff]
      %v1403 = vld [vmem:[%s1096 + $0x51] sm:$0xff]
      %v1404 = vld [vmem:[%s1096 + $0x61] sm:$0xff]
      %v1405 = vld [vmem:[%s1096 + $0x71] sm:$0xff]
      %s1406 = scalar_lea.vmem %s1, 32
      %v1407 = vld [vmem:[%s1406] sm:$0xf]
      %v1409 = vsel %vm228, %v1398, 0
      %v1412 = vsel %vm228, %v1399, 0
      %v1415 = vsel %vm228, %v1400, 0
      %v1418 = vsel %vm228, %v1401, 0
      %v1421 = vsel %vm228, %v1402, 0
      %v1424 = vsel %vm228, %v1403, 0
      %v1427 = vsel %vm228, %v1404, 0
      %v1430 = vsel %vm228, %v1405, 0
      %v1433 = vsel %vm253, %v1407, 0
      %1435 = vmatprep.subr.mxu0 0.0
      %1436 = vmatpush1.msra.mxu0 %v1433
      %1437 = vmatprep.subr.mxu0 0.0
      %1438 = vmatpush1.msra.mxu0 0.0
      %1439 = vmatprep.subr.mxu0 0.0
      %1440 = vmatpush1.msra.mxu0 0.0
      %1441 = vmatprep.subr.mxu0 0.0
      %1442 = vmatpush1.msra.mxu0 0.0
      %1443 = vmatprep.subr.mxu0 0.0
      %1444 = vmatpush1.msra.mxu0 0.0
      %1445 = vmatprep.subr.mxu0 0.0
      %1446 = vmatpush1.msra.mxu0 0.0
      %1447 = vmatprep.subr.mxu0 0.0
      %1448 = vmatpush1.msra.mxu0 0.0
      %1449 = vmatprep.subr.mxu0 0.0
      %1450 = vmatpush1.msra.mxu0 0.0
      %1451 = vmatprep.subr.mxu0 0.0
      %1452 = vmatpush1.msra.mxu0 0.0
      %1453 = vmatprep.subr.mxu0 0.0
      %1454 = vmatpush1.msra.mxu0 0.0
      %1455 = vmatprep.subr.mxu0 0.0
      %1456 = vmatpush1.msra.mxu0 0.0
      %1457 = vmatprep.subr.mxu0 0.0
      %1458 = vmatpush1.msra.mxu0 0.0
      %1459 = vmatprep.subr.mxu0 0.0
      %1460 = vmatpush1.msra.mxu0 0.0
      %1461 = vmatprep.subr.mxu0 0.0
      %1462 = vmatpush1.msra.mxu0 0.0
      %1463 = vmatprep.subr.mxu0 0.0
      %1464 = vmatpush1.msra.mxu0 0.0
      %1465 = vmatprep.subr.mxu0 0.0
      %1466 = vmatpush1.msra.mxu0 0.0
      %1467 = vmatprep.subr.mxu0 0.0
      %1468 = vmatpush1.msra.mxu0 0.0
      %1469 = vmatprep.subr.mxu0 0.0
      %1470 = vmatpush1.msra.mxu0 0.0
      %1471 = vmatprep.subr.mxu0 0.0
      %1472 = vmatpush1.msra.mxu0 0.0
      %1473 = vmatprep.subr.mxu0 0.0
      %1474 = vmatpush1.msra.mxu0 0.0
      %1475 = vmatprep.subr.mxu0 0.0
      %1476 = vmatpush1.msra.mxu0 0.0
      %1477 = vmatprep.subr.mxu0 0.0
      %1478 = vmatpush1.msra.mxu0 0.0
      %1479 = vmatprep.subr.mxu0 0.0
      %1480 = vmatpush1.msra.mxu0 0.0
      %1481 = vmatprep.subr.mxu0 0.0
      %1482 = vmatpush1.msra.mxu0 0.0
      %1483 = vmatprep.subr.mxu0 0.0
      %1484 = vmatpush1.msra.mxu0 0.0
      %1485 = vmatprep.subr.mxu0 0.0
      %1486 = vmatpush1.msra.mxu0 0.0
      %1487 = vmatprep.subr.mxu0 0.0
      %1488 = vmatpush1.msra.mxu0 0.0
      %1489 = vmatprep.subr.mxu0 0.0
      %1490 = vmatpush1.msra.mxu0 0.0
      %1491 = vmatprep.subr.mxu0 0.0
      %1492 = vmatpush1.msra.mxu0 0.0
      %1493 = vmatprep.subr.mxu0 0.0
      %1494 = vmatpush1.msra.mxu0 0.0
      %1495 = vmatprep.subr.mxu0 0.0
      %1496 = vmatpush1.msra.mxu0 0.0
      %1497 = vmatprep.subr.mxu0 0.0
      %1498 = vmatpush1.msra.mxu0 0.0
      %1499 = vmatprep.mubr.f32.mxu0 0.0
      %1500 = vmatmul.mubr.f32.gmra.mrb[0].mxu0 %v1409
      %v1501 = vpop.f32.mrb[0].mxu0
      %v1502 = vadd.f32 0.0, %v1501
      %v1503 = vpop.f32.mrb[0].mxu0
      %1504 = vmatprep.mubr.f32.mxu0 0.0
      %1505 = vmatmul.mubr.f32.gmra.mrb[0].mxu0 %v1412
      %v1506 = vpop.f32.mrb[0].mxu0
      %v1507 = vadd.f32 0.0, %v1506
      %v1508 = vpop.f32.mrb[0].mxu0
      %1509 = vmatprep.mubr.f32.mxu0 0.0
      %1510 = vmatmul.mubr.f32.gmra.mrb[0].mxu0 %v1415
      %v1511 = vpop.f32.mrb[0].mxu0
      %v1512 = vadd.f32 0.0, %v1511
      %v1513 = vpop.f32.mrb[0].mxu0
      %1514 = vmatprep.mubr.f32.mxu0 0.0
      %1515 = vmatmul.mubr.f32.gmra.mrb[0].mxu0 %v1418
      %v1516 = vpop.f32.mrb[0].mxu0
      %v1517 = vadd.f32 0.0, %v1516
      %v1518 = vpop.f32.mrb[0].mxu0
      %1519 = vmatprep.mubr.f32.mxu0 0.0
      %1520 = vmatmul.mubr.f32.gmra.mrb[0].mxu0 %v1421
      %v1521 = vpop.f32.mrb[0].mxu0
      %v1522 = vadd.f32 0.0, %v1521
      %v1523 = vpop.f32.mrb[0].mxu0
      %1524 = vmatprep.mubr.f32.mxu0 0.0
      %1525 = vmatmul.mubr.f32.gmra.mrb[0].mxu0 %v1424
      %v1526 = vpop.f32.mrb[0].mxu0
      %v1527 = vadd.f32 0.0, %v1526
      %v1528 = vpop.f32.mrb[0].mxu0
      %1529 = vmatprep.mubr.f32.mxu0 0.0
      %1530 = vmatmul.mubr.f32.gmra.mrb[0].mxu0 %v1427
      %v1531 = vpop.f32.mrb[0].mxu0
      %v1532 = vadd.f32 0.0, %v1531
      %v1533 = vpop.f32.mrb[0].mxu0
      %1534 = vmatprep.mubr.f32.mxu0 0.0
      %1535 = vmatmul.mubr.f32.gmra.mrb[0].mxu0 %v1430
      %v1536 = vpop.f32.mrb[0].mxu0
      %v1537 = vadd.f32 0.0, %v1536
      %v1538 = vpop.f32.mrb[0].mxu0
      %1539 = vdwg.mxu0
      %v1540 = vadd.f32 %v1390, %v1502
      %v1541 = vadd.f32 %v1391, %v1507
      %v1542 = vadd.f32 %v1392, %v1512
      %v1543 = vadd.f32 %v1393, %v1517
      %v1544 = vadd.f32 %v1394, %v1522
      %v1545 = vadd.f32 %v1395, %v1527
      %v1546 = vadd.f32 %v1396, %v1532
      %v1547 = vadd.f32 %v1397, %v1537
      %v1548 = vld [vmem:[%s2] sm:$0x1]
      %v1550 = vlaneseq
      %v1551 = vshrl.u32 %v1550, 7
      %v1552 = vsub.s32 0, %v1551
      %v1553 = vrot.slane %v1548, %v1552
      %v1555 = vadd.f32 %v1540, %v1553
      %v1556 = vadd.f32 %v1541, %v1553
      %v1557 = vadd.f32 %v1542, %v1553
      %v1558 = vadd.f32 %v1543, %v1553
      %v1559 = vadd.f32 %v1544, %v1553
      %v1560 = vadd.f32 %v1545, %v1553
      %v1561 = vadd.f32 %v1546, %v1553
      %v1562 = vadd.f32 %v1547, %v1553
      %1563 = vst.msk [vmem:[%s206] sm:$0xff] %vm228, %v1555
      %1564 = vst.msk [vmem:[%s206 + $0x8] sm:$0xff] %vm228, %v1556
      %1565 = vst.msk [vmem:[%s206 + $0x10] sm:$0xff] %vm228, %v1557
      %1566 = vst.msk [vmem:[%s206 + $0x18] sm:$0xff] %vm228, %v1558
      %1567 = vst.msk [vmem:[%s206 + $0x20] sm:$0xff] %vm228, %v1559
      %1568 = vst.msk [vmem:[%s206 + $0x28] sm:$0xff] %vm228, %v1560
      %1569 = vst.msk [vmem:[%s206 + $0x30] sm:$0xff] %vm228, %v1561
      %1570 = vst.msk [vmem:[%s206 + $0x38] sm:$0xff] %vm228, %v1562
      %s1571 = smul.u32 8, %s19
      %p1572 = scmp.lt.s32.totalorder %s18, 1
      %s1573 = scalar_select %p1572, %s18, 1
      %p1574 = scmp.lt.s32.totalorder %s1571, 7
      %s1575 = scalar_select %p1574, %s1571, 7
      %s1576 = smul.addr %s1573, 8
      %s1577 = sadd.s32 %s1575, %s1576
      %s1578 = smul.addr %s1577, 8
      %s1579 = scalar_lea.vmem %s3, %s1578
      // Predicated region
      $region33: #{_downsample_impl.1} parent=31 // pred_check
        %p1580 = pneg %p116
      $region34: #{_downsample_impl.1} parent=31 // pred_check_branch
        %1582 = sbr.rel (%p1580) target = $region36
      $region35: #{_downsample_impl.1} parent=31 // pred_region
        %s1583 = smul.u32 8, %s19
      $region36: #{_downsample_impl.1} parent=31 // pred_fallthru
        _
    $region32: #{_downsample_impl.1} parent=5 // pred_fallthru
      _
    %p1584 = scmp.le.s32.totalorder 2, %s9
    // Predicated region
    $region37: #{_downsample_impl.1} parent=5 // pred_check
      %p1585 = pneg %p1584
    $region38: #{_downsample_impl.1} parent=5 // pred_check_branch
      %1587 = sbr.rel (%p1585) target = $region40
    $region39: #{_downsample_impl.1} parent=5 // pred_region
      %s1588 = ssub.s32 %s9, 2
      // Predicated region
      $region41: #{_downsample_impl.1} parent=39 // pred_check
        %p1589 = pneg %p122
      $region42: #{_downsample_impl.1} parent=39 // pred_check_branch
        %1591 = sbr.rel (%p1589) target = $region44
      $region43: #{_downsample_impl.1} parent=39 // pred_region
        %s1592 = smul.u32 8, %s21
        %p1593 = scmp.lt.s32.totalorder %s20, 1
        %s1594 = scalar_select %p1593, %s20, 1
        %p1595 = scmp.lt.s32.totalorder %s1592, 7
        %s1596 = scalar_select %p1595, %s1592, 7
        %s1597 = smul.addr %s1594, 8
        %s1598 = sadd.s32 %s1596, %s1597
        %s1599 = smul.addr %s1598, 8
        %s1600 = scalar_lea.vmem %s3, %s1599
      $region44: #{_downsample_impl.1} parent=39 // pred_fallthru
        _
    $region40: #{_downsample_impl.1} parent=5 // pred_fallthru
      _
  $region6: #{_downsample_impl.1} parent=0 // loop_footer
    %s13 = sadd.s32 1, %s9
  $region7: #{_downsample_impl.1} parent=0 // loop_footer_branch
    %8 = sbr.rel target = $region3
  $region8: #{_downsample_impl.1} parent=0 // loop_exit
    _

// kernel: _downsample_impl.1
$region0: #{_downsample_impl.1}
  #allocation0 [shape = 'u32[]', space=smem, size = 0x4, offset = 0x4, fixed_abs, tag = 'smem constant byte address 0x4 - core index']
  #allocation1 [shape = 'u32[144,128]{1,0:T(1,128)}', space=vmem, size = 0x12000, scoped, tag = 'internal scratch']
  %s0 = inlined_call_operand.vmem [shape: f32[2,1,2,17,9,4], index: 0, kind: input, shape index: {}]
  %s1 = inlined_call_operand.vmem [shape: f32[9,4,4], index: 1, kind: input, shape index: {}]
  %s2 = inlined_call_operand.vmem [shape: f32[1,4], index: 2, kind: input, shape index: {}]
  %s3 = inlined_call_operand.vmem [shape: f32[2,64,4], index: 3, kind: output, shape index: {}]
  %s4 = sld [smem:[#allocation0]]
  $region45: #{_downsample_impl.1} parent=0
    _
  %s6 = ssub.s32 1, %s4
  %s7 = scalar_select 0, %s6, %s4
  loop: start=0, step=1, limit=4
  $region2: #{_downsample_impl.1} parent=0 // loop_pre_header
    _
  $region3: #{_downsample_impl.1} parent=0 // loop_header
    %s9 = sphi 0, %s13
    %p10 = scmp.ge.s32.totalorder %s9, 4
    %s16 = sphi 0, %s28
    %s17 = sphi 0, %s24
    %s18 = sphi 0, %s16
    %s19 = sphi 0, %s17
    %s20 = sphi 0, %s18
    %s21 = sphi 0, %s19
    %s33 = sphi 0, %s35
    %s36 = sphi 0, %s33
    %s37 = sphi 0, %s36
    %s53 = sphi 0, %s37
    %s57 = sphi 0, %s57
    %s59 = sphi 0, %s57
    %s60 = sphi 0, %s59
    %s74 = sphi 0, %s60
    %s78 = sphi 0, %s78
    %s80 = sphi 0, %s78
    %s81 = sphi 0, %s80
    %s95 = sphi 0, %s81
    %s103 = sphi 0, %s105
    %s106 = sphi 0, %s103
    %s107 = sphi 0, %s106
    %s123 = sphi 0, %s107
  $region4: #{_downsample_impl.1} parent=0 // loop_header_branch
    %12 = sbr.rel (%p10) target = $region8
  $region5: #{_downsample_impl.1} parent=0 // loop_body
    %s14 = ssub.s32 %s9, 1
    %s15 = ssub.s32 %s9, 2
    %s22 = sadd.s32 1, %s17
    %p23 = scmp.ge.s32.totalorder %s22, 1
    %s24 = scalar_select %p23, 0, %s22
    %s25 = sadd.s32 1, %s16
    %s26 = scalar_select %p23, %s25, %s16
    %p27 = scmp.ge.s32.totalorder %s26, 2
    %s28 = scalar_select %p27, 0, %s26
    %s29 = ssub.s32 %s16, %s28
    %s30 = ssub.s32 %s17, %s24
    %s31 = sor.u32 %s29, %s30
    %p32 = scmp.eq.s32.totalorder %s31, 0
    %s34 = sadd.s32 %s33, 1
    %s35 = scalar_select %p32, %s33, %s34
    %p38 = pneg %p32
    %p39 = scmp.eq.s32.totalorder %s9, 1
    %p40 = por %p38, %p39
    %p41 = scmp.ne.s32.totalorder %s33, %s36
    %p42 = scmp.eq.s32.totalorder %s9, 0
    %p43 = por %p41, %p42
    %p44 = scmp.ne.s32.totalorder %s33, %s36
    %p45 = scmp.eq.s32.totalorder %s14, 1
    %p46 = por %p44, %p45
    %p47 = scmp.ne.s32.totalorder %s36, %s37
    %p48 = scmp.eq.s32.totalorder %s14, 0
    %p49 = por %p47, %p48
    %p50 = scmp.ne.s32.totalorder %s36, %s37
    %p51 = scmp.eq.s32.totalorder %s15, 1
    %p52 = por %p50, %p51
    %p54 = scmp.ne.s32.totalorder %s37, %s53
    %p55 = scmp.eq.s32.totalorder %s15, 0
    %p56 = por %p54, %p55
    %s58 = sadd.s32 %s57, 1
    %p61 = scmp.eq.s32.totalorder %s9, 1
    %p62 = scmp.ne.s32.totalorder %s57, %s59
    %p63 = scmp.eq.s32.totalorder %s9, 0
    %p64 = por %p62, %p63
    %p65 = scmp.ne.s32.totalorder %s57, %s59
    %p66 = scmp.eq.s32.totalorder %s14, 1
    %p67 = por %p65, %p66
    %p68 = scmp.ne.s32.totalorder %s59, %s60
    %p69 = scmp.eq.s32.totalorder %s14, 0
    %p70 = por %p68, %p69
    %p71 = scmp.ne.s32.totalorder %s59, %s60
    %p72 = scmp.eq.s32.totalorder %s15, 1
    %p73 = por %p71, %p72
    %p75 = scmp.ne.s32.totalorder %s60, %s74
    %p76 = scmp.eq.s32.totalorder %s15, 0
    %p77 = por %p75, %p76
    %s79 = sadd.s32 %s78, 1
    %p82 = scmp.eq.s32.totalorder %s9, 1
    %p83 = scmp.ne.s32.totalorder %s78, %s80
    %p84 = scmp.eq.s32.totalorder %s9, 0
    %p85 = por %p83, %p84
    %p86 = scmp.ne.s32.totalorder %s78, %s80
    %p87 = scmp.eq.s32.totalorder %s14, 1
    %p88 = por %p86, %p87
    %p89 = scmp.ne.s32.totalorder %s80, %s81
    %p90 = scmp.eq.s32.totalorder %s14, 0
    %p91 = por %p89, %p90
    %p92 = scmp.ne.s32.totalorder %s80, %s81
    %p93 = scmp.eq.s32.totalorder %s15, 1
    %p94 = por %p92, %p93
    %p96 = scmp.ne.s32.totalorder %s81, %s95
    %p97 = scmp.eq.s32.totalorder %s15, 0
    %p98 = por %p96, %p97
    %s99 = ssub.s32 %s16, %s28
    %s100 = ssub.s32 %s17, %s24
    %s101 = sor.u32 %s99, %s100
    %p102 = scmp.eq.s32.totalorder %s101, 0
    %s104 = sadd.s32 %s103, 1
    %s105 = scalar_select %p102, %s103, %s104
    %p108 = pneg %p102
    %p109 = scmp.eq.s32.totalorder %s9, 1
    %p110 = por %p108, %p109
    %p111 = scmp.ne.s32.totalorder %s103, %s106
    %p112 = scmp.eq.s32.totalorder %s9, 0
    %p113 = por %p111, %p112
    %p114 = scmp.ne.s32.totalorder %s103, %s106
    %p115 = scmp.eq.s32.totalorder %s14, 1
    %p116 = por %p114, %p115
    %p117 = scmp.ne.s32.totalorder %s106, %s107
    %p118 = scmp.eq.s32.totalorder %s14, 0
    %p119 = por %p117, %p118
    %p120 = scmp.ne.s32.totalorder %s106, %s107
    %p121 = scmp.eq.s32.totalorder %s15, 1
    %p122 = por %p120, %p121
    %p124 = scmp.ne.s32.totalorder %s107, %s123
    %p125 = scmp.eq.s32.totalorder %s15, 0
    %p126 = por %p124, %p125
    %p127 = scmp.le.s32.totalorder 1, %s9
    %p128 = scmp.lt.s32.totalorder %s9, 3
    %p129 = pnand %p127, %p128
    %p130 = pneg %p129
    // Predicated region
    $region9: #{_downsample_impl.1} parent=5 // pred_check
      _
    $region10: #{_downsample_impl.1} parent=5 // pred_check_branch
      %132 = sbr.rel (%p129) target = $region12
    $region11: #{_downsample_impl.1} parent=5 // pred_region
      %s133 = ssub.s32 %s9, 1
      // Predicated region
      $region13: #{_downsample_impl.1} parent=11 // pred_check
        %p134 = pneg %p70
      $region14: #{_downsample_impl.1} parent=11 // pred_check_branch
        %136 = sbr.rel (%p134) target = $region16
      $region15: #{_downsample_impl.1} parent=11 // pred_region
        _
      $region16: #{_downsample_impl.1} parent=11 // pred_fallthru
        _
      // Predicated region
      $region17: #{_downsample_impl.1} parent=11 // pred_check
        %p137 = pneg %p91
      $region18: #{_downsample_impl.1} parent=11 // pred_check_branch
        %139 = sbr.rel (%p137) target = $region20
      $region19: #{_downsample_impl.1} parent=11 // pred_region
        _
      $region20: #{_downsample_impl.1} parent=11 // pred_fallthru
        _
    $region12: #{_downsample_impl.1} parent=5 // pred_fallthru
      _
    %p140 = scmp.lt.s32.totalorder %s9, 2
    // Predicated region
    $region21: #{_downsample_impl.1} parent=5 // pred_check
      %p141 = pneg %p140
    $region22: #{_downsample_impl.1} parent=5 // pred_check_branch
      %143 = sbr.rel (%p141) target = $region24
    $region23: #{_downsample_impl.1} parent=5 // pred_region
      // Predicated region
      $region25: #{_downsample_impl.1} parent=23 // pred_check
        %p144 = pneg %p43
      $region26: #{_downsample_impl.1} parent=23 // pred_check_branch
        %146 = sbr.rel (%p144) target = $region28
      $region27: #{_downsample_impl.1} parent=23 // pred_region
        %p147 = scmp.lt.s32.totalorder %s16, 1
        %s148 = scalar_select %p147, %s16, 1
        %p149 = scmp.lt.s32.totalorder %s17, 0
        %s150 = scalar_select %p149, %s17, 0
        %s151 = smul.addr %s150, 68
        %s152 = smul.addr %s148, 68
        %s153 = sadd.s32 %s151, %s152
        %s154 = smul.addr %s153, 8
        %s155 = scalar_lea.vmem %s0, %s154
      $region28: #{_downsample_impl.1} parent=23 // pred_fallthru
        _
    $region24: #{_downsample_impl.1} parent=5 // pred_fallthru
      _
    %p156 = scmp.le.s32.totalorder 1, %s9
    %p157 = scmp.lt.s32.totalorder %s9, 3
    %p158 = pnand %p156, %p157
    %p159 = pneg %p158
    // Predicated region
    $region29: #{_downsample_impl.1} parent=5 // pred_check
      _
    $region30: #{_downsample_impl.1} parent=5 // pred_check_branch
      %161 = sbr.rel (%p158) target = $region32
    $region31: #{_downsample_impl.1} parent=5 // pred_region
      %s162 = ssub.s32 %s9, 1
      %p163 = scmp.lt.s32.totalorder %s18, 1
      %s164 = scalar_select %p163, %s18, 1
      %p165 = scmp.lt.s32.totalorder %s19, 0
      %s166 = scalar_select %p165, %s19, 0
      %s167 = smul.addr %s166, 68
      %s168 = smul.addr %s164, 68
      %s169 = sadd.s32 %s167, %s168
      %s170 = smul.addr %s169, 8
      %s171 = scalar_lea.vmem %s0, %s170
      %p172 = pneg %p49
      %p173 = pneg %p46
      %p174 = pneg %p70
      %p175 = pneg %p67
      %p176 = pneg %p91
      %p177 = pneg %p88
      %p178 = pneg %p119
      %p179 = pneg %p116
      %s180 = smul.u32 8, %s19
      %p181 = scmp.lt.s32.totalorder %s18, 1
      %s182 = scalar_select %p181, %s18, 1
      %p183 = scmp.lt.s32.totalorder %s180, 7
      %s184 = scalar_select %p183, %s180, 7
      %s185 = smul.addr %s182, 8
      %s186 = sadd.s32 %s184, %s185
      %s187 = smul.addr %s186, 8
      %s188 = scalar_lea.vmem %s3, %s187
      %p189 = scmp.lt.s32.totalorder %s18, 1
      %s190 = scalar_select %p189, %s18, 1
      %p191 = scmp.lt.s32.totalorder %s19, 0
      %s192 = scalar_select %p191, %s19, 0
      %s193 = smul.addr %s192, 68
      %s194 = smul.addr %s190, 68
      %s195 = sadd.s32 %s193, %s194
      %s196 = smul.addr %s195, 8
      %s197 = scalar_lea.vmem %s0, %s196
      %s198 = smul.u32 8, %s19
      %p199 = scmp.lt.s32.totalorder %s18, 1
      %s200 = scalar_select %p199, %s18, 1
      %p201 = scmp.lt.s32.totalorder %s198, 7
      %s202 = scalar_select %p201, %s198, 7
      %s203 = smul.addr %s200, 8
      %s204 = sadd.s32 %s202, %s203
      %s205 = smul.addr %s204, 8
      %s206 = scalar_lea.vmem %s3, %s205
      %s207 = smul.u32 8, %s19
      %v208 = vld [vmem:[%s197] sm:$0xff]
      %v209 = vld [vmem:[%s197 + $0x10] sm:$0xff]
      %v210 = vld [vmem:[%s197 + $0x20] sm:$0xff]
      %v211 = vld [vmem:[%s197 + $0x30] sm:$0xff]
      %v212 = vld [vmem:[%s197 + $0x40] sm:$0xff]
      %v213 = vld [vmem:[%s197 + $0x50] sm:$0xff]
      %v214 = vld [vmem:[%s197 + $0x60] sm:$0xff]
      %v215 = vld [vmem:[%s197 + $0x70] sm:$0xff]
      %v216 = vld [vmem:[%s1] sm:$0xf]
      %s217 = scalar_lea.vmem %s197, 272
      %v218 = vld [vmem:[%s217] sm:$0xff]
      %v219 = vld [vmem:[%s217 + $0x10] sm:$0xff]
      %v220 = vld [vmem:[%s217 + $0x20] sm:$0xff]
      %v221 = vld [vmem:[%s217 + $0x30] sm:$0xff]
      %v222 = vld [vmem:[%s217 + $0x40] sm:$0xff]
      %v223 = vld [vmem:[%s217 + $0x50] sm:$0xff]
      %v224 = vld [vmem:[%s217 + $0x60] sm:$0xff]
      %v225 = vld [vmem:[%s217 + $0x70] sm:$0xff]
      %s226 = scalar_lea.vmem %s1, 4
      %v227 = vld [vmem:[%s226] sm:$0xf]
      %vm228 = vcmask 31744
      %v230 = vsel %vm228, %v218, 0
      %v233 = vsel %vm228, %v219, 0
      %v236 = vsel %vm228, %v220, 0
      %v239 = vsel %vm228, %v221, 0
      %v242 = vsel %vm228, %v222, 0
      %v245 = vsel %vm228, %v223, 0
      %v248 = vsel %vm228, %v224, 0
      %v251 = vsel %vm228, %v225, 0
      %vm253 = vcmask 1043456
      %v255 = vsel %vm253, %v227, 0
      %257 = vmatprep.subr.mxu0 0.0
      %258 = vmatpush1.msra.mxu0 %v255
      %259 = vmatprep.subr.mxu0 0.0
      %260 = vmatpush1.msra.mxu0 0.0
      %261 = vmatprep.subr.mxu0 0.0
      %262 = vmatpush1.msra.mxu0 0.0
      %263 = vmatprep.subr.mxu0 0.0
      %264 = vmatpush1.msra.mxu0 0.0
      %265 = vmatprep.subr.mxu0 0.0
      %266 = vmatpush1.msra.mxu0 0.0
      %267 = vmatprep.subr.mxu0 0.0
      %268 = vmatpush1.msra.mxu0 0.0
      %269 = vmatprep.subr.mxu0 0.0
      %270 = vmatpush1.msra.mxu0 0.0
      %271 = vmatprep.subr.mxu0 0.0
      %272 = vmatpush1.msra.mxu0 0.0
      %273 = vmatprep.subr.mxu0 0.0
      %274 = vmatpush1.msra.mxu0 0.0
      %275 = vmatprep.subr.mxu0 0.0
      %276 = vmatpush1.msra.mxu0 0.0
      %277 = vmatprep.subr.mxu0 0.0
      %278 = vmatpush1.msra.mxu0 0.0
      %279 = vmatprep.subr.mxu0 0.0
      %280 = vmatpush1.msra.mxu0 0.0
      %281 = vmatprep.subr.mxu0 0.0
      %282 = vmatpush1.msra.mxu0 0.0
      %283 = vmatprep.subr.mxu0 0.0
      %284 = vmatpush1.msra.mxu0 0.0
      %285 = vmatprep.subr.mxu0 0.0
      %286 = vmatpush1.msra.mxu0 0.0
      %287 = vmatprep.subr.mxu0 0.0
      %288 = vmatpush1.msra.mxu0 0.0
      %289 = vmatprep.subr.mxu0 0.0
      %290 = vmatpush1.msra.mxu0 0.0
      %291 = vmatprep.subr.mxu0 0.0
      %292 = vmatpush1.msra.mxu0 0.0
      %293 = vmatprep.subr.mxu0 0.0
      %294 = vmatpush1.msra.mxu0 0.0
      %295 = vmatprep.subr.mxu0 0.0
      %296 = vmatpush1.msra.mxu0 0.0
      %297 = vmatprep.subr.mxu0 0.0
      %298 = vmatpush1.msra.mxu0 0.0
      %299 = vmatprep.subr.mxu0 0.0
      %300 = vmatpush1.msra.mxu0 0.0
      %301 = vmatprep.subr.mxu0 0.0
      %302 = vmatpush1.msra.mxu0 0.0
      %303 = vmatprep.subr.mxu0 0.0
      %304 = vmatpush1.msra.mxu0 0.0
      %305 = vmatprep.subr.mxu0 0.0
      %306 = vmatpush1.msra.mxu0 0.0
      %307 = vmatprep.subr.mxu0 0.0
      %308 = vmatpush1.msra.mxu0 0.0
      %309 = vmatprep.subr.mxu0 0.0
      %310 = vmatpush1.msra.mxu0 0.0
      %311 = vmatprep.subr.mxu0 0.0
      %312 = vmatpush1.msra.mxu0 0.0
      %313 = vmatprep.subr.mxu0 0.0
      %314 = vmatpush1.msra.mxu0 0.0
      %315 = vmatprep.subr.mxu0 0.0
      %316 = vmatpush1.msra.mxu0 0.0
      %317 = vmatprep.subr.mxu0 0.0
      %318 = vmatpush1.msra.mxu0 0.0
      %319 = vmatprep.subr.mxu0 0.0
      %320 = vmatpush1.msra.mxu0 0.0
      %321 = vmatprep.mubr.f32.mxu0 0.0
      %322 = vmatmul.mubr.f32.gmra.mrb[0].mxu0 %v230
      %v323 = vpop.f32.mrb[0].mxu0
      %v324 = vadd.f32 0.0, %v323
      %v325 = vpop.f32.mrb[0].mxu0
      %326 = vmatprep.mubr.f32.mxu0 0.0
      %327 = vmatmul.mubr.f32.gmra.mrb[0].mxu0 %v233
      %v328 = vpop.f32.mrb[0].mxu0
      %v329 = vadd.f32 0.0, %v328
      %v330 = vpop.f32.mrb[0].mxu0
      %331 = vmatprep.mubr.f32.mxu0 0.0
      %332 = vmatmul.mubr.f32.gmra.mrb[0].mxu0 %v236
      %v333 = vpop.f32.mrb[0].mxu0
      %v334 = vadd.f32 0.0, %v333
      %v335 = vpop.f32.mrb[0].mxu0
      %336 = vmatprep.mubr.f32.mxu0 0.0
      %337 = vmatmul.mubr.f32.gmra.mrb[0].mxu0 %v239
      %v338 = vpop.f32.mrb[0].mxu0
      %v339 = vadd.f32 0.0, %v338
      %v340 = vpop.f32.mrb[0].mxu0
      %341 = vmatprep.mubr.f32.mxu0 0.0
      %342 = vmatmul.mubr.f32.gmra.mrb[0].mxu0 %v242
      %v343 = vpop.f32.mrb[0].mxu0
      %v344 = vadd.f32 0.0, %v343
      %v345 = vpop.f32.mrb[0].mxu0
      %346 = vmatprep.mubr.f32.mxu0 0.0
      %347 = vmatmul.mubr.f32.gmra.mrb[0].mxu0 %v245
      %v348 = vpop.f32.mrb[0].mxu0
      %v349 = vadd.f32 0.0, %v348
      %v350 = vpop.f32.mrb[0].mxu0
      %351 = vmatprep.mubr.f32.mxu0 0.0
      %352 = vmatmul.mubr.f32.gmra.mrb[0].mxu0 %v248
      %v353 = vpop.f32.mrb[0].mxu0
      %v354 = vadd.f32 0.0, %v353
      %v355 = vpop.f32.mrb[0].mxu0
      %356 = vmatprep.mubr.f32.mxu0 0.0
      %357 = vmatmul.mubr.f32.gmra.mrb[0].mxu0 %v251
      %v358 = vpop.f32.mrb[0].mxu0
      %v359 = vadd.f32 0.0, %v358
      %v360 = vpop.f32.mrb[0].mxu0
      %361 = vdwg.mxu0
      %v363 = vsel %vm228, %v208, 0
      %v366 = vsel %vm228, %v209, 0
      %v369 = vsel %vm228, %v210, 0
      %v372 = vsel %vm228, %v211, 0
      %v375 = vsel %vm228, %v212, 0
      %v378 = vsel %vm228, %v213, 0
      %v381 = vsel %vm228, %v214, 0
      %v384 = vsel %vm228, %v215, 0
      %v387 = vsel %vm253, %v216, 0
      %389 = vmatprep.subr.mxu0 0.0
      %390 = vmatpush1.msra.mxu0 %v387
      %391 = vmatprep.subr.mxu0 0.0
      %392 = vmatpush1.msra.mxu0 0.0
      %393 = vmatprep.subr.mxu0 0.0
      %394 = vmatpush1.msra.mxu0 0.0
      %395 = vmatprep.subr.mxu0 0.0
      %396 = vmatpush1.msra.mxu0 0.0
      %397 = vmatprep.subr.mxu0 0.0
      %398 = vmatpush1.msra.mxu0 0.0
      %399 = vmatprep.subr.mxu0 0.0
      %400 = vmatpush1.msra.mxu0 0.0
      %401 = vmatprep.subr.mxu0 0.0
      %402 = vmatpush1.msra.mxu0 0.0
      %403 = vmatprep.subr.mxu0 0.0
      %404 = vmatpush1.msra.mxu0 0.0
      %405 = vmatprep.subr.mxu0 0.0
      %406 = vmatpush1.msra.mxu0 0.0
      %407 = vmatprep.subr.mxu0 0.0
      %408 = vmatpush1.msra.mxu0 0.0
      %409 = vmatprep.subr.mxu0 0.0
      %410 = vmatpush1.msra.mxu0 0.0
      %411 = vmatprep.subr.mxu0 0.0
      %412 = vmatpush1.msra.mxu0 0.0
      %413 = vmatprep.subr.mxu0 0.0
      %414 = vmatpush1.msra.mxu0 0.0
      %415 = vmatprep.subr.mxu0 0.0
      %416 = vmatpush1.msra.mxu0 0.0
      %417 = vmatprep.subr.mxu0 0.0
      %418 = vmatpush1.msra.mxu0 0.0
      %419 = vmatprep.subr.mxu0 0.0
      %420 = vmatpush1.msra.mxu0 0.0
      %421 = vmatprep.subr.mxu0 0.0
      %422 = vmatpush1.msra.mxu0 0.0
      %423 = vmatprep.subr.mxu0 0.0
      %424 = vmatpush1.msra.mxu0 0.0
      %425 = vmatprep.subr.mxu0 0.0
      %426 = vmatpush1.msra.mxu0 0.0
      %427 = vmatprep.subr.mxu0 0.0
      %428 = vmatpush1.msra.mxu0 0.0
      %429 = vmatprep.subr.mxu0 0.0
      %430 = vmatpush1.msra.mxu0 0.0
      %431 = vmatprep.subr.mxu0 0.0
      %432 = vmatpush1.msra.mxu0 0.0
      %433 = vmatprep.subr.mxu0 0.0
      %434 = vmatpush1.msra.mxu0 0.0
      %435 = vmatprep.subr.mxu0 0.0
      %436 = vmatpush1.msra.mxu0 0.0
      %437 = vmatprep.subr.mxu0 0.0
      %438 = vmatpush1.msra.mxu0 0.0
      %439 = vmatprep.subr.mxu0 0.0
      %440 = vmatpush1.msra.mxu0 0.0
      %441 = vmatprep.subr.mxu0 0.0
      %442 = vmatpush1.msra.mxu0 0.0
      %443 = vmatprep.subr.mxu0 0.0
      %444 = vmatpush1.msra.mxu0 0.0
      %445 = vmatprep.subr.mxu0 0.0
      %446 = vmatpush1.msra.mxu0 0.0
      %447 = vmatprep.subr.mxu0 0.0
      %448 = vmatpush1.msra.mxu0 0.0
      %449 = vmatprep.subr.mxu0 0.0
      %450 = vmatpush1.msra.mxu0 0.0
      %451 = vmatprep.subr.mxu0 0.0
      %452 = vmatpush1.msra.mxu0 0.0
      %453 = vmatprep.mubr.f32.mxu0 0.0
      %454 = vmatmul.mubr.f32.gmra.mrb[0].mxu0 %v363
      %v455 = vpop.f32.mrb[0].mxu0
      %v456 = vadd.f32 %v324, %v455
      %v457 = vpop.f32.mrb[0].mxu0
      %458 = vmatprep.mubr.f32.mxu0 0.0
      %459 = vmatmul.mubr.f32.gmra.mrb[0].mxu0 %v366
      %v460 = vpop.f32.mrb[0].mxu0
      %v461 = vadd.f32 %v329, %v460
      %v462 = vpop.f32.mrb[0].mxu0
      %463 = vmatprep.mubr.f32.mxu0 0.0
      %464 = vmatmul.mubr.f32.gmra.mrb[0].mxu0 %v369
      %v465 = vpop.f32.mrb[0].mxu0
      %v466 = vadd.f32 %v334, %v465
      %v467 = vpop.f32.mrb[0].mxu0
      %468 = vmatprep.mubr.f32.mxu0 0.0
      %469 = vmatmul.mubr.f32.gmra.mrb[0].mxu0 %v372
      %v470 = vpop.f32.mrb[0].mxu0
      %v471 = vadd.f32 %v339, %v470
      %v472 = vpop.f32.mrb[0].mxu0
      %473 = vmatprep.mubr.f32.mxu0 0.0
      %474 = vmatmul.mubr.f32.gmra.mrb[0].mxu0 %v375
      %v475 = vpop.f32.mrb[0].mxu0
      %v476 = vadd.f32 %v344, %v475
      %v477 = vpop.f32.mrb[0].mxu0
      %478 = vmatprep.mubr.f32.mxu0 0.0
      %479 = vmatmul.mubr.f32.gmra.mrb[0].mxu0 %v378
      %v480 = vpop.f32.mrb[0].mxu0
      %v481 = vadd.f32 %v349, %v480
      %v482 = vpop.f32.mrb[0].mxu0
      %483 = vmatprep.mubr.f32.mxu0 0.0
      %484 = vmatmul.mubr.f32.gmra.mrb[0].mxu0 %v381
      %v485 = vpop.f32.mrb[0].mxu0
      %v486 = vadd.f32 %v354, %v485
      %v487 = vpop.f32.mrb[0].mxu0
      %488 = vmatprep.mubr.f32.mxu0 0.0
      %489 = vmatmul.mubr.f32.gmra.mrb[0].mxu0 %v384
      %v490 = vpop.f32.mrb[0].mxu0
      %v491 = vadd.f32 %v359, %v490
      %v492 = vpop.f32.mrb[0].mxu0
      %493 = vdwg.mxu0
      %v494 = vld [vmem:[%s197 + $0x1] sm:$0xff]
      %v495 = vld [vmem:[%s197 + $0x11] sm:$0xff]
      %v496 = vld [vmem:[%s197 + $0x21] sm:$0xff]
      %v497 = vld [vmem:[%s197 + $0x31] sm:$0xff]
      %v498 = vld [vmem:[%s197 + $0x41] sm:$0xff]
      %v499 = vld [vmem:[%s197 + $0x51] sm:$0xff]
      %v500 = vld [vmem:[%s197 + $0x61] sm:$0xff]
      %v501 = vld [vmem:[%s197 + $0x71] sm:$0xff]
      %s502 = scalar_lea.vmem %s1, 8
      %v503 = vld [vmem:[%s502] sm:$0xf]
      %v505 = vsel %vm228, %v494, 0
      %v508 = vsel %vm228, %v495, 0
      %v511 = vsel %vm228, %v496, 0
      %v514 = vsel %vm228, %v497, 0
      %v517 = vsel %vm228, %v498, 0
      %v520 = vsel %vm228, %v499, 0
      %v523 = vsel %vm228, %v500, 0
      %v526 = vsel %vm228, %v501, 0
      %v529 = vsel %vm253, %v503, 0
      %531 = vmatprep.subr.mxu0 0.0
      %532 = vmatpush1.msra.mxu0 %v529
      %533 = vmatprep.subr.mxu0 0.0
      %534 = vmatpush1.msra.mxu0 0.0
      %535 = vmatprep.subr.mxu0 0.0
      %536 = vmatpush1.msra.mxu0 0.0
      %537 = vmatprep.subr.mxu0 0.0
      %538 = vmatpush1.msra.mxu0 0.0
      %539 = vmatprep.subr.mxu0 0.0
      %540 = vmatpush1.msra.mxu0 0.0
      %541 = vmatprep.subr.mxu0 0.0
      %542 = vmatpush1.msra.mxu0 0.0
      %543 = vmatprep.subr.mxu0 0.0
      %544 = vmatpush1.msra.mxu0 0.0
      %545 = vmatprep.subr.mxu0 0.0
      %546 = vmatpush1.msra.mxu0 0.0
      %547 = vmatprep.subr.mxu0 0.0
      %548 = vmatpush1.msra.mxu0 0.0
      %549 = vmatprep.subr.mxu0 0.0
      %550 = vmatpush1.msra.mxu0 0.0
      %551 = vmatprep.subr.mxu0 0.0
      %552 = vmatpush1.msra.mxu0 0.0
      %553 = vmatprep.subr.mxu0 0.0
      %554 = vmatpush1.msra.mxu0 0.0
      %555 = vmatprep.subr.mxu0 0.0
      %556 = vmatpush1.msra.mxu0 0.0
      %557 = vmatprep.subr.mxu0 0.0
      %558 = vmatpush1.msra.mxu0 0.0
      %559 = vmatprep.subr.mxu0 0.0
      %560 = vmatpush1.msra.mxu0 0.0
      %561 = vmatprep.subr.mxu0 0.0
      %562 = vmatpush1.msra.mxu0 0.0
      %563 = vmatprep.subr.mxu0 0.0
      %564 = vmatpush1.msra.mxu0 0.0
      %565 = vmatprep.subr.mxu0 0.0
      %566 = vmatpush1.msra.mxu0 0.0
      %567 = vmatprep.subr.mxu0 0.0
      %568 = vmatpush1.msra.mxu0 0.0
      %569 = vmatprep.subr.mxu0 0.0
      %570 = vmatpush1.msra.mxu0 0.0
      %571 = vmatprep.subr.mxu0 0.0
      %572 = vmatpush1.msra.mxu0 0.0
      %573 = vmatprep.subr.mxu0 0.0
      %574 = vmatpush1.msra.mxu0 0.0
      %575 = vmatprep.subr.mxu0 0.0
      %576 = vmatpush1.msra.mxu0 0.0
      %577 = vmatprep.subr.mxu0 0.0
      %578 = vmatpush1.msra.mxu0 0.0
      %579 = vmatprep.subr.mxu0 0.0
      %580 = vmatpush1.msra.mxu0 0.0
      %581 = vmatprep.subr.mxu0 0.0
      %582 = vmatpush1.msra.mxu0 0.0
      %583 = vmatprep.subr.mxu0 0.0
      %584 = vmatpush1.msra.mxu0 0.0
      %585 = vmatprep.subr.mxu0 0.0
      %586 = vmatpush1.msra.mxu0 0.0
      %587 = vmatprep.subr.mxu0 0.0
      %588 = vmatpush1.msra.mxu0 0.0
      %589 = vmatprep.subr.mxu0 0.0
      %590 = vmatpush1.msra.mxu0 0.0
      %591 = vmatprep.subr.mxu0 0.0
      %592 = vmatpush1.msra.mxu0 0.0
      %593 = vmatprep.subr.mxu0 0.0
      %594 = vmatpush1.msra.mxu0 0.0
      %595 = vmatprep.mubr.f32.mxu0 0.0
      %596 = vmatmul.mubr.f32.gmra.mrb[0].mxu0 %v505
      %v597 = vpop.f32.mrb[0].mxu0
      %v598 = vadd.f32 0.0, %v597
      %v599 = vpop.f32.mrb[0].mxu0
      %600 = vmatprep.mubr.f32.mxu0 0.0
      %601 = vmatmul.mubr.f32.gmra.mrb[0].mxu0 %v508
      %v602 = vpop.f32.mrb[0].mxu0
      %v603 = vadd.f32 0.0, %v602
      %v604 = vpop.f32.mrb[0].mxu0
      %605 = vmatprep.mubr.f32.mxu0 0.0
      %606 = vmatmul.mubr.f32.gmra.mrb[0].mxu0 %v511
      %v607 = vpop.f32.mrb[0].mxu0
      %v608 = vadd.f32 0.0, %v607
      %v609 = vpop.f32.mrb[0].mxu0
      %610 = vmatprep.mubr.f32.mxu0 0.0
      %611 = vmatmul.mubr.f32.gmra.mrb[0].mxu0 %v514
      %v612 = vpop.f32.mrb[0].mxu0
      %v613 = vadd.f32 0.0, %v612
      %v614 = vpop.f32.mrb[0].mxu0
      %615 = vmatprep.mubr.f32.mxu0 0.0
      %616 = vmatmul.mubr.f32.gmra.mrb[0].mxu0 %v517
      %v617 = vpop.f32.mrb[0].mxu0
      %v618 = vadd.f32 0.0, %v617
      %v619 = vpop.f32.mrb[0].mxu0
      %620 = vmatprep.mubr.f32.mxu0 0.0
      %621 = vmatmul.mubr.f32.gmra.mrb[0].mxu0 %v520
      %v622 = vpop.f32.mrb[0].mxu0
      %v623 = vadd.f32 0.0, %v622
      %v624 = vpop.f32.mrb[0].mxu0
      %625 = vmatprep.mubr.f32.mxu0 0.0
      %626 = vmatmul.mubr.f32.gmra.mrb[0].mxu0 %v523
      %v627 = vpop.f32.mrb[0].mxu0
      %v628 = vadd.f32 0.0, %v627
      %v629 = vpop.f32.mrb[0].mxu0
      %630 = vmatprep.mubr.f32.mxu0 0.0
      %631 = vmatmul.mubr.f32.gmra.mrb[0].mxu0 %v526
      %v632 = vpop.f32.mrb[0].mxu0
      %v633 = vadd.f32 0.0, %v632
      %v634 = vpop.f32.mrb[0].mxu0
      %635 = vdwg.mxu0
      %v636 = vadd.f32 %v456, %v598
      %v637 = vadd.f32 %v461, %v603
      %v638 = vadd.f32 %v466, %v608
      %v639 = vadd.f32 %v471, %v613
      %v640 = vadd.f32 %v476, %v618
      %v641 = vadd.f32 %v481, %v623
      %v642 = vadd.f32 %v486, %v628
      %v643 = vadd.f32 %v491, %v633
      %s644 = scalar_lea.vmem %s197, 144
      %v645 = vld [vmem:[%s644] sm:$0xff]
      %v646 = vld [vmem:[%s644 + $0x10] sm:$0xff]
      %v647 = vld [vmem:[%s644 + $0x20] sm:$0xff]
      %v648 = vld [vmem:[%s644 + $0x30] sm:$0xff]
      %v649 = vld [vmem:[%s644 + $0x40] sm:$0xff]
      %v650 = vld [vmem:[%s644 + $0x50] sm:$0xff]
      %v651 = vld [vmem:[%s644 + $0x60] sm:$0xff]
      %v652 = vld [vmem:[%s644 + $0x70] sm:$0xff]
      %s653 = scalar_lea.vmem %s1, 12
      %v654 = vld [vmem:[%s653] sm:$0xf]
      %v656 = vsel %vm228, %v645, 0
      %v659 = vsel %vm228, %v646, 0
      %v662 = vsel %vm228, %v647, 0
      %v665 = vsel %vm228, %v648, 0
      %v668 = vsel %vm228, %v649, 0
      %v671 = vsel %vm228, %v650, 0
      %v674 = vsel %vm228, %v651, 0
      %v677 = vsel %vm228, %v652, 0
      %v680 = vsel %vm253, %v654, 0
      %682 = vmatprep.subr.mxu0 0.0
      %683 = vmatpush1.msra.mxu0 %v680
      %684 = vmatprep.subr.mxu0 0.0
      %685 = vmatpush1.msra.mxu0 0.0
      %686 = vmatprep.subr.mxu0 0.0
      %687 = vmatpush1.msra.mxu0 0.0
      %688 = vmatprep.subr.mxu0 0.0
      %689 = vmatpush1.msra.mxu0 0.0
      %690 = vmatprep.subr.mxu0 0.0
      %691 = vmatpush1.msra.mxu0 0.0
      %692 = vmatprep.subr.mxu0 0.0
      %693 = vmatpush1.msra.mxu0 0.0
      %694 = vmatprep.subr.mxu0 0.0
      %695 = vmatpush1.msra.mxu0 0.0
      %696 = vmatprep.subr.mxu0 0.0
      %697 = vmatpush1.msra.mxu0 0.0
      %698 = vmatprep.subr.mxu0 0.0
      %699 = vmatpush1.msra.mxu0 0.0
      %700 = vmatprep.subr.mxu0 0.0
      %701 = vmatpush1.msra.mxu0 0.0
      %702 = vmatprep.subr.mxu0 0.0
      %703 = vmatpush1.msra.mxu0 0.0
      %704 = vmatprep.subr.mxu0 0.0
      %705 = vmatpush1.msra.mxu0 0.0
      %706 = vmatprep.subr.mxu0 0.0
      %707 = vmatpush1.msra.mxu0 0.0
      %708 = vmatprep.subr.mxu0 0.0
      %709 = vmatpush1.msra.mxu0 0.0
      %710 = vmatprep.subr.mxu0 0.0
      %711 = vmatpush1.msra.mxu0 0.0
      %712 = vmatprep.subr.mxu0 0.0
      %713 = vmatpush1.msra.mxu0 0.0
      %714 = vmatprep.subr.mxu0 0.0
      %715 = vmatpush1.msra.mxu0 0.0
      %716 = vmatprep.subr.mxu0 0.0
      %717 = vmatpush1.msra.mxu0 0.0
      %718 = vmatprep.subr.mxu0 0.0
      %719 = vmatpush1.msra.mxu0 0.0
      %720 = vmatprep.subr.mxu0 0.0
      %721 = vmatpush1.msra.mxu0 0.0
      %722 = vmatprep.subr.mxu0 0.0
      %723 = vmatpush1.msra.mxu0 0.0
      %724 = vmatprep.subr.mxu0 0.0
      %725 = vmatpush1.msra.mxu0 0.0
      %726 = vmatprep.subr.mxu0 0.0
      %727 = vmatpush1.msra.mxu0 0.0
      %728 = vmatprep.subr.mxu0 0.0
      %729 = vmatpush1.msra.mxu0 0.0
      %730 = vmatprep.subr.mxu0 0.0
      %731 = vmatpush1.msra.mxu0 0.0
      %732 = vmatprep.subr.mxu0 0.0
      %733 = vmatpush1.msra.mxu0 0.0
      %734 = vmatprep.subr.mxu0 0.0
      %735 = vmatpush1.msra.mxu0 0.0
      %736 = vmatprep.subr.mxu0 0.0
      %737 = vmatpush1.msra.mxu0 0.0
      %738 = vmatprep.subr.mxu0 0.0
      %739 = vmatpush1.msra.mxu0 0.0
      %740 = vmatprep.subr.mxu0 0.0
      %741 = vmatpush1.msra.mxu0 0.0
      %742 = vmatprep.subr.mxu0 0.0
      %743 = vmatpush1.msra.mxu0 0.0
      %744 = vmatprep.subr.mxu0 0.0
      %745 = vmatpush1.msra.mxu0 0.0
      %746 = vmatprep.mubr.f32.mxu0 0.0
      %747 = vmatmul.mubr.f32.gmra.mrb[0].mxu0 %v656
      %v748 = vpop.f32.mrb[0].mxu0
      %v749 = vadd.f32 0.0, %v748
      %v750 = vpop.f32.mrb[0].mxu0
      %751 = vmatprep.mubr.f32.mxu0 0.0
      %752 = vmatmul.mubr.f32.gmra.mrb[0].mxu0 %v659
      %v753 = vpop.f32.mrb[0].mxu0
      %v754 = vadd.f32 0.0, %v753
      %v755 = vpop.f32.mrb[0].mxu0
      %756 = vmatprep.mubr.f32.mxu0 0.0
      %757 = vmatmul.mubr.f32.gmra.mrb[0].mxu0 %v662
      %v758 = vpop.f32.mrb[0].mxu0
      %v759 = vadd.f32 0.0, %v758
      %v760 = vpop.f32.mrb[0].mxu0
      %761 = vmatprep.mubr.f32.mxu0 0.0
      %762 = vmatmul.mubr.f32.gmra.mrb[0].mxu0 %v665
      %v763 = vpop.f32.mrb[0].mxu0
      %v764 = vadd.f32 0.0, %v763
      %v765 = vpop.f32.mrb[0].mxu0
      %766 = vmatprep.mubr.f32.mxu0 0.0
      %767 = vmatmul.mubr.f32.gmra.mrb[0].mxu0 %v668
      %v768 = vpop.f32.mrb[0].mxu0
      %v769 = vadd.f32 0.0, %v768
      %v770 = vpop.f32.mrb[0].mxu0
      %771 = vmatprep.mubr.f32.mxu0 0.0
      %772 = vmatmul.mubr.f32.gmra.mrb[0].mxu0 %v671
      %v773 = vpop.f32.mrb[0].mxu0
      %v774 = vadd.f32 0.0, %v773
      %v775 = vpop.f32.mrb[0].mxu0
      %776 = vmatprep.mubr.f32.mxu0 0.0
      %777 = vmatmul.mubr.f32.gmra.mrb[0].mxu0 %v674
      %v778 = vpop.f32.mrb[0].mxu0
      %v779 = vadd.f32 0.0, %v778
      %v780 = vpop.f32.mrb[0].mxu0
      %781 = vmatprep.mubr.f32.mxu0 0.0
      %782 = vmatmul.mubr.f32.gmra.mrb[0].mxu0 %v677
      %v783 = vpop.f32.mrb[0].mxu0
      %v784 = vadd.f32 0.0, %v783
      %v785 = vpop.f32.mrb[0].mxu0
      %786 = vdwg.mxu0
      %v787 = vadd.f32 %v636, %v749
      %v788 = vadd.f32 %v637, %v754
      %v789 = vadd.f32 %v638, %v759
      %v790 = vadd.f32 %v639, %v764
      %v791 = vadd.f32 %v640, %v769
      %v792 = vadd.f32 %v641, %v774
      %v793 = vadd.f32 %v642, %v779
      %v794 = vadd.f32 %v643, %v784
      %s795 = scalar_lea.vmem %s197, 416
      %v796 = vld [vmem:[%s795] sm:$0xff]
      %v797 = vld [vmem:[%s795 + $0x10] sm:$0xff]
      %v798 = vld [vmem:[%s795 + $0x20] sm:$0xff]
      %v799 = vld [vmem:[%s795 + $0x30] sm:$0xff]
      %v800 = vld [vmem:[%s795 + $0x40] sm:$0xff]
      %v801 = vld [vmem:[%s795 + $0x50] sm:$0xff]
      %v802 = vld [vmem:[%s795 + $0x60] sm:$0xff]
      %v803 = vld [vmem:[%s795 + $0x70] sm:$0xff]
      %s804 = scalar_lea.vmem %s1, 16
      %v805 = vld [vmem:[%s804] sm:$0xf]
      %v807 = vsel %vm228, %v796, 0
      %v810 = vsel %vm228, %v797, 0
      %v813 = vsel %vm228, %v798, 0
      %v816 = vsel %vm228, %v799, 0
      %v819 = vsel %vm228, %v800, 0
      %v822 = vsel %vm228, %v801, 0
      %v825 = vsel %vm228, %v802, 0
      %v828 = vsel %vm228, %v803, 0
      %v831 = vsel %vm253, %v805, 0
      %833 = vmatprep.subr.mxu0 0.0
      %834 = vmatpush1.msra.mxu0 %v831
      %835 = vmatprep.subr.mxu0 0.0
      %836 = vmatpush1.msra.mxu0 0.0
      %837 = vmatprep.subr.mxu0 0.0
      %838 = vmatpush1.msra.mxu0 0.0
      %839 = vmatprep.subr.mxu0 0.0
      %840 = vmatpush1.msra.mxu0 0.0
      %841 = vmatprep.subr.mxu0 0.0
      %842 = vmatpush1.msra.mxu0 0.0
      %843 = vmatprep.subr.mxu0 0.0
      %844 = vmatpush1.msra.mxu0 0.0
      %845 = vmatprep.subr.mxu0 0.0
      %846 = vmatpush1.msra.mxu0 0.0
      %847 = vmatprep.subr.mxu0 0.0
      %848 = vmatpush1.msra.mxu0 0.0
      %849 = vmatprep.subr.mxu0 0.0
      %850 = vmatpush1.msra.mxu0 0.0
      %851 = vmatprep.subr.mxu0 0.0
      %852 = vmatpush1.msra.mxu0 0.0
      %853 = vmatprep.subr.mxu0 0.0
      %854 = vmatpush1.msra.mxu0 0.0
      %855 = vmatprep.subr.mxu0 0.0
      %856 = vmatpush1.msra.mxu0 0.0
      %857 = vmatprep.subr.mxu0 0.0
      %858 = vmatpush1.msra.mxu0 0.0
      %859 = vmatprep.subr.mxu0 0.0
      %860 = vmatpush1.msra.mxu0 0.0
      %861 = vmatprep.subr.mxu0 0.0
      %862 = vmatpush1.msra.mxu0 0.0
      %863 = vmatprep.subr.mxu0 0.0
      %864 = vmatpush1.msra.mxu0 0.0
      %865 = vmatprep.subr.mxu0 0.0
      %866 = vmatpush1.msra.mxu0 0.0
      %867 = vmatprep.subr.mxu0 0.0
      %868 = vmatpush1.msra.mxu0 0.0
      %869 = vmatprep.subr.mxu0 0.0
      %870 = vmatpush1.msra.mxu0 0.0
      %871 = vmatprep.subr.mxu0 0.0
      %872 = vmatpush1.msra.mxu0 0.0
      %873 = vmatprep.subr.mxu0 0.0
      %874 = vmatpush1.msra.mxu0 0.0
      %875 = vmatprep.subr.mxu0 0.0
      %876 = vmatpush1.msra.mxu0 0.0
      %877 = vmatprep.subr.mxu0 0.0
      %878 = vmatpush1.msra.mxu0 0.0
      %879 = vmatprep.subr.mxu0 0.0
      %880 = vmatpush1.msra.mxu0 0.0
      %881 = vmatprep.subr.mxu0 0.0
      %882 = vmatpush1.msra.mxu0 0.0
      %883 = vmatprep.subr.mxu0 0.0
      %884 = vmatpush1.msra.mxu0 0.0
      %885 = vmatprep.subr.mxu0 0.0
      %886 = vmatpush1.msra.mxu0 0.0
      %887 = vmatprep.subr.mxu0 0.0
      %888 = vmatpush1.msra.mxu0 0.0
      %889 = vmatprep.subr.mxu0 0.0
      %890 = vmatpush1.msra.mxu0 0.0
      %891 = vmatprep.subr.mxu0 0.0
      %892 = vmatpush1.msra.mxu0 0.0
      %893 = vmatprep.subr.mxu0 0.0
      %894 = vmatpush1.msra.mxu0 0.0
      %895 = vmatprep.subr.mxu0 0.0
      %896 = vmatpush1.msra.mxu0 0.0
      %897 = vmatprep.mubr.f32.mxu0 0.0
      %898 = vmatmul.mubr.f32.gmra.mrb[0].mxu0 %v807
      %v899 = vpop.f32.mrb[0].mxu0
      %v900 = vadd.f32 0.0, %v899
      %v901 = vpop.f32.mrb[0].mxu0
      %902 = vmatprep.mubr.f32.mxu0 0.0
      %903 = vmatmul.mubr.f32.gmra.mrb[0].mxu0 %v810
      %v904 = vpop.f32.mrb[0].mxu0
      %v905 = vadd.f32 0.0, %v904
      %v906 = vpop.f32.mrb[0].mxu0
      %907 = vmatprep.mubr.f32.mxu0 0.0
      %908 = vmatmul.mubr.f32.gmra.mrb[0].mxu0 %v813
      %v909 = vpop.f32.mrb[0].mxu0
      %v910 = vadd.f32 0.0, %v909
      %v911 = vpop.f32.mrb[0].mxu0
      %912 = vmatprep.mubr.f32.mxu0 0.0
      %913 = vmatmul.mubr.f32.gmra.mrb[0].mxu0 %v816
      %v914 = vpop.f32.mrb[0].mxu0
      %v915 = vadd.f32 0.0, %v914
      %v916 = vpop.f32.mrb[0].mxu0
      %917 = vmatprep.mubr.f32.mxu0 0.0
      %918 = vmatmul.mubr.f32.gmra.mrb[0].mxu0 %v819
      %v919 = vpop.f32.mrb[0].mxu0
      %v920 = vadd.f32 0.0, %v919
      %v921 = vpop.f32.mrb[0].mxu0
      %922 = vmatprep.mubr.f32.mxu0 0.0
      %923 = vmatmul.mubr.f32.gmra.mrb[0].mxu0 %v822
      %v924 = vpop.f32.mrb[0].mxu0
      %v925 = vadd.f32 0.0, %v924
      %v926 = vpop.f32.mrb[0].mxu0
      %927 = vmatprep.mubr.f32.mxu0 0.0
      %928 = vmatmul.mubr.f32.gmra.mrb[0].mxu0 %v825
      %v929 = vpop.f32.mrb[0].mxu0
      %v930 = vadd.f32 0.0, %v929
      %v931 = vpop.f32.mrb[0].mxu0
      %932 = vmatprep.mubr.f32.mxu0 0.0
      %933 = vmatmul.mubr.f32.gmra.mrb[0].mxu0 %v828
      %v934 = vpop.f32.mrb[0].mxu0
      %v935 = vadd.f32 0.0, %v934
      %v936 = vpop.f32.mrb[0].mxu0
      %937 = vdwg.mxu0
      %v938 = vadd.f32 %v787, %v900
      %v939 = vadd.f32 %v788, %v905
      %v940 = vadd.f32 %v789, %v910
      %v941 = vadd.f32 %v790, %v915
      %v942 = vadd.f32 %v791, %v920
      %v943 = vadd.f32 %v792, %v925
      %v944 = vadd.f32 %v793, %v930
      %v945 = vadd.f32 %v794, %v935
      %v946 = vld [vmem:[%s644 + $0x1] sm:$0xff]
      %v947 = vld [vmem:[%s644 + $0x11] sm:$0xff]
      %v948 = vld [vmem:[%s644 + $0x21] sm:$0xff]
      %v949 = vld [vmem:[%s644 + $0x31] sm:$0xff]
      %v950 = vld [vmem:[%s644 + $0x41] sm:$0xff]
      %v951 = vld [vmem:[%s644 + $0x51] sm:$0xff]
      %v952 = vld [vmem:[%s644 + $0x61] sm:$0xff]
      %v953 = vld [vmem:[%s644 + $0x71] sm:$0xff]
      %s954 = scalar_lea.vmem %s1, 20
      %v955 = vld [vmem:[%s954] sm:$0xf]
      %v957 = vsel %vm228, %v946, 0
      %v960 = vsel %vm228, %v947, 0
      %v963 = vsel %vm228, %v948, 0
      %v966 = vsel %vm228, %v949, 0
      %v969 = vsel %vm228, %v950, 0
      %v972 = vsel %vm228, %v951, 0
      %v975 = vsel %vm228, %v952, 0
      %v978 = vsel %vm228, %v953, 0
      %v981 = vsel %vm253, %v955, 0
      %983 = vmatprep.subr.mxu0 0.0
      %984 = vmatpush1.msra.mxu0 %v981
      %985 = vmatprep.subr.mxu0 0.0
      %986 = vmatpush1.msra.mxu0 0.0
      %987 = vmatprep.subr.mxu0 0.0
      %988 = vmatpush1.msra.mxu0 0.0
      %989 = vmatprep.subr.mxu0 0.0
      %990 = vmatpush1.msra.mxu0 0.0
      %991 = vmatprep.subr.mxu0 0.0
      %992 = vmatpush1.msra.mxu0 0.0
      %993 = vmatprep.subr.mxu0 0.0
      %994 = vmatpush1.msra.mxu0 0.0
      %995 = vmatprep.subr.mxu0 0.0
      %996 = vmatpush1.msra.mxu0 0.0
      %997 = vmatprep.subr.mxu0 0.0
      %998 = vmatpush1.msra.mxu0 0.0
      %999 = vmatprep.subr.mxu0 0.0
      %1000 = vmatpush1.msra.mxu0 0.0
      %1001 = vmatprep.subr.mxu0 0.0
      %1002 = vmatpush1.msra.mxu0 0.0
      %1003 = vmatprep.subr.mxu0 0.0
      %1004 = vmatpush1.msra.mxu0 0.0
      %1005 = vmatprep.subr.mxu0 0.0
      %1006 = vmatpush1.msra.mxu0 0.0
      %1007 = vmatprep.subr.mxu0 0.0
      %1008 = vmatpush1.msra.mxu0 0.0
      %1009 = vmatprep.subr.mxu0 0.0
      %1010 = vmatpush1.msra.mxu0 0.0
      %1011 = vmatprep.subr.mxu0 0.0
      %1012 = vmatpush1.msra.mxu0 0.0
      %1013 = vmatprep.subr.mxu0 0.0
      %1014 = vmatpush1.msra.mxu0 0.0
      %1015 = vmatprep.subr.mxu0 0.0
      %1016 = vmatpush1.msra.mxu0 0.0
      %1017 = vmatprep.subr.mxu0 0.0
      %1018 = vmatpush1.msra.mxu0 0.0
      %1019 = vmatprep.subr.mxu0 0.0
      %1020 = vmatpush1.msra.mxu0 0.0
      %1021 = vmatprep.subr.mxu0 0.0
      %1022 = vmatpush1.msra.mxu0 0.0
      %1023 = vmatprep.subr.mxu0 0.0
      %1024 = vmatpush1.msra.mxu0 0.0
      %1025 = vmatprep.subr.mxu0 0.0
      %1026 = vmatpush1.msra.mxu0 0.0
      %1027 = vmatprep.subr.mxu0 0.0
      %1028 = vmatpush1.msra.mxu0 0.0
      %1029 = vmatprep.subr.mxu0 0.0
      %1030 = vmatpush1.msra.mxu0 0.0
      %1031 = vmatprep.subr.mxu0 0.0
      %1032 = vmatpush1.msra.mxu0 0.0
      %1033 = vmatprep.subr.mxu0 0.0
      %1034 = vmatpush1.msra.mxu0 0.0
      %1035 = vmatprep.subr.mxu0 0.0
      %1036 = vmatpush1.msra.mxu0 0.0
      %1037 = vmatprep.subr.mxu0 0.0
      %1038 = vmatpush1.msra.mxu0 0.0
      %1039 = vmatprep.subr.mxu0 0.0
      %1040 = vmatpush1.msra.mxu0 0.0
      %1041 = vmatprep.subr.mxu0 0.0
      %1042 = vmatpush1.msra.mxu0 0.0
      %1043 = vmatprep.subr.mxu0 0.0
      %1044 = vmatpush1.msra.mxu0 0.0
      %1045 = vmatprep.subr.mxu0 0.0
      %1046 = vmatpush1.msra.mxu0 0.0
      %1047 = vmatprep.mubr.f32.mxu0 0.0
      %1048 = vmatmul.mubr.f32.gmra.mrb[0].mxu0 %v957
      %v1049 = vpop.f32.mrb[0].mxu0
      %v1050 = vadd.f32 0.0, %v1049
      %v1051 = vpop.f32.mrb[0].mxu0
      %1052 = vmatprep.mubr.f32.mxu0 0.0
      %1053 = vmatmul.mubr.f32.gmra.mrb[0].mxu0 %v960
      %v1054 = vpop.f32.mrb[0].mxu0
      %v1055 = vadd.f32 0.0, %v1054
      %v1056 = vpop.f32.mrb[0].mxu0
      %1057 = vmatprep.mubr.f32.mxu0 0.0
      %1058 = vmatmul.mubr.f32.gmra.mrb[0].mxu0 %v963
      %v1059 = vpop.f32.mrb[0].mxu0
      %v1060 = vadd.f32 0.0, %v1059
      %v1061 = vpop.f32.mrb[0].mxu0
      %1062 = vmatprep.mubr.f32.mxu0 0.0
      %1063 = vmatmul.mubr.f32.gmra.mrb[0].mxu0 %v966
      %v1064 = vpop.f32.mrb[0].mxu0
      %v1065 = vadd.f32 0.0, %v1064
      %v1066 = vpop.f32.mrb[0].mxu0
      %1067 = vmatprep.mubr.f32.mxu0 0.0
      %1068 = vmatmul.mubr.f32.gmra.mrb[0].mxu0 %v969
      %v1069 = vpop.f32.mrb[0].mxu0
      %v1070 = vadd.f32 0.0, %v1069
      %v1071 = vpop.f32.mrb[0].mxu0
      %1072 = vmatprep.mubr.f32.mxu0 0.0
      %1073 = vmatmul.mubr.f32.gmra.mrb[0].mxu0 %v972
      %v1074 = vpop.f32.mrb[0].mxu0
      %v1075 = vadd.f32 0.0, %v1074
      %v1076 = vpop.f32.mrb[0].mxu0
      %1077 = vmatprep.mubr.f32.mxu0 0.0
      %1078 = vmatmul.mubr.f32.gmra.mrb[0].mxu0 %v975
      %v1079 = vpop.f32.mrb[0].mxu0
      %v1080 = vadd.f32 0.0, %v1079
      %v1081 = vpop.f32.mrb[0].mxu0
      %1082 = vmatprep.mubr.f32.mxu0 0.0
      %1083 = vmatmul.mubr.f32.gmra.mrb[0].mxu0 %v978
      %v1084 = vpop.f32.mrb[0].mxu0
      %v1085 = vadd.f32 0.0, %v1084
      %v1086 = vpop.f32.mrb[0].mxu0
      %1087 = vdwg.mxu0
      %v1088 = vadd.f32 %v938, %v1050
      %v1089 = vadd.f32 %v939, %v1055
      %v1090 = vadd.f32 %v940, %v1060
      %v1091 = vadd.f32 %v941, %v1065
      %v1092 = vadd.f32 %v942, %v1070
      %v1093 = vadd.f32 %v943, %v1075
      %v1094 = vadd.f32 %v944, %v1080
      %v1095 = vadd.f32 %v945, %v1085
      %s1096 = scalar_lea.vmem %s197, 16
      %v1097 = vld [vmem:[%s1096] sm:$0xff]
      %v1098 = vld [vmem:[%s1096 + $0x10] sm:$0xff]
      %v1099 = vld [vmem:[%s1096 + $0x20] sm:$0xff]
      %v1100 = vld [vmem:[%s1096 + $0x30] sm:$0xff]
      %v1101 = vld [vmem:[%s1096 + $0x40] sm:$0xff]
      %v1102 = vld [vmem:[%s1096 + $0x50] sm:$0xff]
      %v1103 = vld [vmem:[%s1096 + $0x60] sm:$0xff]
      %v1104 = vld [vmem:[%s1096 + $0x70] sm:$0xff]
      %s1105 = scalar_lea.vmem %s1, 24
      %v1106 = vld [vmem:[%s1105] sm:$0xf]
      %v1108 = vsel %vm228, %v1097, 0
      %v1111 = vsel %vm228, %v1098, 0
      %v1114 = vsel %vm228, %v1099, 0
      %v1117 = vsel %vm228, %v1100, 0
      %v1120 = vsel %vm228, %v1101, 0
      %v1123 = vsel %vm228, %v1102, 0
      %v1126 = vsel %vm228, %v1103, 0
      %v1129 = vsel %vm228, %v1104, 0
      %v1132 = vsel %vm253, %v1106, 0
      %1134 = vmatprep.subr.mxu0 0.0
      %1135 = vmatpush1.msra.mxu0 %v1132
      %1136 = vmatprep.subr.mxu0 0.0
      %1137 = vmatpush1.msra.mxu0 0.0
      %1138 = vmatprep.subr.mxu0 0.0
      %1139 = vmatpush1.msra.mxu0 0.0
      %1140 = vmatprep.subr.mxu0 0.0
      %1141 = vmatpush1.msra.mxu0 0.0
      %1142 = vmatprep.subr.mxu0 0.0
      %1143 = vmatpush1.msra.mxu0 0.0
      %1144 = vmatprep.subr.mxu0 0.0
      %1145 = vmatpush1.msra.mxu0 0.0
      %1146 = vmatprep.subr.mxu0 0.0
      %1147 = vmatpush1.msra.mxu0 0.0
      %1148 = vmatprep.subr.mxu0 0.0
      %1149 = vmatpush1.msra.mxu0 0.0
      %1150 = vmatprep.subr.mxu0 0.0
      %1151 = vmatpush1.msra.mxu0 0.0
      %1152 = vmatprep.subr.mxu0 0.0
      %1153 = vmatpush1.msra.mxu0 0.0
      %1154 = vmatprep.subr.mxu0 0.0
      %1155 = vmatpush1.msra.mxu0 0.0
      %1156 = vmatprep.subr.mxu0 0.0
      %1157 = vmatpush1.msra.mxu0 0.0
      %1158 = vmatprep.subr.mxu0 0.0
      %1159 = vmatpush1.msra.mxu0 0.0
      %1160 = vmatprep.subr.mxu0 0.0
      %1161 = vmatpush1.msra.mxu0 0.0
      %1162 = vmatprep.subr.mxu0 0.0
      %1163 = vmatpush1.msra.mxu0 0.0
      %1164 = vmatprep.subr.mxu0 0.0
      %1165 = vmatpush1.msra.mxu0 0.0
      %1166 = vmatprep.subr.mxu0 0.0
      %1167 = vmatpush1.msra.mxu0 0.0
      %1168 = vmatprep.subr.mxu0 0.0
      %1169 = vmatpush1.msra.mxu0 0.0
      %1170 = vmatprep.subr.mxu0 0.0
      %1171 = vmatpush1.msra.mxu0 0.0
      %1172 = vmatprep.subr.mxu0 0.0
      %1173 = vmatpush1.msra.mxu0 0.0
      %1174 = vmatprep.subr.mxu0 0.0
      %1175 = vmatpush1.msra.mxu0 0.0
      %1176 = vmatprep.subr.mxu0 0.0
      %1177 = vmatpush1.msra.mxu0 0.0
      %1178 = vmatprep.subr.mxu0 0.0
      %1179 = vmatpush1.msra.mxu0 0.0
      %1180 = vmatprep.subr.mxu0 0.0
      %1181 = vmatpush1.msra.mxu0 0.0
      %1182 = vmatprep.subr.mxu0 0.0
      %1183 = vmatpush1.msra.mxu0 0.0
      %1184 = vmatprep.subr.mxu0 0.0
      %1185 = vmatpush1.msra.mxu0 0.0
      %1186 = vmatprep.subr.mxu0 0.0
      %1187 = vmatpush1.msra.mxu0 0.0
      %1188 = vmatprep.subr.mxu0 0.0
      %1189 = vmatpush1.msra.mxu0 0.0
      %1190 = vmatprep.subr.mxu0 0.0
      %1191 = vmatpush1.msra.mxu0 0.0
      %1192 = vmatprep.subr.mxu0 0.0
      %1193 = vmatpush1.msra.mxu0 0.0
      %1194 = vmatprep.subr.mxu0 0.0
      %1195 = vmatpush1.msra.mxu0 0.0
      %1196 = vmatprep.subr.mxu0 0.0
      %1197 = vmatpush1.msra.mxu0 0.0
      %1198 = vmatprep.mubr.f32.mxu0 0.0
      %1199 = vmatmul.mubr.f32.gmra.mrb[0].mxu0 %v1108
      %v1200 = vpop.f32.mrb[0].mxu0
      %v1201 = vadd.f32 0.0, %v1200
      %v1202 = vpop.f32.mrb[0].mxu0
      %1203 = vmatprep.mubr.f32.mxu0 0.0
      %1204 = vmatmul.mubr.f32.gmra.mrb[0].mxu0 %v1111
      %v1205 = vpop.f32.mrb[0].mxu0
      %v1206 = vadd.f32 0.0, %v1205
      %v1207 = vpop.f32.mrb[0].mxu0
      %1208 = vmatprep.mubr.f32.mxu0 0.0
      %1209 = vmatmul.mubr.f32.gmra.mrb[0].mxu0 %v1114
      %v1210 = vpop.f32.mrb[0].mxu0
      %v1211 = vadd.f32 0.0, %v1210
      %v1212 = vpop.f32.mrb[0].mxu0
      %1213 = vmatprep.mubr.f32.mxu0 0.0
      %1214 = vmatmul.mubr.f32.gmra.mrb[0].mxu0 %v1117
      %v1215 = vpop.f32.mrb[0].mxu0
      %v1216 = vadd.f32 0.0, %v1215
      %v1217 = vpop.f32.mrb[0].mxu0
      %1218 = vmatprep.mubr.f32.mxu0 0.0
      %1219 = vmatmul.mubr.f32.gmra.mrb[0].mxu0 %v1120
      %v1220 = vpop.f32.mrb[0].mxu0
      %v1221 = vadd.f32 0.0, %v1220
      %v1222 = vpop.f32.mrb[0].mxu0
      %1223 = vmatprep.mubr.f32.mxu0 0.0
      %1224 = vmatmul.mubr.f32.gmra.mrb[0].mxu0 %v1123
      %v1225 = vpop.f32.mrb[0].mxu0
      %v1226 = vadd.f32 0.0, %v1225
      %v1227 = vpop.f32.mrb[0].mxu0
      %1228 = vmatprep.mubr.f32.mxu0 0.0
      %1229 = vmatmul.mubr.f32.gmra.mrb[0].mxu0 %v1126
      %v1230 = vpop.f32.mrb[0].mxu0
      %v1231 = vadd.f32 0.0, %v1230
      %v1232 = vpop.f32.mrb[0].mxu0
      %1233 = vmatprep.mubr.f32.mxu0 0.0
      %1234 = vmatmul.mubr.f32.gmra.mrb[0].mxu0 %v1129
      %v1235 = vpop.f32.mrb[0].mxu0
      %v1236 = vadd.f32 0.0, %v1235
      %v1237 = vpop.f32.mrb[0].mxu0
      %1238 = vdwg.mxu0
      %v1239 = vadd.f32 %v1088, %v1201
      %v1240 = vadd.f32 %v1089, %v1206
      %v1241 = vadd.f32 %v1090, %v1211
      %v1242 = vadd.f32 %v1091, %v1216
      %v1243 = vadd.f32 %v1092, %v1221
      %v1244 = vadd.f32 %v1093, %v1226
      %v1245 = vadd.f32 %v1094, %v1231
      %v1246 = vadd.f32 %v1095, %v1236
      %s1247 = scalar_lea.vmem %s197, 288
      %v1248 = vld [vmem:[%s1247] sm:$0xff]
      %v1249 = vld [vmem:[%s1247 + $0x10] sm:$0xff]
      %v1250 = vld [vmem:[%s1247 + $0x20] sm:$0xff]
      %v1251 = vld [vmem:[%s1247 + $0x30] sm:$0xff]
      %v1252 = vld [vmem:[%s1247 + $0x40] sm:$0xff]
      %v1253 = vld [vmem:[%s1247 + $0x50] sm:$0xff]
      %v1254 = vld [vmem:[%s1247 + $0x60] sm:$0xff]
      %v1255 = vld [vmem:[%s1247 + $0x70] sm:$0xff]
      %s1256 = scalar_lea.vmem %s1, 28
      %v1257 = vld [vmem:[%s1256] sm:$0xf]
      %v1259 = vsel %vm228, %v1248, 0
      %v1262 = vsel %vm228, %v1249, 0
      %v1265 = vsel %vm228, %v1250, 0
      %v1268 = vsel %vm228, %v1251, 0
      %v1271 = vsel %vm228, %v1252, 0
      %v1274 = vsel %vm228, %v1253, 0
      %v1277 = vsel %vm228, %v1254, 0
      %v1280 = vsel %vm228, %v1255, 0
      %v1283 = vsel %vm253, %v1257, 0
      %1285 = vmatprep.subr.mxu0 0.0
      %1286 = vmatpush1.msra.mxu0 %v1283
      %1287 = vmatprep.subr.mxu0 0.0
      %1288 = vmatpush1.msra.mxu0 0.0
      %1289 = vmatprep.subr.mxu0 0.0
      %1290 = vmatpush1.msra.mxu0 0.0
      %1291 = vmatprep.subr.mxu0 0.0
      %1292 = vmatpush1.msra.mxu0 0.0
      %1293 = vmatprep.subr.mxu0 0.0
      %1294 = vmatpush1.msra.mxu0 0.0
      %1295 = vmatprep.subr.mxu0 0.0
      %1296 = vmatpush1.msra.mxu0 0.0
      %1297 = vmatprep.subr.mxu0 0.0
      %1298 = vmatpush1.msra.mxu0 0.0
      %1299 = vmatprep.subr.mxu0 0.0
      %1300 = vmatpush1.msra.mxu0 0.0
      %1301 = vmatprep.subr.mxu0 0.0
      %1302 = vmatpush1.msra.mxu0 0.0
      %1303 = vmatprep.subr.mxu0 0.0
      %1304 = vmatpush1.msra.mxu0 0.0
      %1305 = vmatprep.subr.mxu0 0.0
      %1306 = vmatpush1.msra.mxu0 0.0
      %1307 = vmatprep.subr.mxu0 0.0
      %1308 = vmatpush1.msra.mxu0 0.0
      %1309 = vmatprep.subr.mxu0 0.0
      %1310 = vmatpush1.msra.mxu0 0.0
      %1311 = vmatprep.subr.mxu0 0.0
      %1312 = vmatpush1.msra.mxu0 0.0
      %1313 = vmatprep.subr.mxu0 0.0
      %1314 = vmatpush1.msra.mxu0 0.0
      %1315 = vmatprep.subr.mxu0 0.0
      %1316 = vmatpush1.msra.mxu0 0.0
      %1317 = vmatprep.subr.mxu0 0.0
      %1318 = vmatpush1.msra.mxu0 0.0
      %1319 = vmatprep.subr.mxu0 0.0
      %1320 = vmatpush1.msra.mxu0 0.0
      %1321 = vmatprep.subr.mxu0 0.0
      %1322 = vmatpush1.msra.mxu0 0.0
      %1323 = vmatprep.subr.mxu0 0.0
      %1324 = vmatpush1.msra.mxu0 0.0
      %1325 = vmatprep.subr.mxu0 0.0
      %1326 = vmatpush1.msra.mxu0 0.0
      %1327 = vmatprep.subr.mxu0 0.0
      %1328 = vmatpush1.msra.mxu0 0.0
      %1329 = vmatprep.subr.mxu0 0.0
      %1330 = vmatpush1.msra.mxu0 0.0
      %1331 = vmatprep.subr.mxu0 0.0
      %1332 = vmatpush1.msra.mxu0 0.0
      %1333 = vmatprep.subr.mxu0 0.0
      %1334 = vmatpush1.msra.mxu0 0.0
      %1335 = vmatprep.subr.mxu0 0.0
      %1336 = vmatpush1.msra.mxu0 0.0
      %1337 = vmatprep.subr.mxu0 0.0
      %1338 = vmatpush1.msra.mxu0 0.0
      %1339 = vmatprep.subr.mxu0 0.0
      %1340 = vmatpush1.msra.mxu0 0.0
      %1341 = vmatprep.subr.mxu0 0.0
      %1342 = vmatpush1.msra.mxu0 0.0
      %1343 = vmatprep.subr.mxu0 0.0
      %1344 = vmatpush1.msra.mxu0 0.0
      %1345 = vmatprep.subr.mxu0 0.0
      %1346 = vmatpush1.msra.mxu0 0.0
      %1347 = vmatprep.subr.mxu0 0.0
      %1348 = vmatpush1.msra.mxu0 0.0
      %1349 = vmatprep.mubr.f32.mxu0 0.0
      %1350 = vmatmul.mubr.f32.gmra.mrb[0].mxu0 %v1259
      %v1351 = vpop.f32.mrb[0].mxu0
      %v1352 = vadd.f32 0.0, %v1351
      %v1353 = vpop.f32.mrb[0].mxu0
      %1354 = vmatprep.mubr.f32.mxu0 0.0
      %1355 = vmatmul.mubr.f32.gmra.mrb[0].mxu0 %v1262
      %v1356 = vpop.f32.mrb[0].mxu0
      %v1357 = vadd.f32 0.0, %v1356
      %v1358 = vpop.f32.mrb[0].mxu0
      %1359 = vmatprep.mubr.f32.mxu0 0.0
      %1360 = vmatmul.mubr.f32.gmra.mrb[0].mxu0 %v1265
      %v1361 = vpop.f32.mrb[0].mxu0
      %v1362 = vadd.f32 0.0, %v1361
      %v1363 = vpop.f32.mrb[0].mxu0
      %1364 = vmatprep.mubr.f32.mxu0 0.0
      %1365 = vmatmul.mubr.f32.gmra.mrb[0].mxu0 %v1268
      %v1366 = vpop.f32.mrb[0].mxu0
      %v1367 = vadd.f32 0.0, %v1366
      %v1368 = vpop.f32.mrb[0].mxu0
      %1369 = vmatprep.mubr.f32.mxu0 0.0
      %1370 = vmatmul.mubr.f32.gmra.mrb[0].mxu0 %v1271
      %v1371 = vpop.f32.mrb[0].mxu0
      %v1372 = vadd.f32 0.0, %v1371
      %v1373 = vpop.f32.mrb[0].mxu0
      %1374 = vmatprep.mubr.f32.mxu0 0.0
      %1375 = vmatmul.mubr.f32.gmra.mrb[0].mxu0 %v1274
      %v1376 = vpop.f32.mrb[0].mxu0
      %v1377 = vadd.f32 0.0, %v1376
      %v1378 = vpop.f32.mrb[0].mxu0
      %1379 = vmatprep.mubr.f32.mxu0 0.0
      %1380 = vmatmul.mubr.f32.gmra.mrb[0].mxu0 %v1277
      %v1381 = vpop.f32.mrb[0].mxu0
      %v1382 = vadd.f32 0.0, %v1381
      %v1383 = vpop.f32.mrb[0].mxu0
      %1384 = vmatprep.mubr.f32.mxu0 0.0
      %1385 = vmatmul.mubr.f32.gmra.mrb[0].mxu0 %v1280
      %v1386 = vpop.f32.mrb[0].mxu0
      %v1387 = vadd.f32 0.0, %v1386
      %v1388 = vpop.f32.mrb[0].mxu0
      %1389 = vdwg.mxu0
      %v1390 = vadd.f32 %v1239, %v1352
      %v1391 = vadd.f32 %v1240, %v1357
      %v1392 = vadd.f32 %v1241, %v1362
      %v1393 = vadd.f32 %v1242, %v1367
      %v1394 = vadd.f32 %v1243, %v1372
      %v1395 = vadd.f32 %v1244, %v1377
      %v1396 = vadd.f32 %v1245, %v1382
      %v1397 = vadd.f32 %v1246, %v1387
      %v1398 = vld [vmem:[%s1096 + $0x1] sm:$0xff]
      %v1399 = vld [vmem:[%s1096 + $0x11] sm:$0xff]
      %v1400 = vld [vmem:[%s1096 + $0x21] sm:$0xff]
      %v1401 = vld [vmem:[%s1096 + $0x31] sm:$0xff]
      %v1402 = vld [vmem:[%s1096 + $0x41] sm:$0xff]
      %v1403 = vld [vmem:[%s1096 + $0x51] sm:$0xff]
      %v1404 = vld [vmem:[%s1096 + $0x61] sm:$0xff]
      %v1405 = vld [vmem:[%s1096 + $0x71] sm:$0xff]
      %s1406 = scalar_lea.vmem %s1, 32
      %v1407 = vld [vmem:[%s1406] sm:$0xf]
      %v1409 = vsel %vm228, %v1398, 0
      %v1412 = vsel %vm228, %v1399, 0
      %v1415 = vsel %vm228, %v1400, 0
      %v1418 = vsel %vm228, %v1401, 0
      %v1421 = vsel %vm228, %v1402, 0
      %v1424 = vsel %vm228, %v1403, 0
      %v1427 = vsel %vm228, %v1404, 0
      %v1430 = vsel %vm228, %v1405, 0
      %v1433 = vsel %vm253, %v1407, 0
      %1435 = vmatprep.subr.mxu0 0.0
      %1436 = vmatpush1.msra.mxu0 %v1433
      %1437 = vmatprep.subr.mxu0 0.0
      %1438 = vmatpush1.msra.mxu0 0.0
      %1439 = vmatprep.subr.mxu0 0.0
      %1440 = vmatpush1.msra.mxu0 0.0
      %1441 = vmatprep.subr.mxu0 0.0
      %1442 = vmatpush1.msra.mxu0 0.0
      %1443 = vmatprep.subr.mxu0 0.0
      %1444 = vmatpush1.msra.mxu0 0.0
      %1445 = vmatprep.subr.mxu0 0.0
      %1446 = vmatpush1.msra.mxu0 0.0
      %1447 = vmatprep.subr.mxu0 0.0
      %1448 = vmatpush1.msra.mxu0 0.0
      %1449 = vmatprep.subr.mxu0 0.0
      %1450 = vmatpush1.msra.mxu0 0.0
      %1451 = vmatprep.subr.mxu0 0.0
      %1452 = vmatpush1.msra.mxu0 0.0
      %1453 = vmatprep.subr.mxu0 0.0
      %1454 = vmatpush1.msra.mxu0 0.0
      %1455 = vmatprep.subr.mxu0 0.0
      %1456 = vmatpush1.msra.mxu0 0.0
      %1457 = vmatprep.subr.mxu0 0.0
      %1458 = vmatpush1.msra.mxu0 0.0
      %1459 = vmatprep.subr.mxu0 0.0
      %1460 = vmatpush1.msra.mxu0 0.0
      %1461 = vmatprep.subr.mxu0 0.0
      %1462 = vmatpush1.msra.mxu0 0.0
      %1463 = vmatprep.subr.mxu0 0.0
      %1464 = vmatpush1.msra.mxu0 0.0
      %1465 = vmatprep.subr.mxu0 0.0
      %1466 = vmatpush1.msra.mxu0 0.0
      %1467 = vmatprep.subr.mxu0 0.0
      %1468 = vmatpush1.msra.mxu0 0.0
      %1469 = vmatprep.subr.mxu0 0.0
      %1470 = vmatpush1.msra.mxu0 0.0
      %1471 = vmatprep.subr.mxu0 0.0
      %1472 = vmatpush1.msra.mxu0 0.0
      %1473 = vmatprep.subr.mxu0 0.0
      %1474 = vmatpush1.msra.mxu0 0.0
      %1475 = vmatprep.subr.mxu0 0.0
      %1476 = vmatpush1.msra.mxu0 0.0
      %1477 = vmatprep.subr.mxu0 0.0
      %1478 = vmatpush1.msra.mxu0 0.0
      %1479 = vmatprep.subr.mxu0 0.0
      %1480 = vmatpush1.msra.mxu0 0.0
      %1481 = vmatprep.subr.mxu0 0.0
      %1482 = vmatpush1.msra.mxu0 0.0
      %1483 = vmatprep.subr.mxu0 0.0
      %1484 = vmatpush1.msra.mxu0 0.0
      %1485 = vmatprep.subr.mxu0 0.0
      %1486 = vmatpush1.msra.mxu0 0.0
      %1487 = vmatprep.subr.mxu0 0.0
      %1488 = vmatpush1.msra.mxu0 0.0
      %1489 = vmatprep.subr.mxu0 0.0
      %1490 = vmatpush1.msra.mxu0 0.0
      %1491 = vmatprep.subr.mxu0 0.0
      %1492 = vmatpush1.msra.mxu0 0.0
      %1493 = vmatprep.subr.mxu0 0.0
      %1494 = vmatpush1.msra.mxu0 0.0
      %1495 = vmatprep.subr.mxu0 0.0
      %1496 = vmatpush1.msra.mxu0 0.0
      %1497 = vmatprep.subr.mxu0 0.0
      %1498 = vmatpush1.msra.mxu0 0.0
      %1499 = vmatprep.mubr.f32.mxu0 0.0
      %1500 = vmatmul.mubr.f32.gmra.mrb[0].mxu0 %v1409
      %v1501 = vpop.f32.mrb[0].mxu0
      %v1502 = vadd.f32 0.0, %v1501
      %v1503 = vpop.f32.mrb[0].mxu0
      %1504 = vmatprep.mubr.f32.mxu0 0.0
      %1505 = vmatmul.mubr.f32.gmra.mrb[0].mxu0 %v1412
      %v1506 = vpop.f32.mrb[0].mxu0
      %v1507 = vadd.f32 0.0, %v1506
      %v1508 = vpop.f32.mrb[0].mxu0
      %1509 = vmatprep.mubr.f32.mxu0 0.0
      %1510 = vmatmul.mubr.f32.gmra.mrb[0].mxu0 %v1415
      %v1511 = vpop.f32.mrb[0].mxu0
      %v1512 = vadd.f32 0.0, %v1511
      %v1513 = vpop.f32.mrb[0].mxu0
      %1514 = vmatprep.mubr.f32.mxu0 0.0
      %1515 = vmatmul.mubr.f32.gmra.mrb[0].mxu0 %v1418
      %v1516 = vpop.f32.mrb[0].mxu0
      %v1517 = vadd.f32 0.0, %v1516
      %v1518 = vpop.f32.mrb[0].mxu0
      %1519 = vmatprep.mubr.f32.mxu0 0.0
      %1520 = vmatmul.mubr.f32.gmra.mrb[0].mxu0 %v1421
      %v1521 = vpop.f32.mrb[0].mxu0
      %v1522 = vadd.f32 0.0, %v1521
      %v1523 = vpop.f32.mrb[0].mxu0
      %1524 = vmatprep.mubr.f32.mxu0 0.0
      %1525 = vmatmul.mubr.f32.gmra.mrb[0].mxu0 %v1424
      %v1526 = vpop.f32.mrb[0].mxu0
      %v1527 = vadd.f32 0.0, %v1526
      %v1528 = vpop.f32.mrb[0].mxu0
      %1529 = vmatprep.mubr.f32.mxu0 0.0
      %1530 = vmatmul.mubr.f32.gmra.mrb[0].mxu0 %v1427
      %v1531 = vpop.f32.mrb[0].mxu0
      %v1532 = vadd.f32 0.0, %v1531
      %v1533 = vpop.f32.mrb[0].mxu0
      %1534 = vmatprep.mubr.f32.mxu0 0.0
      %1535 = vmatmul.mubr.f32.gmra.mrb[0].mxu0 %v1430
      %v1536 = vpop.f32.mrb[0].mxu0
      %v1537 = vadd.f32 0.0, %v1536
      %v1538 = vpop.f32.mrb[0].mxu0
      %1539 = vdwg.mxu0
      %v1540 = vadd.f32 %v1390, %v1502
      %v1541 = vadd.f32 %v1391, %v1507
      %v1542 = vadd.f32 %v1392, %v1512
      %v1543 = vadd.f32 %v1393, %v1517
      %v1544 = vadd.f32 %v1394, %v1522
      %v1545 = vadd.f32 %v1395, %v1527
      %v1546 = vadd.f32 %v1396, %v1532
      %v1547 = vadd.f32 %v1397, %v1537
      %v1548 = vld [vmem:[%s2] sm:$0x1]
      %v1550 = vlaneseq
      %v1551 = vshrl.u32 %v1550, 7
      %v1552 = vsub.s32 0, %v1551
      %v1553 = vrot.slane %v1548, %v1552
      %v1555 = vadd.f32 %v1540, %v1553
      %v1556 = vadd.f32 %v1541, %v1553
      %v1557 = vadd.f32 %v1542, %v1553
      %v1558 = vadd.f32 %v1543, %v1553
      %v1559 = vadd.f32 %v1544, %v1553
      %v1560 = vadd.f32 %v1545, %v1553
      %v1561 = vadd.f32 %v1546, %v1553
      %v1562 = vadd.f32 %v1547, %v1553
      %1563 = vst.msk [vmem:[%s206] sm:$0xff] %vm228, %v1555
      %1564 = vst.msk [vmem:[%s206 + $0x8] sm:$0xff] %vm228, %v1556
      %1565 = vst.msk [vmem:[%s206 + $0x10] sm:$0xff] %vm228, %v1557
      %1566 = vst.msk [vmem:[%s206 + $0x18] sm:$0xff] %vm228, %v1558
      %1567 = vst.msk [vmem:[%s206 + $0x20] sm:$0xff] %vm228, %v1559
      %1568 = vst.msk [vmem:[%s206 + $0x28] sm:$0xff] %vm228, %v1560
      %1569 = vst.msk [vmem:[%s206 + $0x30] sm:$0xff] %vm228, %v1561
      %1570 = vst.msk [vmem:[%s206 + $0x38] sm:$0xff] %vm228, %v1562
      %s1571 = smul.u32 8, %s19
      %p1572 = scmp.lt.s32.totalorder %s18, 1
      %s1573 = scalar_select %p1572, %s18, 1
      %p1574 = scmp.lt.s32.totalorder %s1571, 7
      %s1575 = scalar_select %p1574, %s1571, 7
      %s1576 = smul.addr %s1573, 8
      %s1577 = sadd.s32 %s1575, %s1576
      %s1578 = smul.addr %s1577, 8
      %s1579 = scalar_lea.vmem %s3, %s1578
      // Predicated region
      $region33: #{_downsample_impl.1} parent=31 // pred_check
        %p1580 = pneg %p116
      $region34: #{_downsample_impl.1} parent=31 // pred_check_branch
        %1582 = sbr.rel (%p1580) target = $region36
      $region35: #{_downsample_impl.1} parent=31 // pred_region
        %s1583 = smul.u32 8, %s19
      $region36: #{_downsample_impl.1} parent=31 // pred_fallthru
        _
    $region32: #{_downsample_impl.1} parent=5 // pred_fallthru
      _
    %p1584 = scmp.le.s32.totalorder 2, %s9
    // Predicated region
    $region37: #{_downsample_impl.1} parent=5 // pred_check
      %p1585 = pneg %p1584
    $region38: #{_downsample_impl.1} parent=5 // pred_check_branch
      %1587 = sbr.rel (%p1585) target = $region40
    $region39: #{_downsample_impl.1} parent=5 // pred_region
      %s1588 = ssub.s32 %s9, 2
      // Predicated region
      $region41: #{_downsample_impl.1} parent=39 // pred_check
        %p1589 = pneg %p122
      $region42: #{_downsample_impl.1} parent=39 // pred_check_branch
        %1591 = sbr.rel (%p1589) target = $region44
      $region43: #{_downsample_impl.1} parent=39 // pred_region
        %s1592 = smul.u32 8, %s21
        %p1593 = scmp.lt.s32.totalorder %s20, 1
        %s1594 = scalar_select %p1593, %s20, 1
        %p1595 = scmp.lt.s32.totalorder %s1592, 7
        %s1596 = scalar_select %p1595, %s1592, 7
        %s1597 = smul.addr %s1594, 8
        %s1598 = sadd.s32 %s1596, %s1597
        %s1599 = smul.addr %s1598, 8
        %s1600 = scalar_lea.vmem %s3, %s1599
      $region44: #{_downsample_impl.1} parent=39 // pred_fallthru
        _
    $region40: #{_downsample_impl.1} parent=5 // pred_fallthru
      _
  $region6: #{_downsample_impl.1} parent=0 // loop_footer
    %s13 = sadd.s32 1, %s9
  $region7: #{_downsample_impl.1} parent=0 // loop_footer_branch
    %8 = sbr.rel target = $region3
  $region8: #{_downsample_impl.1} parent=0 // loop_exit
    _

</llo_original>
